<compile_context>
chip_gen: v5e
topology: v5e:2x2
jax: 0.10.0
libtpu: 0.0.40
codegen_flags: <defaults>
</compile_context>

<pallas_src>
import functools
import numpy as np
import jax
import jax.numpy as jnp
from jax.experimental import pallas as pl
from jax.experimental.pallas import tpu as pltpu

# ---------------- module hyper-parameters (PyTorch defaults) ----------------
NUM_WIRES = 4
CUTOFF = 5
NUM_LAYERS = 2
OUTPUT_SIZE = "single"        # expval of X quadrature on wire 0 -> output shape (batch,)
ACTIVE_SD = 1e-4
PASSIVE_SD = 0.1
NORMALIZE_INPUTS = True
DROPOUT_RATE = 0.0            # 0.0 -> torch.nn.Dropout is never constructed (identity)

DIM = CUTOFF ** NUM_WIRES     # 625  Fock-space dimension
REST = DIM // CUTOFF          # 125  joint dimension of wires 1..3
BLOCK = 128                   # lane-aligned padding of each wire-0 level block
DIM_PAD = CUTOFF * BLOCK      # 640  padded (block) dimension
W_COLS = (CUTOFF - 1) * BLOCK # 512  columns of the observable weight row
MAX_BATCH_PAD = 128           # max batch rows per plane per tile (M up to 256 stacked)

M_INT = 3 * NUM_WIRES - 2     # 10 params per interferometer block
N_PARAMS = 9 * NUM_WIRES - 4  # 32 params per CV layer == weight_shapes['var'][1]

# ---------------- host-side NumPy glue: Fock-space gate construction ----------------
def _expm(m, terms=30):
    """Scaling-and-squaring matrix exponential (complex128, host-side parameter setup)."""
    m = np.asarray(m, dtype=np.complex128)
    nrm = np.linalg.norm(m, ord=np.inf)
    s = 0 if nrm == 0 else max(0, int(np.ceil(np.log2(nrm))) + 1)
    a = m / (2.0 ** s)
    term = np.eye(m.shape[0], dtype=np.complex128)
    out = np.eye(m.shape[0], dtype=np.complex128)
    for k in range(1, terms):
        term = term @ a / k
        out = out + term
    for _ in range(s):
        out = out @ out
    return out


_a = np.diag(np.sqrt(np.arange(1, CUTOFF, dtype=np.float64)), k=1).astype(np.complex128)
_adag = _a.conj().T
_nvec = np.arange(CUTOFF, dtype=np.float64)
_eye = np.eye(CUTOFF, dtype=np.complex128)


def _rotation(phi):
    return np.diag(np.exp(1j * phi * _nvec))


def _squeeze(r):
    return _expm(0.5 * r * (_a @ _a - _adag @ _adag))


def _displace(r):
    return _expm(r * (_adag - _a))


def _kerr(kappa):
    return np.diag(np.exp(1j * kappa * _nvec ** 2))


def _beamsplitter(theta, phi):
    g = theta * (np.exp(1j * phi) * np.kron(_a, _adag) -
                 np.exp(-1j * phi) * np.kron(_adag, _a))
    return _expm(g)


def _embed_single(op, wire):
    mats = [_eye] * NUM_WIRES
    mats[wire] = op
    return functools.reduce(np.kron, mats)


def _embed_pair(op, wire):  # acts on (wire, wire+1)
    left = np.eye(CUTOFF ** wire, dtype=np.complex128)
    right = np.eye(CUTOFF ** (NUM_WIRES - wire - 2), dtype=np.complex128)
    return np.kron(np.kron(left, op), right)


def _interferometer(p):
    """p has 3N-2 params: (N-1) BS thetas, (N-1) BS phis, N rotations."""
    U = np.eye(DIM, dtype=np.complex128)
    for i in range(NUM_WIRES - 1):
        U = _embed_pair(_beamsplitter(p[i], p[NUM_WIRES - 1 + i]), i) @ U
    for w in range(NUM_WIRES):
        U = _embed_single(_rotation(p[2 * (NUM_WIRES - 1) + w]), w) @ U
    return U


def _layer_unitary(p):
    """CV-QNN layer (9N-4 params): Int1 -> Squeeze -> Int2 -> Displace -> Kerr."""
    int1 = p[0:M_INT]
    sq = p[M_INT:M_INT + NUM_WIRES]
    int2 = p[M_INT + NUM_WIRES:2 * M_INT + NUM_WIRES]
    dr = p[2 * M_INT + NUM_WIRES:2 * M_INT + 2 * NUM_WIRES]
    kp = p[2 * M_INT + 2 * NUM_WIRES:]
    U = _interferometer(int1)
    for w in range(NUM_WIRES):
        U = _embed_single(_squeeze(sq[w]), w) @ U
    U = _interferometer(int2) @ U
    for w in range(NUM_WIRES):
        U = _embed_single(_displace(dr[w]), w) @ U
    for w in range(NUM_WIRES):
        U = _embed_single(_kerr(kp[w]), w) @ U
    return U


def _encode_sample(x):
    # TODO(synk): exact qaintum default encoder is unspecified in the module; approximate it
    # by displacement-encoding each (mod-2pi-normalized) feature onto its wire's vacuum.
    # TODO(synk): for large batches, vectorize/cache this per-sample kron chain
    # (host encoding would otherwise dominate over the few-us Pallas kernel).
    vac = np.zeros(CUTOFF, dtype=np.complex128)
    vac[0] = 1.0
    psi = np.ones(1, dtype=np.complex128)
    for w in range(NUM_WIRES):
        psi = np.kron(psi, _displace(float(x[w])) @ vac)
    return psi


# ---------------- block-padded layout helpers (host side) ----------------
def _pad_state(psi):
    """(625,) complex -> (640,) complex in block-padded layout I = n0*128 + r."""
    p = np.zeros((CUTOFF, BLOCK), dtype=np.complex128)
    p[:, :REST] = psi.reshape(CUTOFF, REST)
    return p.reshape(DIM_PAD)


def _pad_unitary(U):
    """(625,625) complex -> (640,640) complex in block-padded layout (both axes)."""
    Up = np.zeros((CUTOFF, BLOCK, CUTOFF, BLOCK), dtype=np.complex128)
    Up[:, :REST, :, :REST] = U.reshape(CUTOFF, REST, CUTOFF, REST)
    return Up.reshape(DIM_PAD, DIM_PAD)


def _obs_weight_row():
    """Weights for expval(X on wire 0): w[n0*128 + r] = sqrt(n0+1) for r<125, else 0."""
    w = np.zeros((1, W_COLS), dtype=np.float32)
    for n0 in range(CUTOFF - 1):
        w[0, n0 * BLOCK:n0 * BLOCK + REST] = np.sqrt(n0 + 1.0)
    return w


_W_ROW = _obs_weight_row()

# Bounded cache of fused padded layer unitaries, keyed on the raw weight bytes
# (avoids re-running the host-side 625x625 complex synthesis and the H2D copy
# when weights repeat; bounded so a training loop can't grow it without limit).
_UNITARY_CACHE = {}
_UNITARY_CACHE_MAX = 8


def _prepare_unitaries(var):
    var64 = np.asarray(var, dtype=np.float64)
    key = var64.tobytes()
    if key not in _UNITARY_CACHE:
        # Fused operand: u[l] = [Re(U_l^T) | Im(U_l^T)] concatenated along lanes
        # -> one (640, 1280) MXU pass per layer instead of two 640x640 passes.
        u = np.zeros((NUM_LAYERS, DIM_PAD, 2 * DIM_PAD), np.float32)
        for l in range(NUM_LAYERS):
            Ut = _pad_unitary(_layer_unitary(var64[l])).T   # kernel does psi_row @ U^T
            u[l, :, 0:DIM_PAD] = Ut.real
            u[l, :, DIM_PAD:2 * DIM_PAD] = Ut.imag
        if len(_UNITARY_CACHE) >= _UNITARY_CACHE_MAX:
            _UNITARY_CACHE.pop(next(iter(_UNITARY_CACHE)))
        _UNITARY_CACHE[key] = jnp.asarray(u)
    return _UNITARY_CACHE[key]


# ---------------- Pallas kernel: unrolled layer evolution + expectation ----------------
def _make_kernel(batch_pad):
    def _qnn_kernel(psi_ref, u_ref, w_ref, out_ref):
        # psi_ref: (2*batch_pad, 640)  rows [0:bp) = Re plane, rows [bp:2bp) = Im plane
        # u_ref:   (NUM_LAYERS, 640, 1280) VMEM-resident fused [Re(U^T) | Im(U^T)]
        s = psi_ref[...]
        for l in range(NUM_LAYERS):                      # static unroll (NUM_LAYERS=2)
            p = jnp.dot(s, u_ref[l], preferred_element_type=jnp.float32)  # (2bp, 1280)
            pr = p[:, 0:DIM_PAD]                         # s @ Re(U^T)
            pi = p[:, DIM_PAD:2 * DIM_PAD]               # s @ Im(U^T)
            new_re = pr[0:batch_pad, :] - pi[batch_pad:2 * batch_pad, :]
            new_im = pi[0:batch_pad, :] + pr[batch_pad:2 * batch_pad, :]
            s = jnp.concatenate([new_re, new_im], axis=0)

        # <psi| (a + a^dag) x I |psi> in the block-padded layout:
        #   2 * sum_J w[J] * (re[J]*re[J+128] + im[J]*im[J+128]),  J < 512
        lo = s[:, 0:W_COLS]                              # blocks n0 = 0..3
        up = s[:, BLOCK:CUTOFF * BLOCK]                  # blocks n0 = 1..4
        t = lo * up * w_ref[...]                         # (2bp, 512), lane-weighted
        part = jnp.sum(t, axis=-1, keepdims=True)        # (2bp, 1)
        # TODO(synk): switch to a lane-dense output layout if batch_pad grows large
        # (column store is a single masked vst here; negligible at this size).
        out_ref[...] = 2.0 * (part[0:batch_pad, :] + part[batch_pad:2 * batch_pad, :])

    return _qnn_kernel


@functools.lru_cache(maxsize=None)
def _build_qnn_call(b_tiles, batch_pad):
    call = pl.pallas_call(
        _make_kernel(batch_pad),
        out_shape=jax.ShapeDtypeStruct((b_tiles * batch_pad, 1), jnp.float32),
        grid=(b_tiles,),
        in_specs=[
            # stacked (re|im) state tile per batch block
            pl.BlockSpec((2 * batch_pad, DIM_PAD), lambda b: (b, 0)),
            # all NUM_LAYERS fused unitary planes, constant index_map -> fetched once,
            # VMEM-resident across every batch-tile grid step (~6.6 MB for 2 layers).
            pl.BlockSpec((NUM_LAYERS, DIM_PAD, 2 * DIM_PAD), lambda b: (0, 0, 0)),
            # observable weight row (tiny, VMEM-resident)
            pl.BlockSpec((1, W_COLS), lambda b: (0, 0)),
        ],
        out_specs=pl.BlockSpec((batch_pad, 1), lambda b: (b, 0)),
        compiler_params=pltpu.CompilerParams(
            dimension_semantics=("parallel",),          # batch tiles shardable across TCs
            vmem_limit_bytes=32 * 1024 * 1024,
        ),
    )
    return jax.jit(call)


# ---------------- forward (mirrors QuantumNeuralNetwork.forward) ----------------
def qnn_forward(inputs, var):
    """inputs: (batch, num_wires) floats; var: (num_layers, 9*num_wires-4) weights.
    Returns (batch,) float32 expvals of X on wire 0 ('single' output)."""
    x = np.asarray(inputs, dtype=np.float64)
    if NORMALIZE_INPUTS:
        x = np.remainder(x, 2.0 * np.pi)
    batch = x.shape[0]

    # grow the matmul M (rows per tile) before adding batch grid steps
    batch_pad = min(max(8, ((batch + 7) // 8) * 8), MAX_BATCH_PAD)
    b_tiles = (batch + batch_pad - 1) // batch_pad

    # weights -> cached fused padded layer unitaries (device-resident across calls)
    u = _prepare_unitaries(var)

    # data -> encoded, block-padded, re/im-stacked state tiles
    psi = np.zeros((b_tiles, 2 * batch_pad, DIM_PAD), np.float32)
    for b in range(batch):
        p = _pad_state(_encode_sample(x[b]))
        t, r = divmod(b, batch_pad)
        psi[t, r, :] = p.real
        psi[t, batch_pad + r, :] = p.imag
    psi = psi.reshape(b_tiles * 2 * batch_pad, DIM_PAD)

    out = _build_qnn_call(b_tiles, batch_pad)(jnp.asarray(psi), u, jnp.asarray(_W_ROW))
    # dropout_rate == 0.0 -> identity (matches module default)
    return out[:batch, 0]


def _reference(inputs, var):
    """Pure NumPy (float64) reference of the same forward pass."""
    x = np.asarray(inputs, dtype=np.float64)
    if NORMALIZE_INPUTS:
        x = np.remainder(x, 2.0 * np.pi)
    unitaries = [_layer_unitary(np.asarray(var[l], np.float64)) for l in range(NUM_LAYERS)]
    obs = _embed_single(_a + _adag, 0)
    outs = []
    for b in range(x.shape[0]):
        psi = _encode_sample(x[b])
        for U in unitaries:
            psi = U @ psi
        outs.append(np.real(np.conj(psi) @ (obs @ psi)))
    return np.asarray(outs, np.float32)


if __name__ == "__main__":
    key = jax.random.PRNGKey(0)
    k_x, k_w = jax.random.split(key)

    # example classical inputs: (batch=2, num_wires=4)
    inputs = jax.random.uniform(k_x, (2, NUM_WIRES), minval=-3.0, maxval=3.0,
                                dtype=jnp.float32)

    # deterministic 'normal' init of the TorchLayer weights 'var': (num_layers, 9N-4)
    raw = jax.random.normal(k_w, (NUM_LAYERS, N_PARAMS), dtype=jnp.float32)
    scale = np.full((N_PARAMS,), PASSIVE_SD, dtype=np.float32)
    scale[M_INT:M_INT + NUM_WIRES] = ACTIVE_SD          # squeezing magnitudes (active)
    scale[2 * M_INT + NUM_WIRES:] = ACTIVE_SD           # displacement + Kerr (active)
    var = np.asarray(raw) * scale

    out = qnn_forward(np.asarray(inputs), var)
    out = jax.block_until_ready(out)

    ref = _reference(np.asarray(inputs), var)
    out_np = np.asarray(out)
    assert out_np.shape == (2,)
    assert np.all(np.isfinite(out_np))
    np.testing.assert_allclose(out_np, ref, rtol=2e-3, atol=2e-3)
    print("KERNEL_OK")
</pallas_src>

<mosaic_0001>
module attributes {stable_mosaic.version = 11 : i64} {
  func.func @_qnn_kernel(%arg0: i32, %arg1: memref<16x640xf32, #tpu.memory_space<vmem>>, %arg2: memref<2x640x1280xf32, #tpu.memory_space<vmem>>, %arg3: memref<1x512xf32, #tpu.memory_space<vmem>>, %arg4: memref<8x1xf32, #tpu.memory_space<vmem>>) attributes {dimension_semantics = [#tpu.dimension_semantics<parallel>], iteration_bounds = array<i64: 1>, scalar_prefetch = 0 : i64, scratch_operands = 0 : i64, tpu.core_type = #tpu.core_type<tc>, window_params = [{transform_indices = @transform_0, window_bounds = array<i64: 16, 640>}, {pipeline_mode = #tpu.pipeline_mode<synchronous>, transform_indices = @transform_1, window_bounds = array<i64: 2, 640, 1280>}, {pipeline_mode = #tpu.pipeline_mode<synchronous>, transform_indices = @transform_2, window_bounds = array<i64: 1, 512>}, {transform_indices = @transform_3, window_bounds = array<i64: 8, 1>}]} {
    %c0 = arith.constant 0 : index
    %c0_0 = arith.constant 0 : index
    %0 = vector.load %arg1[%c0, %c0_0] : memref<16x640xf32, #tpu.memory_space<vmem>>, vector<16x640xf32>
    %c0_1 = arith.constant 0 : index
    %c0_2 = arith.constant 0 : index
    %c0_3 = arith.constant 0 : index
    %1 = vector.load %arg2[%c0_1, %c0_2, %c0_3] : memref<2x640x1280xf32, #tpu.memory_space<vmem>>, vector<1x640x1280xf32>
    %2 = vector.shape_cast %1 : vector<1x640x1280xf32> to vector<640x1280xf32>
    %cst = arith.constant dense<0.000000e+00> : vector<16x1280xf32>
    %3 = tpu.matmul %0, %2, %cst {dimension_numbers = #tpu.dot_dimension_numbers<[1], [0], [0], [1], [0, 0, 1, 1], [], []>} : vector<16x640xf32>, vector<640x1280xf32>, vector<16x1280xf32> -> vector<16x1280xf32>
    %4 = vector.extract_strided_slice %3 {offsets = [0, 0], sizes = [16, 640], strides = [1, 1]} : vector<16x1280xf32> to vector<16x640xf32>
    %5 = vector.extract_strided_slice %3 {offsets = [0, 640], sizes = [16, 640], strides = [1, 1]} : vector<16x1280xf32> to vector<16x640xf32>
    %6 = vector.extract_strided_slice %4 {offsets = [0, 0], sizes = [8, 640], strides = [1, 1]} : vector<16x640xf32> to vector<8x640xf32>
    %7 = vector.extract_strided_slice %5 {offsets = [8, 0], sizes = [8, 640], strides = [1, 1]} : vector<16x640xf32> to vector<8x640xf32>
    %8 = arith.subf %6, %7 : vector<8x640xf32>
    %9 = vector.extract_strided_slice %5 {offsets = [0, 0], sizes = [8, 640], strides = [1, 1]} : vector<16x640xf32> to vector<8x640xf32>
    %10 = vector.extract_strided_slice %4 {offsets = [8, 0], sizes = [8, 640], strides = [1, 1]} : vector<16x640xf32> to vector<8x640xf32>
    %11 = arith.addf %9, %10 : vector<8x640xf32>
    %12 = tpu.concatenate %8, %11 in 0 : vector<8x640xf32>, vector<8x640xf32> -> vector<16x640xf32>
    %c1 = arith.constant 1 : index
    %c0_4 = arith.constant 0 : index
    %c0_5 = arith.constant 0 : index
    %13 = vector.load %arg2[%c1, %c0_4, %c0_5] : memref<2x640x1280xf32, #tpu.memory_space<vmem>>, vector<1x640x1280xf32>
    %14 = vector.shape_cast %13 : vector<1x640x1280xf32> to vector<640x1280xf32>
    %cst_6 = arith.constant dense<0.000000e+00> : vector<16x1280xf32>
    %15 = tpu.matmul %12, %14, %cst_6 {dimension_numbers = #tpu.dot_dimension_numbers<[1], [0], [0], [1], [0, 0, 1, 1], [], []>} : vector<16x640xf32>, vector<640x1280xf32>, vector<16x1280xf32> -> vector<16x1280xf32>
    %16 = vector.extract_strided_slice %15 {offsets = [0, 0], sizes = [16, 640], strides = [1, 1]} : vector<16x1280xf32> to vector<16x640xf32>
    %17 = vector.extract_strided_slice %15 {offsets = [0, 640], sizes = [16, 640], strides = [1, 1]} : vector<16x1280xf32> to vector<16x640xf32>
    %18 = vector.extract_strided_slice %16 {offsets = [0, 0], sizes = [8, 640], strides = [1, 1]} : vector<16x640xf32> to vector<8x640xf32>
    %19 = vector.extract_strided_slice %17 {offsets = [8, 0], sizes = [8, 640], strides = [1, 1]} : vector<16x640xf32> to vector<8x640xf32>
    %20 = arith.subf %18, %19 : vector<8x640xf32>
    %21 = vector.extract_strided_slice %17 {offsets = [0, 0], sizes = [8, 640], strides = [1, 1]} : vector<16x640xf32> to vector<8x640xf32>
    %22 = vector.extract_strided_slice %16 {offsets = [8, 0], sizes = [8, 640], strides = [1, 1]} : vector<16x640xf32> to vector<8x640xf32>
    %23 = arith.addf %21, %22 : vector<8x640xf32>
    %24 = tpu.concatenate %20, %23 in 0 : vector<8x640xf32>, vector<8x640xf32> -> vector<16x640xf32>
    %25 = vector.extract_strided_slice %24 {offsets = [0, 0], sizes = [16, 512], strides = [1, 1]} : vector<16x640xf32> to vector<16x512xf32>
    %26 = vector.extract_strided_slice %24 {offsets = [0, 128], sizes = [16, 512], strides = [1, 1]} : vector<16x640xf32> to vector<16x512xf32>
    %27 = arith.mulf %25, %26 : vector<16x512xf32>
    %c0_7 = arith.constant 0 : index
    %c0_8 = arith.constant 0 : index
    %28 = vector.load %arg3[%c0_7, %c0_8] : memref<1x512xf32, #tpu.memory_space<vmem>>, vector<1x512xf32>
    %29 = vector.broadcast %28 : vector<1x512xf32> to vector<16x512xf32>
    %30 = arith.mulf %27, %29 : vector<16x512xf32>
    %cst_9 = arith.constant dense<0.000000e+00> : vector<16xf32>
    %31 = vector.multi_reduction <add>, %30, %cst_9 [1] : vector<16x512xf32> to vector<16xf32>
    %32 = vector.shape_cast %31 : vector<16xf32> to vector<16x1xf32>
    %33 = vector.extract_strided_slice %32 {offsets = [0, 0], sizes = [8, 1], strides = [1, 1]} : vector<16x1xf32> to vector<8x1xf32>
    %34 = vector.extract_strided_slice %32 {offsets = [8, 0], sizes = [8, 1], strides = [1, 1]} : vector<16x1xf32> to vector<8x1xf32>
    %35 = arith.addf %33, %34 : vector<8x1xf32>
    %cst_10 = arith.constant 2.000000e+00 : f32
    %36 = vector.broadcast %cst_10 : f32 to vector<8x1xf32>
    %37 = arith.mulf %36, %35 : vector<8x1xf32>
    %c0_11 = arith.constant 0 : index
    %c0_12 = arith.constant 0 : index
    %38 = vector.load %arg4[%c0_11, %c0_12] : memref<8x1xf32, #tpu.memory_space<vmem>>, vector<8x1xf32>
    tpu.vector_store %arg4[%c0_11, %c0_12], %37 {strides = array<i32>} : memref<8x1xf32, #tpu.memory_space<vmem>>, vector<8x1xf32>,
    return
  }
  func.func @transform_0(%arg0: i32) -> (i32, i32) {
    %c0_i32 = arith.constant 0 : i32
    %c0_i32_0 = arith.constant 0 : i32
    return %arg0, %c0_i32 : i32, i32
  }
  func.func @transform_1(%arg0: i32) -> (i32, i32, i32) {
    %c0_i32 = arith.constant 0 : i32
    %c0_i32_0 = arith.constant 0 : i32
    %c0_i32_1 = arith.constant 0 : i32
    %c0_i32_2 = arith.constant 0 : i32
    return %c0_i32, %c0_i32_0, %c0_i32_1 : i32, i32, i32
  }
  func.func @transform_2(%arg0: i32) -> (i32, i32) {
    %c0_i32 = arith.constant 0 : i32
    %c0_i32_0 = arith.constant 0 : i32
    %c0_i32_1 = arith.constant 0 : i32
    return %c0_i32, %c0_i32_0 : i32, i32
  }
  func.func @transform_3(%arg0: i32) -> (i32, i32) {
    %c0_i32 = arith.constant 0 : i32
    %c0_i32_0 = arith.constant 0 : i32
    return %arg0, %c0_i32 : i32, i32
  }
}

</mosaic_0001>

<llo_original>
// kernel: tpu_custom_call.1
$region0: #{tpu_custom_call.1}
  #allocation0 [shape = 'u32[]', space=smem, size = 0x4, offset = 0x4, fixed_abs, tag = 'smem constant byte address 0x4 - core index']
  #allocation1 [shape = 'u32[72,128]{1,0:T(1,128)}', space=vmem, size = 0x9000, scoped, tag = 'internal scratch']
  %s0 = inlined_call_operand.hbm [shape: f32[16,640], index: 0, kind: input, shape index: {}]
  %s1 = inlined_call_operand.hbm [shape: f32[2,640,1280], index: 1, kind: input, shape index: {}]
  %s2 = inlined_call_operand.hbm [shape: f32[1,512], index: 2, kind: input, shape index: {}]
  %s3 = inlined_call_operand.vmem [shape: f32[8,1], index: 3, kind: output, shape index: {}]
  %s4 = sld [smem:[#allocation0]]
  $region34: #{tpu_custom_call.1} parent=0
    _
  %s6 = ssub.s32 1, %s4
  %s7 = scalar_select 0, %s6, %s4
  $region1: #{tpu_custom_call.1} parent=0
    #allocation2 [shape = 'u8[40960]{0}', space=vmem, size = 0xa000, scoped, tag = 'input window, operand 0, single buffered']
    #allocation3 [shape = 's32[1]{0}', space=sflag, size = 0x4, scoped, tag = 'scoped memory for tpu_custom_call.1']
    #allocation4 [shape = 'u8[6553600]{0}', space=vmem, size = 0x640000, scoped, tag = 'input window, operand 1, single buffered']
    #allocation5 [shape = 's32[1]{0}', space=sflag, size = 0x4, scoped, tag = 'scoped memory for tpu_custom_call.1']
    #allocation6 [shape = 'u8[2048]{0}', space=vmem, size = 0x800, scoped, tag = 'input window, operand 2, single buffered']
    %8 = vsyncpa [#allocation3], 0
    %9 = vsyncpa [#allocation5], 0
    // Predicated region
    $region2: #{tpu_custom_call.1} parent=1 // pred_check
      _
    $region3: #{tpu_custom_call.1} parent=1 // pred_check_branch
      %11 = sbr.rel (0) target = $region5
    $region4: #{tpu_custom_call.1} parent=1 // pred_region
      %13 = vsyncadd [#allocation3], 0
      %s14 = sshll.u32 %s0, 4
      %s15 = int_to_ptr.hbm [resolvable:$true] %s14
      %s16 = sshll.u32 [#allocation2], 4
      %s17 = int_to_ptr.vmem [resolvable:$true] %s16
      %22 = dma.hbm_to_vmem [thread:$0]  %s15, 1280, %s17, [#allocation3], 640, 640, 40
    $region5: #{tpu_custom_call.1} parent=1 // pred_fallthru
      _
    // Predicated region
    $region6: #{tpu_custom_call.1} parent=1 // pred_check
      _
    $region7: #{tpu_custom_call.1} parent=1 // pred_check_branch
      %24 = sbr.rel (0) target = $region9
    $region8: #{tpu_custom_call.1} parent=1 // pred_region
      %26 = vsyncadd [#allocation5], 0
      %s27 = sshll.u32 %s1, 4
      %s28 = int_to_ptr.hbm [resolvable:$true] %s27
      %s29 = sshll.u32 [#allocation4], 4
      %s30 = int_to_ptr.vmem [resolvable:$true] %s29
      %35 = dma.hbm_to_vmem [thread:$0]  %s28, 204800, %s30, [#allocation5], 1280, 1280, 80
    $region9: #{tpu_custom_call.1} parent=1 // pred_fallthru
      _
    // Predicated region
    $region10: #{tpu_custom_call.1} parent=1 // pred_check
      _
    $region11: #{tpu_custom_call.1} parent=1 // pred_check_branch
      %37 = sbr.rel (0) target = $region13
    $region12: #{tpu_custom_call.1} parent=1 // pred_region
      %39 = vsyncadd [#allocation5], 0
      %s41 = sshll.u32 %s2, 4
      %s42 = int_to_ptr.hbm [resolvable:$true] %s41
      %s43 = sshll.u32 [#allocation6], 4
      %s44 = int_to_ptr.vmem [resolvable:$true] %s43
      %46 = dma.hbm_to_vmem [thread:$0]  %s42, 64, %s44, [#allocation5]
    $region13: #{tpu_custom_call.1} parent=1 // pred_fallthru
      _
    // Predicated region
    $region14: #{tpu_custom_call.1} parent=1 // pred_check
      _
    $region15: #{tpu_custom_call.1} parent=1 // pred_check_branch
      %48 = sbr.rel (0) target = $region17
    $region16: #{tpu_custom_call.1} parent=1 // pred_region
      %50 = dma.done [#allocation3], 1280
    $region17: #{tpu_custom_call.1} parent=1 // pred_fallthru
      _
    // Predicated region
    $region18: #{tpu_custom_call.1} parent=1 // pred_check
      _
    $region19: #{tpu_custom_call.1} parent=1 // pred_check_branch
      %52 = sbr.rel (0) target = $region21
    $region20: #{tpu_custom_call.1} parent=1 // pred_region
      %54 = dma.done [#allocation5], 204800
    $region21: #{tpu_custom_call.1} parent=1 // pred_fallthru
      _
    // Predicated region
    $region22: #{tpu_custom_call.1} parent=1 // pred_check
      _
    $region23: #{tpu_custom_call.1} parent=1 // pred_check_branch
      %56 = sbr.rel (0) target = $region25
    $region24: #{tpu_custom_call.1} parent=1 // pred_region
      %58 = dma.done [#allocation5], 64
    $region25: #{tpu_custom_call.1} parent=1 // pred_fallthru
      _
    %v59 = vld [vmem:[#allocation2] sm:$0xff]
    %v60 = vld [vmem:[#allocation2 + $0x8] sm:$0xff]
    %v61 = vld [vmem:[#allocation2 + $0x10] sm:$0xff]
    %v62 = vld [vmem:[#allocation2 + $0x18] sm:$0xff]
    %v63 = vld [vmem:[#allocation2 + $0x20] sm:$0xff]
    %v64 = vld [vmem:[#allocation2 + $0x28] sm:$0xff]
    %v65 = vld [vmem:[#allocation2 + $0x30] sm:$0xff]
    %v66 = vld [vmem:[#allocation2 + $0x38] sm:$0xff]
    %v67 = vld [vmem:[#allocation2 + $0x40] sm:$0xff]
    %v68 = vld [vmem:[#allocation2 + $0x48] sm:$0xff]
    %v69 = vld [vmem:[#allocation4] sm:$0xff]
    %v70 = vld [vmem:[#allocation4 + $0x8] sm:$0xff]
    %v71 = vld [vmem:[#allocation4 + $0x10] sm:$0xff]
    %v72 = vld [vmem:[#allocation4 + $0x18] sm:$0xff]
    %v73 = vld [vmem:[#allocation4 + $0x20] sm:$0xff]
    %v74 = vld [vmem:[#allocation4 + $0x28] sm:$0xff]
    %v75 = vld [vmem:[#allocation4 + $0x30] sm:$0xff]
    %v76 = vld [vmem:[#allocation4 + $0x38] sm:$0xff]
    %v77 = vld [vmem:[#allocation4 + $0x40] sm:$0xff]
    %v78 = vld [vmem:[#allocation4 + $0x48] sm:$0xff]
    %v79 = vld [vmem:[#allocation4 + $0x50] sm:$0xff]
    %v80 = vld [vmem:[#allocation4 + $0x58] sm:$0xff]
    %v81 = vld [vmem:[#allocation4 + $0x60] sm:$0xff]
    %v82 = vld [vmem:[#allocation4 + $0x68] sm:$0xff]
    %v83 = vld [vmem:[#allocation4 + $0x70] sm:$0xff]
    %v84 = vld [vmem:[#allocation4 + $0x78] sm:$0xff]
    %v85 = vld [vmem:[#allocation4 + $0x80] sm:$0xff]
    %v86 = vld [vmem:[#allocation4 + $0x88] sm:$0xff]
    %v87 = vld [vmem:[#allocation4 + $0x90] sm:$0xff]
    %v88 = vld [vmem:[#allocation4 + $0x98] sm:$0xff]
    %v89 = vld [vmem:[#allocation4 + $0xa0] sm:$0xff]
    %v90 = vld [vmem:[#allocation4 + $0xa8] sm:$0xff]
    %v91 = vld [vmem:[#allocation4 + $0xb0] sm:$0xff]
    %v92 = vld [vmem:[#allocation4 + $0xb8] sm:$0xff]
    %v93 = vld [vmem:[#allocation4 + $0xc0] sm:$0xff]
    %v94 = vld [vmem:[#allocation4 + $0xc8] sm:$0xff]
    %v95 = vld [vmem:[#allocation4 + $0xd0] sm:$0xff]
    %v96 = vld [vmem:[#allocation4 + $0xd8] sm:$0xff]
    %v97 = vld [vmem:[#allocation4 + $0xe0] sm:$0xff]
    %v98 = vld [vmem:[#allocation4 + $0xe8] sm:$0xff]
    %v99 = vld [vmem:[#allocation4 + $0xf0] sm:$0xff]
    %v100 = vld [vmem:[#allocation4 + $0xf8] sm:$0xff]
    %v101 = vld [vmem:[#allocation4 + $0x100] sm:$0xff]
    %v102 = vld [vmem:[#allocation4 + $0x108] sm:$0xff]
    %v103 = vld [vmem:[#allocation4 + $0x110] sm:$0xff]
    %v104 = vld [vmem:[#allocation4 + $0x118] sm:$0xff]
    %v105 = vld [vmem:[#allocation4 + $0x120] sm:$0xff]
    %v106 = vld [vmem:[#allocation4 + $0x128] sm:$0xff]
    %v107 = vld [vmem:[#allocation4 + $0x130] sm:$0xff]
    %v108 = vld [vmem:[#allocation4 + $0x138] sm:$0xff]
    %v109 = vld [vmem:[#allocation4 + $0x140] sm:$0xff]
    %v110 = vld [vmem:[#allocation4 + $0x148] sm:$0xff]
    %v111 = vld [vmem:[#allocation4 + $0x150] sm:$0xff]
    %v112 = vld [vmem:[#allocation4 + $0x158] sm:$0xff]
    %v113 = vld [vmem:[#allocation4 + $0x160] sm:$0xff]
    %v114 = vld [vmem:[#allocation4 + $0x168] sm:$0xff]
    %v115 = vld [vmem:[#allocation4 + $0x170] sm:$0xff]
    %v116 = vld [vmem:[#allocation4 + $0x178] sm:$0xff]
    %v117 = vld [vmem:[#allocation4 + $0x180] sm:$0xff]
    %v118 = vld [vmem:[#allocation4 + $0x188] sm:$0xff]
    %v119 = vld [vmem:[#allocation4 + $0x190] sm:$0xff]
    %v120 = vld [vmem:[#allocation4 + $0x198] sm:$0xff]
    %v121 = vld [vmem:[#allocation4 + $0x1a0] sm:$0xff]
    %v122 = vld [vmem:[#allocation4 + $0x1a8] sm:$0xff]
    %v123 = vld [vmem:[#allocation4 + $0x1b0] sm:$0xff]
    %v124 = vld [vmem:[#allocation4 + $0x1b8] sm:$0xff]
    %v125 = vld [vmem:[#allocation4 + $0x1c0] sm:$0xff]
    %v126 = vld [vmem:[#allocation4 + $0x1c8] sm:$0xff]
    %v127 = vld [vmem:[#allocation4 + $0x1d0] sm:$0xff]
    %v128 = vld [vmem:[#allocation4 + $0x1d8] sm:$0xff]
    %v129 = vld [vmem:[#allocation4 + $0x1e0] sm:$0xff]
    %v130 = vld [vmem:[#allocation4 + $0x1e8] sm:$0xff]
    %v131 = vld [vmem:[#allocation4 + $0x1f0] sm:$0xff]
    %v132 = vld [vmem:[#allocation4 + $0x1f8] sm:$0xff]
    %v133 = vld [vmem:[#allocation4 + $0x200] sm:$0xff]
    %v134 = vld [vmem:[#allocation4 + $0x208] sm:$0xff]
    %v135 = vld [vmem:[#allocation4 + $0x210] sm:$0xff]
    %v136 = vld [vmem:[#allocation4 + $0x218] sm:$0xff]
    %v137 = vld [vmem:[#allocation4 + $0x220] sm:$0xff]
    %v138 = vld [vmem:[#allocation4 + $0x228] sm:$0xff]
    %v139 = vld [vmem:[#allocation4 + $0x230] sm:$0xff]
    %v140 = vld [vmem:[#allocation4 + $0x238] sm:$0xff]
    %v141 = vld [vmem:[#allocation4 + $0x240] sm:$0xff]
    %v142 = vld [vmem:[#allocation4 + $0x248] sm:$0xff]
    %v143 = vld [vmem:[#allocation4 + $0x250] sm:$0xff]
    %v144 = vld [vmem:[#allocation4 + $0x258] sm:$0xff]
    %v145 = vld [vmem:[#allocation4 + $0x260] sm:$0xff]
    %v146 = vld [vmem:[#allocation4 + $0x268] sm:$0xff]
    %v147 = vld [vmem:[#allocation4 + $0x270] sm:$0xff]
    %v148 = vld [vmem:[#allocation4 + $0x278] sm:$0xff]
    %v149 = vld [vmem:[#allocation4 + $0x280] sm:$0xff]
    %v150 = vld [vmem:[#allocation4 + $0x288] sm:$0xff]
    %v151 = vld [vmem:[#allocation4 + $0x290] sm:$0xff]
    %v152 = vld [vmem:[#allocation4 + $0x298] sm:$0xff]
    %v153 = vld [vmem:[#allocation4 + $0x2a0] sm:$0xff]
    %v154 = vld [vmem:[#allocation4 + $0x2a8] sm:$0xff]
    %v155 = vld [vmem:[#allocation4 + $0x2b0] sm:$0xff]
    %v156 = vld [vmem:[#allocation4 + $0x2b8] sm:$0xff]
    %v157 = vld [vmem:[#allocation4 + $0x2c0] sm:$0xff]
    %v158 = vld [vmem:[#allocation4 + $0x2c8] sm:$0xff]
    %v159 = vld [vmem:[#allocation4 + $0x2d0] sm:$0xff]
    %v160 = vld [vmem:[#allocation4 + $0x2d8] sm:$0xff]
    %v161 = vld [vmem:[#allocation4 + $0x2e0] sm:$0xff]
    %v162 = vld [vmem:[#allocation4 + $0x2e8] sm:$0xff]
    %v163 = vld [vmem:[#allocation4 + $0x2f0] sm:$0xff]
    %v164 = vld [vmem:[#allocation4 + $0x2f8] sm:$0xff]
    %v165 = vld [vmem:[#allocation4 + $0x300] sm:$0xff]
    %v166 = vld [vmem:[#allocation4 + $0x308] sm:$0xff]
    %v167 = vld [vmem:[#allocation4 + $0x310] sm:$0xff]
    %v168 = vld [vmem:[#allocation4 + $0x318] sm:$0xff]
    %v169 = vld [vmem:[#allocation4 + $0x320] sm:$0xff]
    %v170 = vld [vmem:[#allocation4 + $0x328] sm:$0xff]
    %v171 = vld [vmem:[#allocation4 + $0x330] sm:$0xff]
    %v172 = vld [vmem:[#allocation4 + $0x338] sm:$0xff]
    %v173 = vld [vmem:[#allocation4 + $0x340] sm:$0xff]
    %v174 = vld [vmem:[#allocation4 + $0x348] sm:$0xff]
    %v175 = vld [vmem:[#allocation4 + $0x350] sm:$0xff]
    %v176 = vld [vmem:[#allocation4 + $0x358] sm:$0xff]
    %v177 = vld [vmem:[#allocation4 + $0x360] sm:$0xff]
    %v178 = vld [vmem:[#allocation4 + $0x368] sm:$0xff]
    %v179 = vld [vmem:[#allocation4 + $0x370] sm:$0xff]
    %v180 = vld [vmem:[#allocation4 + $0x378] sm:$0xff]
    %v181 = vld [vmem:[#allocation4 + $0x380] sm:$0xff]
    %v182 = vld [vmem:[#allocation4 + $0x388] sm:$0xff]
    %v183 = vld [vmem:[#allocation4 + $0x390] sm:$0xff]
    %v184 = vld [vmem:[#allocation4 + $0x398] sm:$0xff]
    %v185 = vld [vmem:[#allocation4 + $0x3a0] sm:$0xff]
    %v186 = vld [vmem:[#allocation4 + $0x3a8] sm:$0xff]
    %v187 = vld [vmem:[#allocation4 + $0x3b0] sm:$0xff]
    %v188 = vld [vmem:[#allocation4 + $0x3b8] sm:$0xff]
    %v189 = vld [vmem:[#allocation4 + $0x3c0] sm:$0xff]
    %v190 = vld [vmem:[#allocation4 + $0x3c8] sm:$0xff]
    %v191 = vld [vmem:[#allocation4 + $0x3d0] sm:$0xff]
    %v192 = vld [vmem:[#allocation4 + $0x3d8] sm:$0xff]
    %v193 = vld [vmem:[#allocation4 + $0x3e0] sm:$0xff]
    %v194 = vld [vmem:[#allocation4 + $0x3e8] sm:$0xff]
    %v195 = vld [vmem:[#allocation4 + $0x3f0] sm:$0xff]
    %v196 = vld [vmem:[#allocation4 + $0x3f8] sm:$0xff]
    %v197 = vld [vmem:[#allocation4 + $0x400] sm:$0xff]
    %v198 = vld [vmem:[#allocation4 + $0x408] sm:$0xff]
    %v199 = vld [vmem:[#allocation4 + $0x410] sm:$0xff]
    %v200 = vld [vmem:[#allocation4 + $0x418] sm:$0xff]
    %v201 = vld [vmem:[#allocation4 + $0x420] sm:$0xff]
    %v202 = vld [vmem:[#allocation4 + $0x428] sm:$0xff]
    %v203 = vld [vmem:[#allocation4 + $0x430] sm:$0xff]
    %v204 = vld [vmem:[#allocation4 + $0x438] sm:$0xff]
    %v205 = vld [vmem:[#allocation4 + $0x440] sm:$0xff]
    %v206 = vld [vmem:[#allocation4 + $0x448] sm:$0xff]
    %v207 = vld [vmem:[#allocation4 + $0x450] sm:$0xff]
    %v208 = vld [vmem:[#allocation4 + $0x458] sm:$0xff]
    %v209 = vld [vmem:[#allocation4 + $0x460] sm:$0xff]
    %v210 = vld [vmem:[#allocation4 + $0x468] sm:$0xff]
    %v211 = vld [vmem:[#allocation4 + $0x470] sm:$0xff]
    %v212 = vld [vmem:[#allocation4 + $0x478] sm:$0xff]
    %v213 = vld [vmem:[#allocation4 + $0x480] sm:$0xff]
    %v214 = vld [vmem:[#allocation4 + $0x488] sm:$0xff]
    %v215 = vld [vmem:[#allocation4 + $0x490] sm:$0xff]
    %v216 = vld [vmem:[#allocation4 + $0x498] sm:$0xff]
    %v217 = vld [vmem:[#allocation4 + $0x4a0] sm:$0xff]
    %v218 = vld [vmem:[#allocation4 + $0x4a8] sm:$0xff]
    %v219 = vld [vmem:[#allocation4 + $0x4b0] sm:$0xff]
    %v220 = vld [vmem:[#allocation4 + $0x4b8] sm:$0xff]
    %v221 = vld [vmem:[#allocation4 + $0x4c0] sm:$0xff]
    %v222 = vld [vmem:[#allocation4 + $0x4c8] sm:$0xff]
    %v223 = vld [vmem:[#allocation4 + $0x4d0] sm:$0xff]
    %v224 = vld [vmem:[#allocation4 + $0x4d8] sm:$0xff]
    %v225 = vld [vmem:[#allocation4 + $0x4e0] sm:$0xff]
    %v226 = vld [vmem:[#allocation4 + $0x4e8] sm:$0xff]
    %v227 = vld [vmem:[#allocation4 + $0x4f0] sm:$0xff]
    %v228 = vld [vmem:[#allocation4 + $0x4f8] sm:$0xff]
    %v229 = vld [vmem:[#allocation4 + $0x500] sm:$0xff]
    %v230 = vld [vmem:[#allocation4 + $0x508] sm:$0xff]
    %v231 = vld [vmem:[#allocation4 + $0x510] sm:$0xff]
    %v232 = vld [vmem:[#allocation4 + $0x518] sm:$0xff]
    %v233 = vld [vmem:[#allocation4 + $0x520] sm:$0xff]
    %v234 = vld [vmem:[#allocation4 + $0x528] sm:$0xff]
    %v235 = vld [vmem:[#allocation4 + $0x530] sm:$0xff]
    %v236 = vld [vmem:[#allocation4 + $0x538] sm:$0xff]
    %v237 = vld [vmem:[#allocation4 + $0x540] sm:$0xff]
    %v238 = vld [vmem:[#allocation4 + $0x548] sm:$0xff]
    %v239 = vld [vmem:[#allocation4 + $0x550] sm:$0xff]
    %v240 = vld [vmem:[#allocation4 + $0x558] sm:$0xff]
    %v241 = vld [vmem:[#allocation4 + $0x560] sm:$0xff]
    %v242 = vld [vmem:[#allocation4 + $0x568] sm:$0xff]
    %v243 = vld [vmem:[#allocation4 + $0x570] sm:$0xff]
    %v244 = vld [vmem:[#allocation4 + $0x578] sm:$0xff]
    %v245 = vld [vmem:[#allocation4 + $0x580] sm:$0xff]
    %v246 = vld [vmem:[#allocation4 + $0x588] sm:$0xff]
    %v247 = vld [vmem:[#allocation4 + $0x590] sm:$0xff]
    %v248 = vld [vmem:[#allocation4 + $0x598] sm:$0xff]
    %v249 = vld [vmem:[#allocation4 + $0x5a0] sm:$0xff]
    %v250 = vld [vmem:[#allocation4 + $0x5a8] sm:$0xff]
    %v251 = vld [vmem:[#allocation4 + $0x5b0] sm:$0xff]
    %v252 = vld [vmem:[#allocation4 + $0x5b8] sm:$0xff]
    %v253 = vld [vmem:[#allocation4 + $0x5c0] sm:$0xff]
    %v254 = vld [vmem:[#allocation4 + $0x5c8] sm:$0xff]
    %v255 = vld [vmem:[#allocation4 + $0x5d0] sm:$0xff]
    %v256 = vld [vmem:[#allocation4 + $0x5d8] sm:$0xff]
    %v257 = vld [vmem:[#allocation4 + $0x5e0] sm:$0xff]
    %v258 = vld [vmem:[#allocation4 + $0x5e8] sm:$0xff]
    %v259 = vld [vmem:[#allocation4 + $0x5f0] sm:$0xff]
    %v260 = vld [vmem:[#allocation4 + $0x5f8] sm:$0xff]
    %v261 = vld [vmem:[#allocation4 + $0x600] sm:$0xff]
    %v262 = vld [vmem:[#allocation4 + $0x608] sm:$0xff]
    %v263 = vld [vmem:[#allocation4 + $0x610] sm:$0xff]
    %v264 = vld [vmem:[#allocation4 + $0x618] sm:$0xff]
    %v265 = vld [vmem:[#allocation4 + $0x620] sm:$0xff]
    %v266 = vld [vmem:[#allocation4 + $0x628] sm:$0xff]
    %v267 = vld [vmem:[#allocation4 + $0x630] sm:$0xff]
    %v268 = vld [vmem:[#allocation4 + $0x638] sm:$0xff]
    %v269 = vld [vmem:[#allocation4 + $0x640] sm:$0xff]
    %v270 = vld [vmem:[#allocation4 + $0x648] sm:$0xff]
    %v271 = vld [vmem:[#allocation4 + $0x650] sm:$0xff]
    %v272 = vld [vmem:[#allocation4 + $0x658] sm:$0xff]
    %v273 = vld [vmem:[#allocation4 + $0x660] sm:$0xff]
    %v274 = vld [vmem:[#allocation4 + $0x668] sm:$0xff]
    %v275 = vld [vmem:[#allocation4 + $0x670] sm:$0xff]
    %v276 = vld [vmem:[#allocation4 + $0x678] sm:$0xff]
    %v277 = vld [vmem:[#allocation4 + $0x680] sm:$0xff]
    %v278 = vld [vmem:[#allocation4 + $0x688] sm:$0xff]
    %v279 = vld [vmem:[#allocation4 + $0x690] sm:$0xff]
    %v280 = vld [vmem:[#allocation4 + $0x698] sm:$0xff]
    %v281 = vld [vmem:[#allocation4 + $0x6a0] sm:$0xff]
    %v282 = vld [vmem:[#allocation4 + $0x6a8] sm:$0xff]
    %v283 = vld [vmem:[#allocation4 + $0x6b0] sm:$0xff]
    %v284 = vld [vmem:[#allocation4 + $0x6b8] sm:$0xff]
    %v285 = vld [vmem:[#allocation4 + $0x6c0] sm:$0xff]
    %v286 = vld [vmem:[#allocation4 + $0x6c8] sm:$0xff]
    %v287 = vld [vmem:[#allocation4 + $0x6d0] sm:$0xff]
    %v288 = vld [vmem:[#allocation4 + $0x6d8] sm:$0xff]
    %v289 = vld [vmem:[#allocation4 + $0x6e0] sm:$0xff]
    %v290 = vld [vmem:[#allocation4 + $0x6e8] sm:$0xff]
    %v291 = vld [vmem:[#allocation4 + $0x6f0] sm:$0xff]
    %v292 = vld [vmem:[#allocation4 + $0x6f8] sm:$0xff]
    %v293 = vld [vmem:[#allocation4 + $0x700] sm:$0xff]
    %v294 = vld [vmem:[#allocation4 + $0x708] sm:$0xff]
    %v295 = vld [vmem:[#allocation4 + $0x710] sm:$0xff]
    %v296 = vld [vmem:[#allocation4 + $0x718] sm:$0xff]
    %v297 = vld [vmem:[#allocation4 + $0x720] sm:$0xff]
    %v298 = vld [vmem:[#allocation4 + $0x728] sm:$0xff]
    %v299 = vld [vmem:[#allocation4 + $0x730] sm:$0xff]
    %v300 = vld [vmem:[#allocation4 + $0x738] sm:$0xff]
    %v301 = vld [vmem:[#allocation4 + $0x740] sm:$0xff]
    %v302 = vld [vmem:[#allocation4 + $0x748] sm:$0xff]
    %v303 = vld [vmem:[#allocation4 + $0x750] sm:$0xff]
    %v304 = vld [vmem:[#allocation4 + $0x758] sm:$0xff]
    %v305 = vld [vmem:[#allocation4 + $0x760] sm:$0xff]
    %v306 = vld [vmem:[#allocation4 + $0x768] sm:$0xff]
    %v307 = vld [vmem:[#allocation4 + $0x770] sm:$0xff]
    %v308 = vld [vmem:[#allocation4 + $0x778] sm:$0xff]
    %v309 = vld [vmem:[#allocation4 + $0x780] sm:$0xff]
    %v310 = vld [vmem:[#allocation4 + $0x788] sm:$0xff]
    %v311 = vld [vmem:[#allocation4 + $0x790] sm:$0xff]
    %v312 = vld [vmem:[#allocation4 + $0x798] sm:$0xff]
    %v313 = vld [vmem:[#allocation4 + $0x7a0] sm:$0xff]
    %v314 = vld [vmem:[#allocation4 + $0x7a8] sm:$0xff]
    %v315 = vld [vmem:[#allocation4 + $0x7b0] sm:$0xff]
    %v316 = vld [vmem:[#allocation4 + $0x7b8] sm:$0xff]
    %v317 = vld [vmem:[#allocation4 + $0x7c0] sm:$0xff]
    %v318 = vld [vmem:[#allocation4 + $0x7c8] sm:$0xff]
    %v319 = vld [vmem:[#allocation4 + $0x7d0] sm:$0xff]
    %v320 = vld [vmem:[#allocation4 + $0x7d8] sm:$0xff]
    %v321 = vld [vmem:[#allocation4 + $0x7e0] sm:$0xff]
    %v322 = vld [vmem:[#allocation4 + $0x7e8] sm:$0xff]
    %v323 = vld [vmem:[#allocation4 + $0x7f0] sm:$0xff]
    %v324 = vld [vmem:[#allocation4 + $0x7f8] sm:$0xff]
    %v325 = vld [vmem:[#allocation4 + $0x800] sm:$0xff]
    %v326 = vld [vmem:[#allocation4 + $0x808] sm:$0xff]
    %v327 = vld [vmem:[#allocation4 + $0x810] sm:$0xff]
    %v328 = vld [vmem:[#allocation4 + $0x818] sm:$0xff]
    %v329 = vld [vmem:[#allocation4 + $0x820] sm:$0xff]
    %v330 = vld [vmem:[#allocation4 + $0x828] sm:$0xff]
    %v331 = vld [vmem:[#allocation4 + $0x830] sm:$0xff]
    %v332 = vld [vmem:[#allocation4 + $0x838] sm:$0xff]
    %v333 = vld [vmem:[#allocation4 + $0x840] sm:$0xff]
    %v334 = vld [vmem:[#allocation4 + $0x848] sm:$0xff]
    %v335 = vld [vmem:[#allocation4 + $0x850] sm:$0xff]
    %v336 = vld [vmem:[#allocation4 + $0x858] sm:$0xff]
    %v337 = vld [vmem:[#allocation4 + $0x860] sm:$0xff]
    %v338 = vld [vmem:[#allocation4 + $0x868] sm:$0xff]
    %v339 = vld [vmem:[#allocation4 + $0x870] sm:$0xff]
    %v340 = vld [vmem:[#allocation4 + $0x878] sm:$0xff]
    %v341 = vld [vmem:[#allocation4 + $0x880] sm:$0xff]
    %v342 = vld [vmem:[#allocation4 + $0x888] sm:$0xff]
    %v343 = vld [vmem:[#allocation4 + $0x890] sm:$0xff]
    %v344 = vld [vmem:[#allocation4 + $0x898] sm:$0xff]
    %v345 = vld [vmem:[#allocation4 + $0x8a0] sm:$0xff]
    %v346 = vld [vmem:[#allocation4 + $0x8a8] sm:$0xff]
    %v347 = vld [vmem:[#allocation4 + $0x8b0] sm:$0xff]
    %v348 = vld [vmem:[#allocation4 + $0x8b8] sm:$0xff]
    %v349 = vld [vmem:[#allocation4 + $0x8c0] sm:$0xff]
    %v350 = vld [vmem:[#allocation4 + $0x8c8] sm:$0xff]
    %v351 = vld [vmem:[#allocation4 + $0x8d0] sm:$0xff]
    %v352 = vld [vmem:[#allocation4 + $0x8d8] sm:$0xff]
    %v353 = vld [vmem:[#allocation4 + $0x8e0] sm:$0xff]
    %v354 = vld [vmem:[#allocation4 + $0x8e8] sm:$0xff]
    %v355 = vld [vmem:[#allocation4 + $0x8f0] sm:$0xff]
    %v356 = vld [vmem:[#allocation4 + $0x8f8] sm:$0xff]
    %v357 = vld [vmem:[#allocation4 + $0x900] sm:$0xff]
    %v358 = vld [vmem:[#allocation4 + $0x908] sm:$0xff]
    %v359 = vld [vmem:[#allocation4 + $0x910] sm:$0xff]
    %v360 = vld [vmem:[#allocation4 + $0x918] sm:$0xff]
    %v361 = vld [vmem:[#allocation4 + $0x920] sm:$0xff]
    %v362 = vld [vmem:[#allocation4 + $0x928] sm:$0xff]
    %v363 = vld [vmem:[#allocation4 + $0x930] sm:$0xff]
    %v364 = vld [vmem:[#allocation4 + $0x938] sm:$0xff]
    %v365 = vld [vmem:[#allocation4 + $0x940] sm:$0xff]
    %v366 = vld [vmem:[#allocation4 + $0x948] sm:$0xff]
    %v367 = vld [vmem:[#allocation4 + $0x950] sm:$0xff]
    %v368 = vld [vmem:[#allocation4 + $0x958] sm:$0xff]
    %v369 = vld [vmem:[#allocation4 + $0x960] sm:$0xff]
    %v370 = vld [vmem:[#allocation4 + $0x968] sm:$0xff]
    %v371 = vld [vmem:[#allocation4 + $0x970] sm:$0xff]
    %v372 = vld [vmem:[#allocation4 + $0x978] sm:$0xff]
    %v373 = vld [vmem:[#allocation4 + $0x980] sm:$0xff]
    %v374 = vld [vmem:[#allocation4 + $0x988] sm:$0xff]
    %v375 = vld [vmem:[#allocation4 + $0x990] sm:$0xff]
    %v376 = vld [vmem:[#allocation4 + $0x998] sm:$0xff]
    %v377 = vld [vmem:[#allocation4 + $0x9a0] sm:$0xff]
    %v378 = vld [vmem:[#allocation4 + $0x9a8] sm:$0xff]
    %v379 = vld [vmem:[#allocation4 + $0x9b0] sm:$0xff]
    %v380 = vld [vmem:[#allocation4 + $0x9b8] sm:$0xff]
    %v381 = vld [vmem:[#allocation4 + $0x9c0] sm:$0xff]
    %v382 = vld [vmem:[#allocation4 + $0x9c8] sm:$0xff]
    %v383 = vld [vmem:[#allocation4 + $0x9d0] sm:$0xff]
    %v384 = vld [vmem:[#allocation4 + $0x9d8] sm:$0xff]
    %v385 = vld [vmem:[#allocation4 + $0x9e0] sm:$0xff]
    %v386 = vld [vmem:[#allocation4 + $0x9e8] sm:$0xff]
    %v387 = vld [vmem:[#allocation4 + $0x9f0] sm:$0xff]
    %v388 = vld [vmem:[#allocation4 + $0x9f8] sm:$0xff]
    %v389 = vld [vmem:[#allocation4 + $0xa00] sm:$0xff]
    %v390 = vld [vmem:[#allocation4 + $0xa08] sm:$0xff]
    %v391 = vld [vmem:[#allocation4 + $0xa10] sm:$0xff]
    %v392 = vld [vmem:[#allocation4 + $0xa18] sm:$0xff]
    %v393 = vld [vmem:[#allocation4 + $0xa20] sm:$0xff]
    %v394 = vld [vmem:[#allocation4 + $0xa28] sm:$0xff]
    %v395 = vld [vmem:[#allocation4 + $0xa30] sm:$0xff]
    %v396 = vld [vmem:[#allocation4 + $0xa38] sm:$0xff]
    %v397 = vld [vmem:[#allocation4 + $0xa40] sm:$0xff]
    %v398 = vld [vmem:[#allocation4 + $0xa48] sm:$0xff]
    %v399 = vld [vmem:[#allocation4 + $0xa50] sm:$0xff]
    %v400 = vld [vmem:[#allocation4 + $0xa58] sm:$0xff]
    %v401 = vld [vmem:[#allocation4 + $0xa60] sm:$0xff]
    %v402 = vld [vmem:[#allocation4 + $0xa68] sm:$0xff]
    %v403 = vld [vmem:[#allocation4 + $0xa70] sm:$0xff]
    %v404 = vld [vmem:[#allocation4 + $0xa78] sm:$0xff]
    %v405 = vld [vmem:[#allocation4 + $0xa80] sm:$0xff]
    %v406 = vld [vmem:[#allocation4 + $0xa88] sm:$0xff]
    %v407 = vld [vmem:[#allocation4 + $0xa90] sm:$0xff]
    %v408 = vld [vmem:[#allocation4 + $0xa98] sm:$0xff]
    %v409 = vld [vmem:[#allocation4 + $0xaa0] sm:$0xff]
    %v410 = vld [vmem:[#allocation4 + $0xaa8] sm:$0xff]
    %v411 = vld [vmem:[#allocation4 + $0xab0] sm:$0xff]
    %v412 = vld [vmem:[#allocation4 + $0xab8] sm:$0xff]
    %v413 = vld [vmem:[#allocation4 + $0xac0] sm:$0xff]
    %v414 = vld [vmem:[#allocation4 + $0xac8] sm:$0xff]
    %v415 = vld [vmem:[#allocation4 + $0xad0] sm:$0xff]
    %v416 = vld [vmem:[#allocation4 + $0xad8] sm:$0xff]
    %v417 = vld [vmem:[#allocation4 + $0xae0] sm:$0xff]
    %v418 = vld [vmem:[#allocation4 + $0xae8] sm:$0xff]
    %v419 = vld [vmem:[#allocation4 + $0xaf0] sm:$0xff]
    %v420 = vld [vmem:[#allocation4 + $0xaf8] sm:$0xff]
    %v421 = vld [vmem:[#allocation4 + $0xb00] sm:$0xff]
    %v422 = vld [vmem:[#allocation4 + $0xb08] sm:$0xff]
    %v423 = vld [vmem:[#allocation4 + $0xb10] sm:$0xff]
    %v424 = vld [vmem:[#allocation4 + $0xb18] sm:$0xff]
    %v425 = vld [vmem:[#allocation4 + $0xb20] sm:$0xff]
    %v426 = vld [vmem:[#allocation4 + $0xb28] sm:$0xff]
    %v427 = vld [vmem:[#allocation4 + $0xb30] sm:$0xff]
    %v428 = vld [vmem:[#allocation4 + $0xb38] sm:$0xff]
    %v429 = vld [vmem:[#allocation4 + $0xb40] sm:$0xff]
    %v430 = vld [vmem:[#allocation4 + $0xb48] sm:$0xff]
    %v431 = vld [vmem:[#allocation4 + $0xb50] sm:$0xff]
    %v432 = vld [vmem:[#allocation4 + $0xb58] sm:$0xff]
    %v433 = vld [vmem:[#allocation4 + $0xb60] sm:$0xff]
    %v434 = vld [vmem:[#allocation4 + $0xb68] sm:$0xff]
    %v435 = vld [vmem:[#allocation4 + $0xb70] sm:$0xff]
    %v436 = vld [vmem:[#allocation4 + $0xb78] sm:$0xff]
    %v437 = vld [vmem:[#allocation4 + $0xb80] sm:$0xff]
    %v438 = vld [vmem:[#allocation4 + $0xb88] sm:$0xff]
    %v439 = vld [vmem:[#allocation4 + $0xb90] sm:$0xff]
    %v440 = vld [vmem:[#allocation4 + $0xb98] sm:$0xff]
    %v441 = vld [vmem:[#allocation4 + $0xba0] sm:$0xff]
    %v442 = vld [vmem:[#allocation4 + $0xba8] sm:$0xff]
    %v443 = vld [vmem:[#allocation4 + $0xbb0] sm:$0xff]
    %v444 = vld [vmem:[#allocation4 + $0xbb8] sm:$0xff]
    %v445 = vld [vmem:[#allocation4 + $0xbc0] sm:$0xff]
    %v446 = vld [vmem:[#allocation4 + $0xbc8] sm:$0xff]
    %v447 = vld [vmem:[#allocation4 + $0xbd0] sm:$0xff]
    %v448 = vld [vmem:[#allocation4 + $0xbd8] sm:$0xff]
    %v449 = vld [vmem:[#allocation4 + $0xbe0] sm:$0xff]
    %v450 = vld [vmem:[#allocation4 + $0xbe8] sm:$0xff]
    %v451 = vld [vmem:[#allocation4 + $0xbf0] sm:$0xff]
    %v452 = vld [vmem:[#allocation4 + $0xbf8] sm:$0xff]
    %v453 = vld [vmem:[#allocation4 + $0xc00] sm:$0xff]
    %v454 = vld [vmem:[#allocation4 + $0xc08] sm:$0xff]
    %v455 = vld [vmem:[#allocation4 + $0xc10] sm:$0xff]
    %v456 = vld [vmem:[#allocation4 + $0xc18] sm:$0xff]
    %v457 = vld [vmem:[#allocation4 + $0xc20] sm:$0xff]
    %v458 = vld [vmem:[#allocation4 + $0xc28] sm:$0xff]
    %v459 = vld [vmem:[#allocation4 + $0xc30] sm:$0xff]
    %v460 = vld [vmem:[#allocation4 + $0xc38] sm:$0xff]
    %v461 = vld [vmem:[#allocation4 + $0xc40] sm:$0xff]
    %v462 = vld [vmem:[#allocation4 + $0xc48] sm:$0xff]
    %v463 = vld [vmem:[#allocation4 + $0xc50] sm:$0xff]
    %v464 = vld [vmem:[#allocation4 + $0xc58] sm:$0xff]
    %v465 = vld [vmem:[#allocation4 + $0xc60] sm:$0xff]
    %v466 = vld [vmem:[#allocation4 + $0xc68] sm:$0xff]
    %v467 = vld [vmem:[#allocation4 + $0xc70] sm:$0xff]
    %v468 = vld [vmem:[#allocation4 + $0xc78] sm:$0xff]
    %v469 = vld [vmem:[#allocation4 + $0xc80] sm:$0xff]
    %v470 = vld [vmem:[#allocation4 + $0xc88] sm:$0xff]
    %v471 = vld [vmem:[#allocation4 + $0xc90] sm:$0xff]
    %v472 = vld [vmem:[#allocation4 + $0xc98] sm:$0xff]
    %v473 = vld [vmem:[#allocation4 + $0xca0] sm:$0xff]
    %v474 = vld [vmem:[#allocation4 + $0xca8] sm:$0xff]
    %v475 = vld [vmem:[#allocation4 + $0xcb0] sm:$0xff]
    %v476 = vld [vmem:[#allocation4 + $0xcb8] sm:$0xff]
    %v477 = vld [vmem:[#allocation4 + $0xcc0] sm:$0xff]
    %v478 = vld [vmem:[#allocation4 + $0xcc8] sm:$0xff]
    %v479 = vld [vmem:[#allocation4 + $0xcd0] sm:$0xff]
    %v480 = vld [vmem:[#allocation4 + $0xcd8] sm:$0xff]
    %v481 = vld [vmem:[#allocation4 + $0xce0] sm:$0xff]
    %v482 = vld [vmem:[#allocation4 + $0xce8] sm:$0xff]
    %v483 = vld [vmem:[#allocation4 + $0xcf0] sm:$0xff]
    %v484 = vld [vmem:[#allocation4 + $0xcf8] sm:$0xff]
    %v485 = vld [vmem:[#allocation4 + $0xd00] sm:$0xff]
    %v486 = vld [vmem:[#allocation4 + $0xd08] sm:$0xff]
    %v487 = vld [vmem:[#allocation4 + $0xd10] sm:$0xff]
    %v488 = vld [vmem:[#allocation4 + $0xd18] sm:$0xff]
    %v489 = vld [vmem:[#allocation4 + $0xd20] sm:$0xff]
    %v490 = vld [vmem:[#allocation4 + $0xd28] sm:$0xff]
    %v491 = vld [vmem:[#allocation4 + $0xd30] sm:$0xff]
    %v492 = vld [vmem:[#allocation4 + $0xd38] sm:$0xff]
    %v493 = vld [vmem:[#allocation4 + $0xd40] sm:$0xff]
    %v494 = vld [vmem:[#allocation4 + $0xd48] sm:$0xff]
    %v495 = vld [vmem:[#allocation4 + $0xd50] sm:$0xff]
    %v496 = vld [vmem:[#allocation4 + $0xd58] sm:$0xff]
    %v497 = vld [vmem:[#allocation4 + $0xd60] sm:$0xff]
    %v498 = vld [vmem:[#allocation4 + $0xd68] sm:$0xff]
    %v499 = vld [vmem:[#allocation4 + $0xd70] sm:$0xff]
    %v500 = vld [vmem:[#allocation4 + $0xd78] sm:$0xff]
    %v501 = vld [vmem:[#allocation4 + $0xd80] sm:$0xff]
    %v502 = vld [vmem:[#allocation4 + $0xd88] sm:$0xff]
    %v503 = vld [vmem:[#allocation4 + $0xd90] sm:$0xff]
    %v504 = vld [vmem:[#allocation4 + $0xd98] sm:$0xff]
    %v505 = vld [vmem:[#allocation4 + $0xda0] sm:$0xff]
    %v506 = vld [vmem:[#allocation4 + $0xda8] sm:$0xff]
    %v507 = vld [vmem:[#allocation4 + $0xdb0] sm:$0xff]
    %v508 = vld [vmem:[#allocation4 + $0xdb8] sm:$0xff]
    %v509 = vld [vmem:[#allocation4 + $0xdc0] sm:$0xff]
    %v510 = vld [vmem:[#allocation4 + $0xdc8] sm:$0xff]
    %v511 = vld [vmem:[#allocation4 + $0xdd0] sm:$0xff]
    %v512 = vld [vmem:[#allocation4 + $0xdd8] sm:$0xff]
    %v513 = vld [vmem:[#allocation4 + $0xde0] sm:$0xff]
    %v514 = vld [vmem:[#allocation4 + $0xde8] sm:$0xff]
    %v515 = vld [vmem:[#allocation4 + $0xdf0] sm:$0xff]
    %v516 = vld [vmem:[#allocation4 + $0xdf8] sm:$0xff]
    %v517 = vld [vmem:[#allocation4 + $0xe00] sm:$0xff]
    %v518 = vld [vmem:[#allocation4 + $0xe08] sm:$0xff]
    %v519 = vld [vmem:[#allocation4 + $0xe10] sm:$0xff]
    %v520 = vld [vmem:[#allocation4 + $0xe18] sm:$0xff]
    %v521 = vld [vmem:[#allocation4 + $0xe20] sm:$0xff]
    %v522 = vld [vmem:[#allocation4 + $0xe28] sm:$0xff]
    %v523 = vld [vmem:[#allocation4 + $0xe30] sm:$0xff]
    %v524 = vld [vmem:[#allocation4 + $0xe38] sm:$0xff]
    %v525 = vld [vmem:[#allocation4 + $0xe40] sm:$0xff]
    %v526 = vld [vmem:[#allocation4 + $0xe48] sm:$0xff]
    %v527 = vld [vmem:[#allocation4 + $0xe50] sm:$0xff]
    %v528 = vld [vmem:[#allocation4 + $0xe58] sm:$0xff]
    %v529 = vld [vmem:[#allocation4 + $0xe60] sm:$0xff]
    %v530 = vld [vmem:[#allocation4 + $0xe68] sm:$0xff]
    %v531 = vld [vmem:[#allocation4 + $0xe70] sm:$0xff]
    %v532 = vld [vmem:[#allocation4 + $0xe78] sm:$0xff]
    %v533 = vld [vmem:[#allocation4 + $0xe80] sm:$0xff]
    %v534 = vld [vmem:[#allocation4 + $0xe88] sm:$0xff]
    %v535 = vld [vmem:[#allocation4 + $0xe90] sm:$0xff]
    %v536 = vld [vmem:[#allocation4 + $0xe98] sm:$0xff]
    %v537 = vld [vmem:[#allocation4 + $0xea0] sm:$0xff]
    %v538 = vld [vmem:[#allocation4 + $0xea8] sm:$0xff]
    %v539 = vld [vmem:[#allocation4 + $0xeb0] sm:$0xff]
    %v540 = vld [vmem:[#allocation4 + $0xeb8] sm:$0xff]
    %v541 = vld [vmem:[#allocation4 + $0xec0] sm:$0xff]
    %v542 = vld [vmem:[#allocation4 + $0xec8] sm:$0xff]
    %v543 = vld [vmem:[#allocation4 + $0xed0] sm:$0xff]
    %v544 = vld [vmem:[#allocation4 + $0xed8] sm:$0xff]
    %v545 = vld [vmem:[#allocation4 + $0xee0] sm:$0xff]
    %v546 = vld [vmem:[#allocation4 + $0xee8] sm:$0xff]
    %v547 = vld [vmem:[#allocation4 + $0xef0] sm:$0xff]
    %v548 = vld [vmem:[#allocation4 + $0xef8] sm:$0xff]
    %v549 = vld [vmem:[#allocation4 + $0xf00] sm:$0xff]
    %v550 = vld [vmem:[#allocation4 + $0xf08] sm:$0xff]
    %v551 = vld [vmem:[#allocation4 + $0xf10] sm:$0xff]
    %v552 = vld [vmem:[#allocation4 + $0xf18] sm:$0xff]
    %v553 = vld [vmem:[#allocation4 + $0xf20] sm:$0xff]
    %v554 = vld [vmem:[#allocation4 + $0xf28] sm:$0xff]
    %v555 = vld [vmem:[#allocation4 + $0xf30] sm:$0xff]
    %v556 = vld [vmem:[#allocation4 + $0xf38] sm:$0xff]
    %v557 = vld [vmem:[#allocation4 + $0xf40] sm:$0xff]
    %v558 = vld [vmem:[#allocation4 + $0xf48] sm:$0xff]
    %v559 = vld [vmem:[#allocation4 + $0xf50] sm:$0xff]
    %v560 = vld [vmem:[#allocation4 + $0xf58] sm:$0xff]
    %v561 = vld [vmem:[#allocation4 + $0xf60] sm:$0xff]
    %v562 = vld [vmem:[#allocation4 + $0xf68] sm:$0xff]
    %v563 = vld [vmem:[#allocation4 + $0xf70] sm:$0xff]
    %v564 = vld [vmem:[#allocation4 + $0xf78] sm:$0xff]
    %v565 = vld [vmem:[#allocation4 + $0xf80] sm:$0xff]
    %v566 = vld [vmem:[#allocation4 + $0xf88] sm:$0xff]
    %v567 = vld [vmem:[#allocation4 + $0xf90] sm:$0xff]
    %v568 = vld [vmem:[#allocation4 + $0xf98] sm:$0xff]
    %v569 = vld [vmem:[#allocation4 + $0xfa0] sm:$0xff]
    %v570 = vld [vmem:[#allocation4 + $0xfa8] sm:$0xff]
    %v571 = vld [vmem:[#allocation4 + $0xfb0] sm:$0xff]
    %v572 = vld [vmem:[#allocation4 + $0xfb8] sm:$0xff]
    %v573 = vld [vmem:[#allocation4 + $0xfc0] sm:$0xff]
    %v574 = vld [vmem:[#allocation4 + $0xfc8] sm:$0xff]
    %v575 = vld [vmem:[#allocation4 + $0xfd0] sm:$0xff]
    %v576 = vld [vmem:[#allocation4 + $0xfd8] sm:$0xff]
    %v577 = vld [vmem:[#allocation4 + $0xfe0] sm:$0xff]
    %v578 = vld [vmem:[#allocation4 + $0xfe8] sm:$0xff]
    %v579 = vld [vmem:[#allocation4 + $0xff0] sm:$0xff]
    %v580 = vld [vmem:[#allocation4 + $0xff8] sm:$0xff]
    %v581 = vld [vmem:[#allocation4 + $0x1000] sm:$0xff]
    %v582 = vld [vmem:[#allocation4 + $0x1008] sm:$0xff]
    %v583 = vld [vmem:[#allocation4 + $0x1010] sm:$0xff]
    %v584 = vld [vmem:[#allocation4 + $0x1018] sm:$0xff]
    %v585 = vld [vmem:[#allocation4 + $0x1020] sm:$0xff]
    %v586 = vld [vmem:[#allocation4 + $0x1028] sm:$0xff]
    %v587 = vld [vmem:[#allocation4 + $0x1030] sm:$0xff]
    %v588 = vld [vmem:[#allocation4 + $0x1038] sm:$0xff]
    %v589 = vld [vmem:[#allocation4 + $0x1040] sm:$0xff]
    %v590 = vld [vmem:[#allocation4 + $0x1048] sm:$0xff]
    %v591 = vld [vmem:[#allocation4 + $0x1050] sm:$0xff]
    %v592 = vld [vmem:[#allocation4 + $0x1058] sm:$0xff]
    %v593 = vld [vmem:[#allocation4 + $0x1060] sm:$0xff]
    %v594 = vld [vmem:[#allocation4 + $0x1068] sm:$0xff]
    %v595 = vld [vmem:[#allocation4 + $0x1070] sm:$0xff]
    %v596 = vld [vmem:[#allocation4 + $0x1078] sm:$0xff]
    %v597 = vld [vmem:[#allocation4 + $0x1080] sm:$0xff]
    %v598 = vld [vmem:[#allocation4 + $0x1088] sm:$0xff]
    %v599 = vld [vmem:[#allocation4 + $0x1090] sm:$0xff]
    %v600 = vld [vmem:[#allocation4 + $0x1098] sm:$0xff]
    %v601 = vld [vmem:[#allocation4 + $0x10a0] sm:$0xff]
    %v602 = vld [vmem:[#allocation4 + $0x10a8] sm:$0xff]
    %v603 = vld [vmem:[#allocation4 + $0x10b0] sm:$0xff]
    %v604 = vld [vmem:[#allocation4 + $0x10b8] sm:$0xff]
    %v605 = vld [vmem:[#allocation4 + $0x10c0] sm:$0xff]
    %v606 = vld [vmem:[#allocation4 + $0x10c8] sm:$0xff]
    %v607 = vld [vmem:[#allocation4 + $0x10d0] sm:$0xff]
    %v608 = vld [vmem:[#allocation4 + $0x10d8] sm:$0xff]
    %v609 = vld [vmem:[#allocation4 + $0x10e0] sm:$0xff]
    %v610 = vld [vmem:[#allocation4 + $0x10e8] sm:$0xff]
    %v611 = vld [vmem:[#allocation4 + $0x10f0] sm:$0xff]
    %v612 = vld [vmem:[#allocation4 + $0x10f8] sm:$0xff]
    %v613 = vld [vmem:[#allocation4 + $0x1100] sm:$0xff]
    %v614 = vld [vmem:[#allocation4 + $0x1108] sm:$0xff]
    %v615 = vld [vmem:[#allocation4 + $0x1110] sm:$0xff]
    %v616 = vld [vmem:[#allocation4 + $0x1118] sm:$0xff]
    %v617 = vld [vmem:[#allocation4 + $0x1120] sm:$0xff]
    %v618 = vld [vmem:[#allocation4 + $0x1128] sm:$0xff]
    %v619 = vld [vmem:[#allocation4 + $0x1130] sm:$0xff]
    %v620 = vld [vmem:[#allocation4 + $0x1138] sm:$0xff]
    %v621 = vld [vmem:[#allocation4 + $0x1140] sm:$0xff]
    %v622 = vld [vmem:[#allocation4 + $0x1148] sm:$0xff]
    %v623 = vld [vmem:[#allocation4 + $0x1150] sm:$0xff]
    %v624 = vld [vmem:[#allocation4 + $0x1158] sm:$0xff]
    %v625 = vld [vmem:[#allocation4 + $0x1160] sm:$0xff]
    %v626 = vld [vmem:[#allocation4 + $0x1168] sm:$0xff]
    %v627 = vld [vmem:[#allocation4 + $0x1170] sm:$0xff]
    %v628 = vld [vmem:[#allocation4 + $0x1178] sm:$0xff]
    %v629 = vld [vmem:[#allocation4 + $0x1180] sm:$0xff]
    %v630 = vld [vmem:[#allocation4 + $0x1188] sm:$0xff]
    %v631 = vld [vmem:[#allocation4 + $0x1190] sm:$0xff]
    %v632 = vld [vmem:[#allocation4 + $0x1198] sm:$0xff]
    %v633 = vld [vmem:[#allocation4 + $0x11a0] sm:$0xff]
    %v634 = vld [vmem:[#allocation4 + $0x11a8] sm:$0xff]
    %v635 = vld [vmem:[#allocation4 + $0x11b0] sm:$0xff]
    %v636 = vld [vmem:[#allocation4 + $0x11b8] sm:$0xff]
    %v637 = vld [vmem:[#allocation4 + $0x11c0] sm:$0xff]
    %v638 = vld [vmem:[#allocation4 + $0x11c8] sm:$0xff]
    %v639 = vld [vmem:[#allocation4 + $0x11d0] sm:$0xff]
    %v640 = vld [vmem:[#allocation4 + $0x11d8] sm:$0xff]
    %v641 = vld [vmem:[#allocation4 + $0x11e0] sm:$0xff]
    %v642 = vld [vmem:[#allocation4 + $0x11e8] sm:$0xff]
    %v643 = vld [vmem:[#allocation4 + $0x11f0] sm:$0xff]
    %v644 = vld [vmem:[#allocation4 + $0x11f8] sm:$0xff]
    %v645 = vld [vmem:[#allocation4 + $0x1200] sm:$0xff]
    %v646 = vld [vmem:[#allocation4 + $0x1208] sm:$0xff]
    %v647 = vld [vmem:[#allocation4 + $0x1210] sm:$0xff]
    %v648 = vld [vmem:[#allocation4 + $0x1218] sm:$0xff]
    %v649 = vld [vmem:[#allocation4 + $0x1220] sm:$0xff]
    %v650 = vld [vmem:[#allocation4 + $0x1228] sm:$0xff]
    %v651 = vld [vmem:[#allocation4 + $0x1230] sm:$0xff]
    %v652 = vld [vmem:[#allocation4 + $0x1238] sm:$0xff]
    %v653 = vld [vmem:[#allocation4 + $0x1240] sm:$0xff]
    %v654 = vld [vmem:[#allocation4 + $0x1248] sm:$0xff]
    %v655 = vld [vmem:[#allocation4 + $0x1250] sm:$0xff]
    %v656 = vld [vmem:[#allocation4 + $0x1258] sm:$0xff]
    %v657 = vld [vmem:[#allocation4 + $0x1260] sm:$0xff]
    %v658 = vld [vmem:[#allocation4 + $0x1268] sm:$0xff]
    %v659 = vld [vmem:[#allocation4 + $0x1270] sm:$0xff]
    %v660 = vld [vmem:[#allocation4 + $0x1278] sm:$0xff]
    %v661 = vld [vmem:[#allocation4 + $0x1280] sm:$0xff]
    %v662 = vld [vmem:[#allocation4 + $0x1288] sm:$0xff]
    %v663 = vld [vmem:[#allocation4 + $0x1290] sm:$0xff]
    %v664 = vld [vmem:[#allocation4 + $0x1298] sm:$0xff]
    %v665 = vld [vmem:[#allocation4 + $0x12a0] sm:$0xff]
    %v666 = vld [vmem:[#allocation4 + $0x12a8] sm:$0xff]
    %v667 = vld [vmem:[#allocation4 + $0x12b0] sm:$0xff]
    %v668 = vld [vmem:[#allocation4 + $0x12b8] sm:$0xff]
    %v669 = vld [vmem:[#allocation4 + $0x12c0] sm:$0xff]
    %v670 = vld [vmem:[#allocation4 + $0x12c8] sm:$0xff]
    %v671 = vld [vmem:[#allocation4 + $0x12d0] sm:$0xff]
    %v672 = vld [vmem:[#allocation4 + $0x12d8] sm:$0xff]
    %v673 = vld [vmem:[#allocation4 + $0x12e0] sm:$0xff]
    %v674 = vld [vmem:[#allocation4 + $0x12e8] sm:$0xff]
    %v675 = vld [vmem:[#allocation4 + $0x12f0] sm:$0xff]
    %v676 = vld [vmem:[#allocation4 + $0x12f8] sm:$0xff]
    %v677 = vld [vmem:[#allocation4 + $0x1300] sm:$0xff]
    %v678 = vld [vmem:[#allocation4 + $0x1308] sm:$0xff]
    %v679 = vld [vmem:[#allocation4 + $0x1310] sm:$0xff]
    %v680 = vld [vmem:[#allocation4 + $0x1318] sm:$0xff]
    %v681 = vld [vmem:[#allocation4 + $0x1320] sm:$0xff]
    %v682 = vld [vmem:[#allocation4 + $0x1328] sm:$0xff]
    %v683 = vld [vmem:[#allocation4 + $0x1330] sm:$0xff]
    %v684 = vld [vmem:[#allocation4 + $0x1338] sm:$0xff]
    %v685 = vld [vmem:[#allocation4 + $0x1340] sm:$0xff]
    %v686 = vld [vmem:[#allocation4 + $0x1348] sm:$0xff]
    %v687 = vld [vmem:[#allocation4 + $0x1350] sm:$0xff]
    %v688 = vld [vmem:[#allocation4 + $0x1358] sm:$0xff]
    %v689 = vld [vmem:[#allocation4 + $0x1360] sm:$0xff]
    %v690 = vld [vmem:[#allocation4 + $0x1368] sm:$0xff]
    %v691 = vld [vmem:[#allocation4 + $0x1370] sm:$0xff]
    %v692 = vld [vmem:[#allocation4 + $0x1378] sm:$0xff]
    %v693 = vld [vmem:[#allocation4 + $0x1380] sm:$0xff]
    %v694 = vld [vmem:[#allocation4 + $0x1388] sm:$0xff]
    %v695 = vld [vmem:[#allocation4 + $0x1390] sm:$0xff]
    %v696 = vld [vmem:[#allocation4 + $0x1398] sm:$0xff]
    %v697 = vld [vmem:[#allocation4 + $0x13a0] sm:$0xff]
    %v698 = vld [vmem:[#allocation4 + $0x13a8] sm:$0xff]
    %v699 = vld [vmem:[#allocation4 + $0x13b0] sm:$0xff]
    %v700 = vld [vmem:[#allocation4 + $0x13b8] sm:$0xff]
    %v701 = vld [vmem:[#allocation4 + $0x13c0] sm:$0xff]
    %v702 = vld [vmem:[#allocation4 + $0x13c8] sm:$0xff]
    %v703 = vld [vmem:[#allocation4 + $0x13d0] sm:$0xff]
    %v704 = vld [vmem:[#allocation4 + $0x13d8] sm:$0xff]
    %v705 = vld [vmem:[#allocation4 + $0x13e0] sm:$0xff]
    %v706 = vld [vmem:[#allocation4 + $0x13e8] sm:$0xff]
    %v707 = vld [vmem:[#allocation4 + $0x13f0] sm:$0xff]
    %v708 = vld [vmem:[#allocation4 + $0x13f8] sm:$0xff]
    %v709 = vld [vmem:[#allocation4 + $0x1400] sm:$0xff]
    %v710 = vld [vmem:[#allocation4 + $0x1408] sm:$0xff]
    %v711 = vld [vmem:[#allocation4 + $0x1410] sm:$0xff]
    %v712 = vld [vmem:[#allocation4 + $0x1418] sm:$0xff]
    %v713 = vld [vmem:[#allocation4 + $0x1420] sm:$0xff]
    %v714 = vld [vmem:[#allocation4 + $0x1428] sm:$0xff]
    %v715 = vld [vmem:[#allocation4 + $0x1430] sm:$0xff]
    %v716 = vld [vmem:[#allocation4 + $0x1438] sm:$0xff]
    %v717 = vld [vmem:[#allocation4 + $0x1440] sm:$0xff]
    %v718 = vld [vmem:[#allocation4 + $0x1448] sm:$0xff]
    %v719 = vld [vmem:[#allocation4 + $0x1450] sm:$0xff]
    %v720 = vld [vmem:[#allocation4 + $0x1458] sm:$0xff]
    %v721 = vld [vmem:[#allocation4 + $0x1460] sm:$0xff]
    %v722 = vld [vmem:[#allocation4 + $0x1468] sm:$0xff]
    %v723 = vld [vmem:[#allocation4 + $0x1470] sm:$0xff]
    %v724 = vld [vmem:[#allocation4 + $0x1478] sm:$0xff]
    %v725 = vld [vmem:[#allocation4 + $0x1480] sm:$0xff]
    %v726 = vld [vmem:[#allocation4 + $0x1488] sm:$0xff]
    %v727 = vld [vmem:[#allocation4 + $0x1490] sm:$0xff]
    %v728 = vld [vmem:[#allocation4 + $0x1498] sm:$0xff]
    %v729 = vld [vmem:[#allocation4 + $0x14a0] sm:$0xff]
    %v730 = vld [vmem:[#allocation4 + $0x14a8] sm:$0xff]
    %v731 = vld [vmem:[#allocation4 + $0x14b0] sm:$0xff]
    %v732 = vld [vmem:[#allocation4 + $0x14b8] sm:$0xff]
    %v733 = vld [vmem:[#allocation4 + $0x14c0] sm:$0xff]
    %v734 = vld [vmem:[#allocation4 + $0x14c8] sm:$0xff]
    %v735 = vld [vmem:[#allocation4 + $0x14d0] sm:$0xff]
    %v736 = vld [vmem:[#allocation4 + $0x14d8] sm:$0xff]
    %v737 = vld [vmem:[#allocation4 + $0x14e0] sm:$0xff]
    %v738 = vld [vmem:[#allocation4 + $0x14e8] sm:$0xff]
    %v739 = vld [vmem:[#allocation4 + $0x14f0] sm:$0xff]
    %v740 = vld [vmem:[#allocation4 + $0x14f8] sm:$0xff]
    %v741 = vld [vmem:[#allocation4 + $0x1500] sm:$0xff]
    %v742 = vld [vmem:[#allocation4 + $0x1508] sm:$0xff]
    %v743 = vld [vmem:[#allocation4 + $0x1510] sm:$0xff]
    %v744 = vld [vmem:[#allocation4 + $0x1518] sm:$0xff]
    %v745 = vld [vmem:[#allocation4 + $0x1520] sm:$0xff]
    %v746 = vld [vmem:[#allocation4 + $0x1528] sm:$0xff]
    %v747 = vld [vmem:[#allocation4 + $0x1530] sm:$0xff]
    %v748 = vld [vmem:[#allocation4 + $0x1538] sm:$0xff]
    %v749 = vld [vmem:[#allocation4 + $0x1540] sm:$0xff]
    %v750 = vld [vmem:[#allocation4 + $0x1548] sm:$0xff]
    %v751 = vld [vmem:[#allocation4 + $0x1550] sm:$0xff]
    %v752 = vld [vmem:[#allocation4 + $0x1558] sm:$0xff]
    %v753 = vld [vmem:[#allocation4 + $0x1560] sm:$0xff]
    %v754 = vld [vmem:[#allocation4 + $0x1568] sm:$0xff]
    %v755 = vld [vmem:[#allocation4 + $0x1570] sm:$0xff]
    %v756 = vld [vmem:[#allocation4 + $0x1578] sm:$0xff]
    %v757 = vld [vmem:[#allocation4 + $0x1580] sm:$0xff]
    %v758 = vld [vmem:[#allocation4 + $0x1588] sm:$0xff]
    %v759 = vld [vmem:[#allocation4 + $0x1590] sm:$0xff]
    %v760 = vld [vmem:[#allocation4 + $0x1598] sm:$0xff]
    %v761 = vld [vmem:[#allocation4 + $0x15a0] sm:$0xff]
    %v762 = vld [vmem:[#allocation4 + $0x15a8] sm:$0xff]
    %v763 = vld [vmem:[#allocation4 + $0x15b0] sm:$0xff]
    %v764 = vld [vmem:[#allocation4 + $0x15b8] sm:$0xff]
    %v765 = vld [vmem:[#allocation4 + $0x15c0] sm:$0xff]
    %v766 = vld [vmem:[#allocation4 + $0x15c8] sm:$0xff]
    %v767 = vld [vmem:[#allocation4 + $0x15d0] sm:$0xff]
    %v768 = vld [vmem:[#allocation4 + $0x15d8] sm:$0xff]
    %v769 = vld [vmem:[#allocation4 + $0x15e0] sm:$0xff]
    %v770 = vld [vmem:[#allocation4 + $0x15e8] sm:$0xff]
    %v771 = vld [vmem:[#allocation4 + $0x15f0] sm:$0xff]
    %v772 = vld [vmem:[#allocation4 + $0x15f8] sm:$0xff]
    %v773 = vld [vmem:[#allocation4 + $0x1600] sm:$0xff]
    %v774 = vld [vmem:[#allocation4 + $0x1608] sm:$0xff]
    %v775 = vld [vmem:[#allocation4 + $0x1610] sm:$0xff]
    %v776 = vld [vmem:[#allocation4 + $0x1618] sm:$0xff]
    %v777 = vld [vmem:[#allocation4 + $0x1620] sm:$0xff]
    %v778 = vld [vmem:[#allocation4 + $0x1628] sm:$0xff]
    %v779 = vld [vmem:[#allocation4 + $0x1630] sm:$0xff]
    %v780 = vld [vmem:[#allocation4 + $0x1638] sm:$0xff]
    %v781 = vld [vmem:[#allocation4 + $0x1640] sm:$0xff]
    %v782 = vld [vmem:[#allocation4 + $0x1648] sm:$0xff]
    %v783 = vld [vmem:[#allocation4 + $0x1650] sm:$0xff]
    %v784 = vld [vmem:[#allocation4 + $0x1658] sm:$0xff]
    %v785 = vld [vmem:[#allocation4 + $0x1660] sm:$0xff]
    %v786 = vld [vmem:[#allocation4 + $0x1668] sm:$0xff]
    %v787 = vld [vmem:[#allocation4 + $0x1670] sm:$0xff]
    %v788 = vld [vmem:[#allocation4 + $0x1678] sm:$0xff]
    %v789 = vld [vmem:[#allocation4 + $0x1680] sm:$0xff]
    %v790 = vld [vmem:[#allocation4 + $0x1688] sm:$0xff]
    %v791 = vld [vmem:[#allocation4 + $0x1690] sm:$0xff]
    %v792 = vld [vmem:[#allocation4 + $0x1698] sm:$0xff]
    %v793 = vld [vmem:[#allocation4 + $0x16a0] sm:$0xff]
    %v794 = vld [vmem:[#allocation4 + $0x16a8] sm:$0xff]
    %v795 = vld [vmem:[#allocation4 + $0x16b0] sm:$0xff]
    %v796 = vld [vmem:[#allocation4 + $0x16b8] sm:$0xff]
    %v797 = vld [vmem:[#allocation4 + $0x16c0] sm:$0xff]
    %v798 = vld [vmem:[#allocation4 + $0x16c8] sm:$0xff]
    %v799 = vld [vmem:[#allocation4 + $0x16d0] sm:$0xff]
    %v800 = vld [vmem:[#allocation4 + $0x16d8] sm:$0xff]
    %v801 = vld [vmem:[#allocation4 + $0x16e0] sm:$0xff]
    %v802 = vld [vmem:[#allocation4 + $0x16e8] sm:$0xff]
    %v803 = vld [vmem:[#allocation4 + $0x16f0] sm:$0xff]
    %v804 = vld [vmem:[#allocation4 + $0x16f8] sm:$0xff]
    %v805 = vld [vmem:[#allocation4 + $0x1700] sm:$0xff]
    %v806 = vld [vmem:[#allocation4 + $0x1708] sm:$0xff]
    %v807 = vld [vmem:[#allocation4 + $0x1710] sm:$0xff]
    %v808 = vld [vmem:[#allocation4 + $0x1718] sm:$0xff]
    %v809 = vld [vmem:[#allocation4 + $0x1720] sm:$0xff]
    %v810 = vld [vmem:[#allocation4 + $0x1728] sm:$0xff]
    %v811 = vld [vmem:[#allocation4 + $0x1730] sm:$0xff]
    %v812 = vld [vmem:[#allocation4 + $0x1738] sm:$0xff]
    %v813 = vld [vmem:[#allocation4 + $0x1740] sm:$0xff]
    %v814 = vld [vmem:[#allocation4 + $0x1748] sm:$0xff]
    %v815 = vld [vmem:[#allocation4 + $0x1750] sm:$0xff]
    %v816 = vld [vmem:[#allocation4 + $0x1758] sm:$0xff]
    %v817 = vld [vmem:[#allocation4 + $0x1760] sm:$0xff]
    %v818 = vld [vmem:[#allocation4 + $0x1768] sm:$0xff]
    %v819 = vld [vmem:[#allocation4 + $0x1770] sm:$0xff]
    %v820 = vld [vmem:[#allocation4 + $0x1778] sm:$0xff]
    %v821 = vld [vmem:[#allocation4 + $0x1780] sm:$0xff]
    %v822 = vld [vmem:[#allocation4 + $0x1788] sm:$0xff]
    %v823 = vld [vmem:[#allocation4 + $0x1790] sm:$0xff]
    %v824 = vld [vmem:[#allocation4 + $0x1798] sm:$0xff]
    %v825 = vld [vmem:[#allocation4 + $0x17a0] sm:$0xff]
    %v826 = vld [vmem:[#allocation4 + $0x17a8] sm:$0xff]
    %v827 = vld [vmem:[#allocation4 + $0x17b0] sm:$0xff]
    %v828 = vld [vmem:[#allocation4 + $0x17b8] sm:$0xff]
    %v829 = vld [vmem:[#allocation4 + $0x17c0] sm:$0xff]
    %v830 = vld [vmem:[#allocation4 + $0x17c8] sm:$0xff]
    %v831 = vld [vmem:[#allocation4 + $0x17d0] sm:$0xff]
    %v832 = vld [vmem:[#allocation4 + $0x17d8] sm:$0xff]
    %v833 = vld [vmem:[#allocation4 + $0x17e0] sm:$0xff]
    %v834 = vld [vmem:[#allocation4 + $0x17e8] sm:$0xff]
    %v835 = vld [vmem:[#allocation4 + $0x17f0] sm:$0xff]
    %v836 = vld [vmem:[#allocation4 + $0x17f8] sm:$0xff]
    %v837 = vld [vmem:[#allocation4 + $0x1800] sm:$0xff]
    %v838 = vld [vmem:[#allocation4 + $0x1808] sm:$0xff]
    %v839 = vld [vmem:[#allocation4 + $0x1810] sm:$0xff]
    %v840 = vld [vmem:[#allocation4 + $0x1818] sm:$0xff]
    %v841 = vld [vmem:[#allocation4 + $0x1820] sm:$0xff]
    %v842 = vld [vmem:[#allocation4 + $0x1828] sm:$0xff]
    %v843 = vld [vmem:[#allocation4 + $0x1830] sm:$0xff]
    %v844 = vld [vmem:[#allocation4 + $0x1838] sm:$0xff]
    %v845 = vld [vmem:[#allocation4 + $0x1840] sm:$0xff]
    %v846 = vld [vmem:[#allocation4 + $0x1848] sm:$0xff]
    %v847 = vld [vmem:[#allocation4 + $0x1850] sm:$0xff]
    %v848 = vld [vmem:[#allocation4 + $0x1858] sm:$0xff]
    %v849 = vld [vmem:[#allocation4 + $0x1860] sm:$0xff]
    %v850 = vld [vmem:[#allocation4 + $0x1868] sm:$0xff]
    %v851 = vld [vmem:[#allocation4 + $0x1870] sm:$0xff]
    %v852 = vld [vmem:[#allocation4 + $0x1878] sm:$0xff]
    %v853 = vld [vmem:[#allocation4 + $0x1880] sm:$0xff]
    %v854 = vld [vmem:[#allocation4 + $0x1888] sm:$0xff]
    %v855 = vld [vmem:[#allocation4 + $0x1890] sm:$0xff]
    %v856 = vld [vmem:[#allocation4 + $0x1898] sm:$0xff]
    %v857 = vld [vmem:[#allocation4 + $0x18a0] sm:$0xff]
    %v858 = vld [vmem:[#allocation4 + $0x18a8] sm:$0xff]
    %v859 = vld [vmem:[#allocation4 + $0x18b0] sm:$0xff]
    %v860 = vld [vmem:[#allocation4 + $0x18b8] sm:$0xff]
    %v861 = vld [vmem:[#allocation4 + $0x18c0] sm:$0xff]
    %v862 = vld [vmem:[#allocation4 + $0x18c8] sm:$0xff]
    %v863 = vld [vmem:[#allocation4 + $0x18d0] sm:$0xff]
    %v864 = vld [vmem:[#allocation4 + $0x18d8] sm:$0xff]
    %v865 = vld [vmem:[#allocation4 + $0x18e0] sm:$0xff]
    %v866 = vld [vmem:[#allocation4 + $0x18e8] sm:$0xff]
    %v867 = vld [vmem:[#allocation4 + $0x18f0] sm:$0xff]
    %v868 = vld [vmem:[#allocation4 + $0x18f8] sm:$0xff]
    %869 = vmatpush.msra.mxu0 %v219
    %870 = vmatpush.msra.mxu0 %v209
    %871 = vmatpush.msra.mxu0 %v199
    %872 = vmatpush.msra.mxu0 %v189
    %873 = vmatpush.msra.mxu0 %v179
    %874 = vmatpush.msra.mxu0 %v169
    %875 = vmatpush.msra.mxu0 %v159
    %876 = vmatpush.msra.mxu0 %v149
    %877 = vmatpush.msra.mxu0 %v139
    %878 = vmatpush.msra.mxu0 %v129
    %879 = vmatpush.msra.mxu0 %v119
    %880 = vmatpush.msra.mxu0 %v109
    %881 = vmatpush.msra.mxu0 %v99
    %882 = vmatpush.msra.mxu0 %v89
    %883 = vmatpush.msra.mxu0 %v79
    %884 = vmatpush.msra.mxu0 %v69
    %885 = vmatmul.f32.gmra.mxu0 %v59
    %v886 = vpop.f32.mrf.mxu0
    %v887 = vadd.f32 0.0, %v886
    %888 = vmatmul.f32.gmra.mxu0 %v64
    %v889 = vpop.f32.mrf.mxu0
    %v890 = vadd.f32 0.0, %v889
    %891 = vdwg.mxu0
    %892 = vmatpush.msra.mxu0 %v379
    %893 = vmatpush.msra.mxu0 %v369
    %894 = vmatpush.msra.mxu0 %v359
    %895 = vmatpush.msra.mxu0 %v349
    %896 = vmatpush.msra.mxu0 %v339
    %897 = vmatpush.msra.mxu0 %v329
    %898 = vmatpush.msra.mxu0 %v319
    %899 = vmatpush.msra.mxu0 %v309
    %900 = vmatpush.msra.mxu0 %v299
    %901 = vmatpush.msra.mxu0 %v289
    %902 = vmatpush.msra.mxu0 %v279
    %903 = vmatpush.msra.mxu0 %v269
    %904 = vmatpush.msra.mxu0 %v259
    %905 = vmatpush.msra.mxu0 %v249
    %906 = vmatpush.msra.mxu0 %v239
    %907 = vmatpush.msra.mxu0 %v229
    %908 = vmatmul.f32.gmra.mxu0 %v60
    %v909 = vpop.f32.mrf.mxu0
    %v910 = vadd.f32 %v887, %v909
    %911 = vmatmul.f32.gmra.mxu0 %v65
    %v912 = vpop.f32.mrf.mxu0
    %v913 = vadd.f32 %v890, %v912
    %914 = vdwg.mxu0
    %915 = vmatpush.msra.mxu0 %v539
    %916 = vmatpush.msra.mxu0 %v529
    %917 = vmatpush.msra.mxu0 %v519
    %918 = vmatpush.msra.mxu0 %v509
    %919 = vmatpush.msra.mxu0 %v499
    %920 = vmatpush.msra.mxu0 %v489
    %921 = vmatpush.msra.mxu0 %v479
    %922 = vmatpush.msra.mxu0 %v469
    %923 = vmatpush.msra.mxu0 %v459
    %924 = vmatpush.msra.mxu0 %v449
    %925 = vmatpush.msra.mxu0 %v439
    %926 = vmatpush.msra.mxu0 %v429
    %927 = vmatpush.msra.mxu0 %v419
    %928 = vmatpush.msra.mxu0 %v409
    %929 = vmatpush.msra.mxu0 %v399
    %930 = vmatpush.msra.mxu0 %v389
    %931 = vmatmul.f32.gmra.mxu0 %v61
    %v932 = vpop.f32.mrf.mxu0
    %v933 = vadd.f32 %v910, %v932
    %934 = vmatmul.f32.gmra.mxu0 %v66
    %v935 = vpop.f32.mrf.mxu0
    %v936 = vadd.f32 %v913, %v935
    %937 = vdwg.mxu0
    %938 = vmatpush.msra.mxu0 %v699
    %939 = vmatpush.msra.mxu0 %v689
    %940 = vmatpush.msra.mxu0 %v679
    %941 = vmatpush.msra.mxu0 %v669
    %942 = vmatpush.msra.mxu0 %v659
    %943 = vmatpush.msra.mxu0 %v649
    %944 = vmatpush.msra.mxu0 %v639
    %945 = vmatpush.msra.mxu0 %v629
    %946 = vmatpush.msra.mxu0 %v619
    %947 = vmatpush.msra.mxu0 %v609
    %948 = vmatpush.msra.mxu0 %v599
    %949 = vmatpush.msra.mxu0 %v589
    %950 = vmatpush.msra.mxu0 %v579
    %951 = vmatpush.msra.mxu0 %v569
    %952 = vmatpush.msra.mxu0 %v559
    %953 = vmatpush.msra.mxu0 %v549
    %954 = vmatmul.f32.gmra.mxu0 %v62
    %v955 = vpop.f32.mrf.mxu0
    %v956 = vadd.f32 %v933, %v955
    %957 = vmatmul.f32.gmra.mxu0 %v67
    %v958 = vpop.f32.mrf.mxu0
    %v959 = vadd.f32 %v936, %v958
    %960 = vdwg.mxu0
    %961 = vmatpush.msra.mxu0 %v859
    %962 = vmatpush.msra.mxu0 %v849
    %963 = vmatpush.msra.mxu0 %v839
    %964 = vmatpush.msra.mxu0 %v829
    %965 = vmatpush.msra.mxu0 %v819
    %966 = vmatpush.msra.mxu0 %v809
    %967 = vmatpush.msra.mxu0 %v799
    %968 = vmatpush.msra.mxu0 %v789
    %969 = vmatpush.msra.mxu0 %v779
    %970 = vmatpush.msra.mxu0 %v769
    %971 = vmatpush.msra.mxu0 %v759
    %972 = vmatpush.msra.mxu0 %v749
    %973 = vmatpush.msra.mxu0 %v739
    %974 = vmatpush.msra.mxu0 %v729
    %975 = vmatpush.msra.mxu0 %v719
    %976 = vmatpush.msra.mxu0 %v709
    %977 = vmatmul.f32.gmra.mxu0 %v63
    %v978 = vpop.f32.mrf.mxu0
    %v979 = vadd.f32 %v956, %v978
    %980 = vmatmul.f32.gmra.mxu0 %v68
    %v981 = vpop.f32.mrf.mxu0
    %v982 = vadd.f32 %v959, %v981
    %983 = vdwg.mxu0
    %984 = vmatpush.msra.mxu0 %v220
    %985 = vmatpush.msra.mxu0 %v210
    %986 = vmatpush.msra.mxu0 %v200
    %987 = vmatpush.msra.mxu0 %v190
    %988 = vmatpush.msra.mxu0 %v180
    %989 = vmatpush.msra.mxu0 %v170
    %990 = vmatpush.msra.mxu0 %v160
    %991 = vmatpush.msra.mxu0 %v150
    %992 = vmatpush.msra.mxu0 %v140
    %993 = vmatpush.msra.mxu0 %v130
    %994 = vmatpush.msra.mxu0 %v120
    %995 = vmatpush.msra.mxu0 %v110
    %996 = vmatpush.msra.mxu0 %v100
    %997 = vmatpush.msra.mxu0 %v90
    %998 = vmatpush.msra.mxu0 %v80
    %999 = vmatpush.msra.mxu0 %v70
    %1000 = vmatmul.f32.gmra.mxu0 %v59
    %v1001 = vpop.f32.mrf.mxu0
    %v1002 = vadd.f32 0.0, %v1001
    %1003 = vmatmul.f32.gmra.mxu0 %v64
    %v1004 = vpop.f32.mrf.mxu0
    %v1005 = vadd.f32 0.0, %v1004
    %1006 = vdwg.mxu0
    %1007 = vmatpush.msra.mxu0 %v380
    %1008 = vmatpush.msra.mxu0 %v370
    %1009 = vmatpush.msra.mxu0 %v360
    %1010 = vmatpush.msra.mxu0 %v350
    %1011 = vmatpush.msra.mxu0 %v340
    %1012 = vmatpush.msra.mxu0 %v330
    %1013 = vmatpush.msra.mxu0 %v320
    %1014 = vmatpush.msra.mxu0 %v310
    %1015 = vmatpush.msra.mxu0 %v300
    %1016 = vmatpush.msra.mxu0 %v290
    %1017 = vmatpush.msra.mxu0 %v280
    %1018 = vmatpush.msra.mxu0 %v270
    %1019 = vmatpush.msra.mxu0 %v260
    %1020 = vmatpush.msra.mxu0 %v250
    %1021 = vmatpush.msra.mxu0 %v240
    %1022 = vmatpush.msra.mxu0 %v230
    %1023 = vmatmul.f32.gmra.mxu0 %v60
    %v1024 = vpop.f32.mrf.mxu0
    %v1025 = vadd.f32 %v1002, %v1024
    %1026 = vmatmul.f32.gmra.mxu0 %v65
    %v1027 = vpop.f32.mrf.mxu0
    %v1028 = vadd.f32 %v1005, %v1027
    %1029 = vdwg.mxu0
    %1030 = vmatpush.msra.mxu0 %v540
    %1031 = vmatpush.msra.mxu0 %v530
    %1032 = vmatpush.msra.mxu0 %v520
    %1033 = vmatpush.msra.mxu0 %v510
    %1034 = vmatpush.msra.mxu0 %v500
    %1035 = vmatpush.msra.mxu0 %v490
    %1036 = vmatpush.msra.mxu0 %v480
    %1037 = vmatpush.msra.mxu0 %v470
    %1038 = vmatpush.msra.mxu0 %v460
    %1039 = vmatpush.msra.mxu0 %v450
    %1040 = vmatpush.msra.mxu0 %v440
    %1041 = vmatpush.msra.mxu0 %v430
    %1042 = vmatpush.msra.mxu0 %v420
    %1043 = vmatpush.msra.mxu0 %v410
    %1044 = vmatpush.msra.mxu0 %v400
    %1045 = vmatpush.msra.mxu0 %v390
    %1046 = vmatmul.f32.gmra.mxu0 %v61
    %v1047 = vpop.f32.mrf.mxu0
    %v1048 = vadd.f32 %v1025, %v1047
    %1049 = vmatmul.f32.gmra.mxu0 %v66
    %v1050 = vpop.f32.mrf.mxu0
    %v1051 = vadd.f32 %v1028, %v1050
    %1052 = vdwg.mxu0
    %1053 = vmatpush.msra.mxu0 %v700
    %1054 = vmatpush.msra.mxu0 %v690
    %1055 = vmatpush.msra.mxu0 %v680
    %1056 = vmatpush.msra.mxu0 %v670
    %1057 = vmatpush.msra.mxu0 %v660
    %1058 = vmatpush.msra.mxu0 %v650
    %1059 = vmatpush.msra.mxu0 %v640
    %1060 = vmatpush.msra.mxu0 %v630
    %1061 = vmatpush.msra.mxu0 %v620
    %1062 = vmatpush.msra.mxu0 %v610
    %1063 = vmatpush.msra.mxu0 %v600
    %1064 = vmatpush.msra.mxu0 %v590
    %1065 = vmatpush.msra.mxu0 %v580
    %1066 = vmatpush.msra.mxu0 %v570
    %1067 = vmatpush.msra.mxu0 %v560
    %1068 = vmatpush.msra.mxu0 %v550
    %1069 = vmatmul.f32.gmra.mxu0 %v62
    %v1070 = vpop.f32.mrf.mxu0
    %v1071 = vadd.f32 %v1048, %v1070
    %1072 = vmatmul.f32.gmra.mxu0 %v67
    %v1073 = vpop.f32.mrf.mxu0
    %v1074 = vadd.f32 %v1051, %v1073
    %1075 = vdwg.mxu0
    %1076 = vmatpush.msra.mxu0 %v860
    %1077 = vmatpush.msra.mxu0 %v850
    %1078 = vmatpush.msra.mxu0 %v840
    %1079 = vmatpush.msra.mxu0 %v830
    %1080 = vmatpush.msra.mxu0 %v820
    %1081 = vmatpush.msra.mxu0 %v810
    %1082 = vmatpush.msra.mxu0 %v800
    %1083 = vmatpush.msra.mxu0 %v790
    %1084 = vmatpush.msra.mxu0 %v780
    %1085 = vmatpush.msra.mxu0 %v770
    %1086 = vmatpush.msra.mxu0 %v760
    %1087 = vmatpush.msra.mxu0 %v750
    %1088 = vmatpush.msra.mxu0 %v740
    %1089 = vmatpush.msra.mxu0 %v730
    %1090 = vmatpush.msra.mxu0 %v720
    %1091 = vmatpush.msra.mxu0 %v710
    %1092 = vmatmul.f32.gmra.mxu0 %v63
    %v1093 = vpop.f32.mrf.mxu0
    %v1094 = vadd.f32 %v1071, %v1093
    %1095 = vmatmul.f32.gmra.mxu0 %v68
    %v1096 = vpop.f32.mrf.mxu0
    %v1097 = vadd.f32 %v1074, %v1096
    %1098 = vdwg.mxu0
    %1099 = vmatpush.msra.mxu0 %v221
    %1100 = vmatpush.msra.mxu0 %v211
    %1101 = vmatpush.msra.mxu0 %v201
    %1102 = vmatpush.msra.mxu0 %v191
    %1103 = vmatpush.msra.mxu0 %v181
    %1104 = vmatpush.msra.mxu0 %v171
    %1105 = vmatpush.msra.mxu0 %v161
    %1106 = vmatpush.msra.mxu0 %v151
    %1107 = vmatpush.msra.mxu0 %v141
    %1108 = vmatpush.msra.mxu0 %v131
    %1109 = vmatpush.msra.mxu0 %v121
    %1110 = vmatpush.msra.mxu0 %v111
    %1111 = vmatpush.msra.mxu0 %v101
    %1112 = vmatpush.msra.mxu0 %v91
    %1113 = vmatpush.msra.mxu0 %v81
    %1114 = vmatpush.msra.mxu0 %v71
    %1115 = vmatmul.f32.gmra.mxu0 %v59
    %v1116 = vpop.f32.mrf.mxu0
    %v1117 = vadd.f32 0.0, %v1116
    %1118 = vmatmul.f32.gmra.mxu0 %v64
    %v1119 = vpop.f32.mrf.mxu0
    %v1120 = vadd.f32 0.0, %v1119
    %1121 = vdwg.mxu0
    %1122 = vmatpush.msra.mxu0 %v381
    %1123 = vmatpush.msra.mxu0 %v371
    %1124 = vmatpush.msra.mxu0 %v361
    %1125 = vmatpush.msra.mxu0 %v351
    %1126 = vmatpush.msra.mxu0 %v341
    %1127 = vmatpush.msra.mxu0 %v331
    %1128 = vmatpush.msra.mxu0 %v321
    %1129 = vmatpush.msra.mxu0 %v311
    %1130 = vmatpush.msra.mxu0 %v301
    %1131 = vmatpush.msra.mxu0 %v291
    %1132 = vmatpush.msra.mxu0 %v281
    %1133 = vmatpush.msra.mxu0 %v271
    %1134 = vmatpush.msra.mxu0 %v261
    %1135 = vmatpush.msra.mxu0 %v251
    %1136 = vmatpush.msra.mxu0 %v241
    %1137 = vmatpush.msra.mxu0 %v231
    %1138 = vmatmul.f32.gmra.mxu0 %v60
    %v1139 = vpop.f32.mrf.mxu0
    %v1140 = vadd.f32 %v1117, %v1139
    %1141 = vmatmul.f32.gmra.mxu0 %v65
    %v1142 = vpop.f32.mrf.mxu0
    %v1143 = vadd.f32 %v1120, %v1142
    %1144 = vdwg.mxu0
    %1145 = vmatpush.msra.mxu0 %v541
    %1146 = vmatpush.msra.mxu0 %v531
    %1147 = vmatpush.msra.mxu0 %v521
    %1148 = vmatpush.msra.mxu0 %v511
    %1149 = vmatpush.msra.mxu0 %v501
    %1150 = vmatpush.msra.mxu0 %v491
    %1151 = vmatpush.msra.mxu0 %v481
    %1152 = vmatpush.msra.mxu0 %v471
    %1153 = vmatpush.msra.mxu0 %v461
    %1154 = vmatpush.msra.mxu0 %v451
    %1155 = vmatpush.msra.mxu0 %v441
    %1156 = vmatpush.msra.mxu0 %v431
    %1157 = vmatpush.msra.mxu0 %v421
    %1158 = vmatpush.msra.mxu0 %v411
    %1159 = vmatpush.msra.mxu0 %v401
    %1160 = vmatpush.msra.mxu0 %v391
    %1161 = vmatmul.f32.gmra.mxu0 %v61
    %v1162 = vpop.f32.mrf.mxu0
    %v1163 = vadd.f32 %v1140, %v1162
    %1164 = vmatmul.f32.gmra.mxu0 %v66
    %v1165 = vpop.f32.mrf.mxu0
    %v1166 = vadd.f32 %v1143, %v1165
    %1167 = vdwg.mxu0
    %1168 = vmatpush.msra.mxu0 %v701
    %1169 = vmatpush.msra.mxu0 %v691
    %1170 = vmatpush.msra.mxu0 %v681
    %1171 = vmatpush.msra.mxu0 %v671
    %1172 = vmatpush.msra.mxu0 %v661
    %1173 = vmatpush.msra.mxu0 %v651
    %1174 = vmatpush.msra.mxu0 %v641
    %1175 = vmatpush.msra.mxu0 %v631
    %1176 = vmatpush.msra.mxu0 %v621
    %1177 = vmatpush.msra.mxu0 %v611
    %1178 = vmatpush.msra.mxu0 %v601
    %1179 = vmatpush.msra.mxu0 %v591
    %1180 = vmatpush.msra.mxu0 %v581
    %1181 = vmatpush.msra.mxu0 %v571
    %1182 = vmatpush.msra.mxu0 %v561
    %1183 = vmatpush.msra.mxu0 %v551
    %1184 = vmatmul.f32.gmra.mxu0 %v62
    %v1185 = vpop.f32.mrf.mxu0
    %v1186 = vadd.f32 %v1163, %v1185
    %1187 = vmatmul.f32.gmra.mxu0 %v67
    %v1188 = vpop.f32.mrf.mxu0
    %v1189 = vadd.f32 %v1166, %v1188
    %1190 = vdwg.mxu0
    %1191 = vmatpush.msra.mxu0 %v861
    %1192 = vmatpush.msra.mxu0 %v851
    %1193 = vmatpush.msra.mxu0 %v841
    %1194 = vmatpush.msra.mxu0 %v831
    %1195 = vmatpush.msra.mxu0 %v821
    %1196 = vmatpush.msra.mxu0 %v811
    %1197 = vmatpush.msra.mxu0 %v801
    %1198 = vmatpush.msra.mxu0 %v791
    %1199 = vmatpush.msra.mxu0 %v781
    %1200 = vmatpush.msra.mxu0 %v771
    %1201 = vmatpush.msra.mxu0 %v761
    %1202 = vmatpush.msra.mxu0 %v751
    %1203 = vmatpush.msra.mxu0 %v741
    %1204 = vmatpush.msra.mxu0 %v731
    %1205 = vmatpush.msra.mxu0 %v721
    %1206 = vmatpush.msra.mxu0 %v711
    %1207 = vmatmul.f32.gmra.mxu0 %v63
    %v1208 = vpop.f32.mrf.mxu0
    %v1209 = vadd.f32 %v1186, %v1208
    %1210 = vmatmul.f32.gmra.mxu0 %v68
    %v1211 = vpop.f32.mrf.mxu0
    %v1212 = vadd.f32 %v1189, %v1211
    %1213 = vdwg.mxu0
    %1214 = vmatpush.msra.mxu0 %v222
    %1215 = vmatpush.msra.mxu0 %v212
    %1216 = vmatpush.msra.mxu0 %v202
    %1217 = vmatpush.msra.mxu0 %v192
    %1218 = vmatpush.msra.mxu0 %v182
    %1219 = vmatpush.msra.mxu0 %v172
    %1220 = vmatpush.msra.mxu0 %v162
    %1221 = vmatpush.msra.mxu0 %v152
    %1222 = vmatpush.msra.mxu0 %v142
    %1223 = vmatpush.msra.mxu0 %v132
    %1224 = vmatpush.msra.mxu0 %v122
    %1225 = vmatpush.msra.mxu0 %v112
    %1226 = vmatpush.msra.mxu0 %v102
    %1227 = vmatpush.msra.mxu0 %v92
    %1228 = vmatpush.msra.mxu0 %v82
    %1229 = vmatpush.msra.mxu0 %v72
    %1230 = vmatmul.f32.gmra.mxu0 %v59
    %v1231 = vpop.f32.mrf.mxu0
    %v1232 = vadd.f32 0.0, %v1231
    %1233 = vmatmul.f32.gmra.mxu0 %v64
    %v1234 = vpop.f32.mrf.mxu0
    %v1235 = vadd.f32 0.0, %v1234
    %1236 = vdwg.mxu0
    %1237 = vmatpush.msra.mxu0 %v382
    %1238 = vmatpush.msra.mxu0 %v372
    %1239 = vmatpush.msra.mxu0 %v362
    %1240 = vmatpush.msra.mxu0 %v352
    %1241 = vmatpush.msra.mxu0 %v342
    %1242 = vmatpush.msra.mxu0 %v332
    %1243 = vmatpush.msra.mxu0 %v322
    %1244 = vmatpush.msra.mxu0 %v312
    %1245 = vmatpush.msra.mxu0 %v302
    %1246 = vmatpush.msra.mxu0 %v292
    %1247 = vmatpush.msra.mxu0 %v282
    %1248 = vmatpush.msra.mxu0 %v272
    %1249 = vmatpush.msra.mxu0 %v262
    %1250 = vmatpush.msra.mxu0 %v252
    %1251 = vmatpush.msra.mxu0 %v242
    %1252 = vmatpush.msra.mxu0 %v232
    %1253 = vmatmul.f32.gmra.mxu0 %v60
    %v1254 = vpop.f32.mrf.mxu0
    %v1255 = vadd.f32 %v1232, %v1254
    %1256 = vmatmul.f32.gmra.mxu0 %v65
    %v1257 = vpop.f32.mrf.mxu0
    %v1258 = vadd.f32 %v1235, %v1257
    %1259 = vdwg.mxu0
    %1260 = vmatpush.msra.mxu0 %v542
    %1261 = vmatpush.msra.mxu0 %v532
    %1262 = vmatpush.msra.mxu0 %v522
    %1263 = vmatpush.msra.mxu0 %v512
    %1264 = vmatpush.msra.mxu0 %v502
    %1265 = vmatpush.msra.mxu0 %v492
    %1266 = vmatpush.msra.mxu0 %v482
    %1267 = vmatpush.msra.mxu0 %v472
    %1268 = vmatpush.msra.mxu0 %v462
    %1269 = vmatpush.msra.mxu0 %v452
    %1270 = vmatpush.msra.mxu0 %v442
    %1271 = vmatpush.msra.mxu0 %v432
    %1272 = vmatpush.msra.mxu0 %v422
    %1273 = vmatpush.msra.mxu0 %v412
    %1274 = vmatpush.msra.mxu0 %v402
    %1275 = vmatpush.msra.mxu0 %v392
    %1276 = vmatmul.f32.gmra.mxu0 %v61
    %v1277 = vpop.f32.mrf.mxu0
    %v1278 = vadd.f32 %v1255, %v1277
    %1279 = vmatmul.f32.gmra.mxu0 %v66
    %v1280 = vpop.f32.mrf.mxu0
    %v1281 = vadd.f32 %v1258, %v1280
    %1282 = vdwg.mxu0
    %1283 = vmatpush.msra.mxu0 %v702
    %1284 = vmatpush.msra.mxu0 %v692
    %1285 = vmatpush.msra.mxu0 %v682
    %1286 = vmatpush.msra.mxu0 %v672
    %1287 = vmatpush.msra.mxu0 %v662
    %1288 = vmatpush.msra.mxu0 %v652
    %1289 = vmatpush.msra.mxu0 %v642
    %1290 = vmatpush.msra.mxu0 %v632
    %1291 = vmatpush.msra.mxu0 %v622
    %1292 = vmatpush.msra.mxu0 %v612
    %1293 = vmatpush.msra.mxu0 %v602
    %1294 = vmatpush.msra.mxu0 %v592
    %1295 = vmatpush.msra.mxu0 %v582
    %1296 = vmatpush.msra.mxu0 %v572
    %1297 = vmatpush.msra.mxu0 %v562
    %1298 = vmatpush.msra.mxu0 %v552
    %1299 = vmatmul.f32.gmra.mxu0 %v62
    %v1300 = vpop.f32.mrf.mxu0
    %v1301 = vadd.f32 %v1278, %v1300
    %1302 = vmatmul.f32.gmra.mxu0 %v67
    %v1303 = vpop.f32.mrf.mxu0
    %v1304 = vadd.f32 %v1281, %v1303
    %1305 = vdwg.mxu0
    %1306 = vmatpush.msra.mxu0 %v862
    %1307 = vmatpush.msra.mxu0 %v852
    %1308 = vmatpush.msra.mxu0 %v842
    %1309 = vmatpush.msra.mxu0 %v832
    %1310 = vmatpush.msra.mxu0 %v822
    %1311 = vmatpush.msra.mxu0 %v812
    %1312 = vmatpush.msra.mxu0 %v802
    %1313 = vmatpush.msra.mxu0 %v792
    %1314 = vmatpush.msra.mxu0 %v782
    %1315 = vmatpush.msra.mxu0 %v772
    %1316 = vmatpush.msra.mxu0 %v762
    %1317 = vmatpush.msra.mxu0 %v752
    %1318 = vmatpush.msra.mxu0 %v742
    %1319 = vmatpush.msra.mxu0 %v732
    %1320 = vmatpush.msra.mxu0 %v722
    %1321 = vmatpush.msra.mxu0 %v712
    %1322 = vmatmul.f32.gmra.mxu0 %v63
    %v1323 = vpop.f32.mrf.mxu0
    %v1324 = vadd.f32 %v1301, %v1323
    %1325 = vmatmul.f32.gmra.mxu0 %v68
    %v1326 = vpop.f32.mrf.mxu0
    %v1327 = vadd.f32 %v1304, %v1326
    %1328 = vdwg.mxu0
    %1329 = vmatpush.msra.mxu0 %v223
    %1330 = vmatpush.msra.mxu0 %v213
    %1331 = vmatpush.msra.mxu0 %v203
    %1332 = vmatpush.msra.mxu0 %v193
    %1333 = vmatpush.msra.mxu0 %v183
    %1334 = vmatpush.msra.mxu0 %v173
    %1335 = vmatpush.msra.mxu0 %v163
    %1336 = vmatpush.msra.mxu0 %v153
    %1337 = vmatpush.msra.mxu0 %v143
    %1338 = vmatpush.msra.mxu0 %v133
    %1339 = vmatpush.msra.mxu0 %v123
    %1340 = vmatpush.msra.mxu0 %v113
    %1341 = vmatpush.msra.mxu0 %v103
    %1342 = vmatpush.msra.mxu0 %v93
    %1343 = vmatpush.msra.mxu0 %v83
    %1344 = vmatpush.msra.mxu0 %v73
    %1345 = vmatmul.f32.gmra.mxu0 %v59
    %v1346 = vpop.f32.mrf.mxu0
    %v1347 = vadd.f32 0.0, %v1346
    %1348 = vmatmul.f32.gmra.mxu0 %v64
    %v1349 = vpop.f32.mrf.mxu0
    %v1350 = vadd.f32 0.0, %v1349
    %1351 = vdwg.mxu0
    %1352 = vmatpush.msra.mxu0 %v383
    %1353 = vmatpush.msra.mxu0 %v373
    %1354 = vmatpush.msra.mxu0 %v363
    %1355 = vmatpush.msra.mxu0 %v353
    %1356 = vmatpush.msra.mxu0 %v343
    %1357 = vmatpush.msra.mxu0 %v333
    %1358 = vmatpush.msra.mxu0 %v323
    %1359 = vmatpush.msra.mxu0 %v313
    %1360 = vmatpush.msra.mxu0 %v303
    %1361 = vmatpush.msra.mxu0 %v293
    %1362 = vmatpush.msra.mxu0 %v283
    %1363 = vmatpush.msra.mxu0 %v273
    %1364 = vmatpush.msra.mxu0 %v263
    %1365 = vmatpush.msra.mxu0 %v253
    %1366 = vmatpush.msra.mxu0 %v243
    %1367 = vmatpush.msra.mxu0 %v233
    %1368 = vmatmul.f32.gmra.mxu0 %v60
    %v1369 = vpop.f32.mrf.mxu0
    %v1370 = vadd.f32 %v1347, %v1369
    %1371 = vmatmul.f32.gmra.mxu0 %v65
    %v1372 = vpop.f32.mrf.mxu0
    %v1373 = vadd.f32 %v1350, %v1372
    %1374 = vdwg.mxu0
    %1375 = vmatpush.msra.mxu0 %v543
    %1376 = vmatpush.msra.mxu0 %v533
    %1377 = vmatpush.msra.mxu0 %v523
    %1378 = vmatpush.msra.mxu0 %v513
    %1379 = vmatpush.msra.mxu0 %v503
    %1380 = vmatpush.msra.mxu0 %v493
    %1381 = vmatpush.msra.mxu0 %v483
    %1382 = vmatpush.msra.mxu0 %v473
    %1383 = vmatpush.msra.mxu0 %v463
    %1384 = vmatpush.msra.mxu0 %v453
    %1385 = vmatpush.msra.mxu0 %v443
    %1386 = vmatpush.msra.mxu0 %v433
    %1387 = vmatpush.msra.mxu0 %v423
    %1388 = vmatpush.msra.mxu0 %v413
    %1389 = vmatpush.msra.mxu0 %v403
    %1390 = vmatpush.msra.mxu0 %v393
    %1391 = vmatmul.f32.gmra.mxu0 %v61
    %v1392 = vpop.f32.mrf.mxu0
    %v1393 = vadd.f32 %v1370, %v1392
    %1394 = vmatmul.f32.gmra.mxu0 %v66
    %v1395 = vpop.f32.mrf.mxu0
    %v1396 = vadd.f32 %v1373, %v1395
    %1397 = vdwg.mxu0
    %1398 = vmatpush.msra.mxu0 %v703
    %1399 = vmatpush.msra.mxu0 %v693
    %1400 = vmatpush.msra.mxu0 %v683
    %1401 = vmatpush.msra.mxu0 %v673
    %1402 = vmatpush.msra.mxu0 %v663
    %1403 = vmatpush.msra.mxu0 %v653
    %1404 = vmatpush.msra.mxu0 %v643
    %1405 = vmatpush.msra.mxu0 %v633
    %1406 = vmatpush.msra.mxu0 %v623
    %1407 = vmatpush.msra.mxu0 %v613
    %1408 = vmatpush.msra.mxu0 %v603
    %1409 = vmatpush.msra.mxu0 %v593
    %1410 = vmatpush.msra.mxu0 %v583
    %1411 = vmatpush.msra.mxu0 %v573
    %1412 = vmatpush.msra.mxu0 %v563
    %1413 = vmatpush.msra.mxu0 %v553
    %1414 = vmatmul.f32.gmra.mxu0 %v62
    %v1415 = vpop.f32.mrf.mxu0
    %v1416 = vadd.f32 %v1393, %v1415
    %1417 = vmatmul.f32.gmra.mxu0 %v67
    %v1418 = vpop.f32.mrf.mxu0
    %v1419 = vadd.f32 %v1396, %v1418
    %1420 = vdwg.mxu0
    %1421 = vmatpush.msra.mxu0 %v863
    %1422 = vmatpush.msra.mxu0 %v853
    %1423 = vmatpush.msra.mxu0 %v843
    %1424 = vmatpush.msra.mxu0 %v833
    %1425 = vmatpush.msra.mxu0 %v823
    %1426 = vmatpush.msra.mxu0 %v813
    %1427 = vmatpush.msra.mxu0 %v803
    %1428 = vmatpush.msra.mxu0 %v793
    %1429 = vmatpush.msra.mxu0 %v783
    %1430 = vmatpush.msra.mxu0 %v773
    %1431 = vmatpush.msra.mxu0 %v763
    %1432 = vmatpush.msra.mxu0 %v753
    %1433 = vmatpush.msra.mxu0 %v743
    %1434 = vmatpush.msra.mxu0 %v733
    %1435 = vmatpush.msra.mxu0 %v723
    %1436 = vmatpush.msra.mxu0 %v713
    %1437 = vmatmul.f32.gmra.mxu0 %v63
    %v1438 = vpop.f32.mrf.mxu0
    %v1439 = vadd.f32 %v1416, %v1438
    %1440 = vmatmul.f32.gmra.mxu0 %v68
    %v1441 = vpop.f32.mrf.mxu0
    %v1442 = vadd.f32 %v1419, %v1441
    %1443 = vdwg.mxu0
    %1444 = vmatpush.msra.mxu0 %v224
    %1445 = vmatpush.msra.mxu0 %v214
    %1446 = vmatpush.msra.mxu0 %v204
    %1447 = vmatpush.msra.mxu0 %v194
    %1448 = vmatpush.msra.mxu0 %v184
    %1449 = vmatpush.msra.mxu0 %v174
    %1450 = vmatpush.msra.mxu0 %v164
    %1451 = vmatpush.msra.mxu0 %v154
    %1452 = vmatpush.msra.mxu0 %v144
    %1453 = vmatpush.msra.mxu0 %v134
    %1454 = vmatpush.msra.mxu0 %v124
    %1455 = vmatpush.msra.mxu0 %v114
    %1456 = vmatpush.msra.mxu0 %v104
    %1457 = vmatpush.msra.mxu0 %v94
    %1458 = vmatpush.msra.mxu0 %v84
    %1459 = vmatpush.msra.mxu0 %v74
    %1460 = vmatmul.f32.gmra.mxu0 %v59
    %v1461 = vpop.f32.mrf.mxu0
    %v1462 = vadd.f32 0.0, %v1461
    %1463 = vmatmul.f32.gmra.mxu0 %v64
    %v1464 = vpop.f32.mrf.mxu0
    %v1465 = vadd.f32 0.0, %v1464
    %1466 = vdwg.mxu0
    %1467 = vmatpush.msra.mxu0 %v384
    %1468 = vmatpush.msra.mxu0 %v374
    %1469 = vmatpush.msra.mxu0 %v364
    %1470 = vmatpush.msra.mxu0 %v354
    %1471 = vmatpush.msra.mxu0 %v344
    %1472 = vmatpush.msra.mxu0 %v334
    %1473 = vmatpush.msra.mxu0 %v324
    %1474 = vmatpush.msra.mxu0 %v314
    %1475 = vmatpush.msra.mxu0 %v304
    %1476 = vmatpush.msra.mxu0 %v294
    %1477 = vmatpush.msra.mxu0 %v284
    %1478 = vmatpush.msra.mxu0 %v274
    %1479 = vmatpush.msra.mxu0 %v264
    %1480 = vmatpush.msra.mxu0 %v254
    %1481 = vmatpush.msra.mxu0 %v244
    %1482 = vmatpush.msra.mxu0 %v234
    %1483 = vmatmul.f32.gmra.mxu0 %v60
    %v1484 = vpop.f32.mrf.mxu0
    %v1485 = vadd.f32 %v1462, %v1484
    %1486 = vmatmul.f32.gmra.mxu0 %v65
    %v1487 = vpop.f32.mrf.mxu0
    %v1488 = vadd.f32 %v1465, %v1487
    %1489 = vdwg.mxu0
    %1490 = vmatpush.msra.mxu0 %v544
    %1491 = vmatpush.msra.mxu0 %v534
    %1492 = vmatpush.msra.mxu0 %v524
    %1493 = vmatpush.msra.mxu0 %v514
    %1494 = vmatpush.msra.mxu0 %v504
    %1495 = vmatpush.msra.mxu0 %v494
    %1496 = vmatpush.msra.mxu0 %v484
    %1497 = vmatpush.msra.mxu0 %v474
    %1498 = vmatpush.msra.mxu0 %v464
    %1499 = vmatpush.msra.mxu0 %v454
    %1500 = vmatpush.msra.mxu0 %v444
    %1501 = vmatpush.msra.mxu0 %v434
    %1502 = vmatpush.msra.mxu0 %v424
    %1503 = vmatpush.msra.mxu0 %v414
    %1504 = vmatpush.msra.mxu0 %v404
    %1505 = vmatpush.msra.mxu0 %v394
    %1506 = vmatmul.f32.gmra.mxu0 %v61
    %v1507 = vpop.f32.mrf.mxu0
    %v1508 = vadd.f32 %v1485, %v1507
    %1509 = vmatmul.f32.gmra.mxu0 %v66
    %v1510 = vpop.f32.mrf.mxu0
    %v1511 = vadd.f32 %v1488, %v1510
    %1512 = vdwg.mxu0
    %1513 = vmatpush.msra.mxu0 %v704
    %1514 = vmatpush.msra.mxu0 %v694
    %1515 = vmatpush.msra.mxu0 %v684
    %1516 = vmatpush.msra.mxu0 %v674
    %1517 = vmatpush.msra.mxu0 %v664
    %1518 = vmatpush.msra.mxu0 %v654
    %1519 = vmatpush.msra.mxu0 %v644
    %1520 = vmatpush.msra.mxu0 %v634
    %1521 = vmatpush.msra.mxu0 %v624
    %1522 = vmatpush.msra.mxu0 %v614
    %1523 = vmatpush.msra.mxu0 %v604
    %1524 = vmatpush.msra.mxu0 %v594
    %1525 = vmatpush.msra.mxu0 %v584
    %1526 = vmatpush.msra.mxu0 %v574
    %1527 = vmatpush.msra.mxu0 %v564
    %1528 = vmatpush.msra.mxu0 %v554
    %1529 = vmatmul.f32.gmra.mxu0 %v62
    %v1530 = vpop.f32.mrf.mxu0
    %v1531 = vadd.f32 %v1508, %v1530
    %1532 = vmatmul.f32.gmra.mxu0 %v67
    %v1533 = vpop.f32.mrf.mxu0
    %v1534 = vadd.f32 %v1511, %v1533
    %1535 = vdwg.mxu0
    %1536 = vmatpush.msra.mxu0 %v864
    %1537 = vmatpush.msra.mxu0 %v854
    %1538 = vmatpush.msra.mxu0 %v844
    %1539 = vmatpush.msra.mxu0 %v834
    %1540 = vmatpush.msra.mxu0 %v824
    %1541 = vmatpush.msra.mxu0 %v814
    %1542 = vmatpush.msra.mxu0 %v804
    %1543 = vmatpush.msra.mxu0 %v794
    %1544 = vmatpush.msra.mxu0 %v784
    %1545 = vmatpush.msra.mxu0 %v774
    %1546 = vmatpush.msra.mxu0 %v764
    %1547 = vmatpush.msra.mxu0 %v754
    %1548 = vmatpush.msra.mxu0 %v744
    %1549 = vmatpush.msra.mxu0 %v734
    %1550 = vmatpush.msra.mxu0 %v724
    %1551 = vmatpush.msra.mxu0 %v714
    %1552 = vmatmul.f32.gmra.mxu0 %v63
    %v1553 = vpop.f32.mrf.mxu0
    %v1554 = vadd.f32 %v1531, %v1553
    %1555 = vmatmul.f32.gmra.mxu0 %v68
    %v1556 = vpop.f32.mrf.mxu0
    %v1557 = vadd.f32 %v1534, %v1556
    %1558 = vdwg.mxu0
    %1559 = vmatpush.msra.mxu0 %v225
    %1560 = vmatpush.msra.mxu0 %v215
    %1561 = vmatpush.msra.mxu0 %v205
    %1562 = vmatpush.msra.mxu0 %v195
    %1563 = vmatpush.msra.mxu0 %v185
    %1564 = vmatpush.msra.mxu0 %v175
    %1565 = vmatpush.msra.mxu0 %v165
    %1566 = vmatpush.msra.mxu0 %v155
    %1567 = vmatpush.msra.mxu0 %v145
    %1568 = vmatpush.msra.mxu0 %v135
    %1569 = vmatpush.msra.mxu0 %v125
    %1570 = vmatpush.msra.mxu0 %v115
    %1571 = vmatpush.msra.mxu0 %v105
    %1572 = vmatpush.msra.mxu0 %v95
    %1573 = vmatpush.msra.mxu0 %v85
    %1574 = vmatpush.msra.mxu0 %v75
    %1575 = vmatmul.f32.gmra.mxu0 %v59
    %v1576 = vpop.f32.mrf.mxu0
    %v1577 = vadd.f32 0.0, %v1576
    %1578 = vmatmul.f32.gmra.mxu0 %v64
    %v1579 = vpop.f32.mrf.mxu0
    %v1580 = vadd.f32 0.0, %v1579
    %1581 = vdwg.mxu0
    %1582 = vmatpush.msra.mxu0 %v385
    %1583 = vmatpush.msra.mxu0 %v375
    %1584 = vmatpush.msra.mxu0 %v365
    %1585 = vmatpush.msra.mxu0 %v355
    %1586 = vmatpush.msra.mxu0 %v345
    %1587 = vmatpush.msra.mxu0 %v335
    %1588 = vmatpush.msra.mxu0 %v325
    %1589 = vmatpush.msra.mxu0 %v315
    %1590 = vmatpush.msra.mxu0 %v305
    %1591 = vmatpush.msra.mxu0 %v295
    %1592 = vmatpush.msra.mxu0 %v285
    %1593 = vmatpush.msra.mxu0 %v275
    %1594 = vmatpush.msra.mxu0 %v265
    %1595 = vmatpush.msra.mxu0 %v255
    %1596 = vmatpush.msra.mxu0 %v245
    %1597 = vmatpush.msra.mxu0 %v235
    %1598 = vmatmul.f32.gmra.mxu0 %v60
    %v1599 = vpop.f32.mrf.mxu0
    %v1600 = vadd.f32 %v1577, %v1599
    %1601 = vmatmul.f32.gmra.mxu0 %v65
    %v1602 = vpop.f32.mrf.mxu0
    %v1603 = vadd.f32 %v1580, %v1602
    %1604 = vdwg.mxu0
    %1605 = vmatpush.msra.mxu0 %v545
    %1606 = vmatpush.msra.mxu0 %v535
    %1607 = vmatpush.msra.mxu0 %v525
    %1608 = vmatpush.msra.mxu0 %v515
    %1609 = vmatpush.msra.mxu0 %v505
    %1610 = vmatpush.msra.mxu0 %v495
    %1611 = vmatpush.msra.mxu0 %v485
    %1612 = vmatpush.msra.mxu0 %v475
    %1613 = vmatpush.msra.mxu0 %v465
    %1614 = vmatpush.msra.mxu0 %v455
    %1615 = vmatpush.msra.mxu0 %v445
    %1616 = vmatpush.msra.mxu0 %v435
    %1617 = vmatpush.msra.mxu0 %v425
    %1618 = vmatpush.msra.mxu0 %v415
    %1619 = vmatpush.msra.mxu0 %v405
    %1620 = vmatpush.msra.mxu0 %v395
    %1621 = vmatmul.f32.gmra.mxu0 %v61
    %v1622 = vpop.f32.mrf.mxu0
    %v1623 = vadd.f32 %v1600, %v1622
    %1624 = vmatmul.f32.gmra.mxu0 %v66
    %v1625 = vpop.f32.mrf.mxu0
    %v1626 = vadd.f32 %v1603, %v1625
    %1627 = vdwg.mxu0
    %1628 = vmatpush.msra.mxu0 %v705
    %1629 = vmatpush.msra.mxu0 %v695
    %1630 = vmatpush.msra.mxu0 %v685
    %1631 = vmatpush.msra.mxu0 %v675
    %1632 = vmatpush.msra.mxu0 %v665
    %1633 = vmatpush.msra.mxu0 %v655
    %1634 = vmatpush.msra.mxu0 %v645
    %1635 = vmatpush.msra.mxu0 %v635
    %1636 = vmatpush.msra.mxu0 %v625
    %1637 = vmatpush.msra.mxu0 %v615
    %1638 = vmatpush.msra.mxu0 %v605
    %1639 = vmatpush.msra.mxu0 %v595
    %1640 = vmatpush.msra.mxu0 %v585
    %1641 = vmatpush.msra.mxu0 %v575
    %1642 = vmatpush.msra.mxu0 %v565
    %1643 = vmatpush.msra.mxu0 %v555
    %1644 = vmatmul.f32.gmra.mxu0 %v62
    %v1645 = vpop.f32.mrf.mxu0
    %v1646 = vadd.f32 %v1623, %v1645
    %1647 = vmatmul.f32.gmra.mxu0 %v67
    %v1648 = vpop.f32.mrf.mxu0
    %v1649 = vadd.f32 %v1626, %v1648
    %1650 = vdwg.mxu0
    %1651 = vmatpush.msra.mxu0 %v865
    %1652 = vmatpush.msra.mxu0 %v855
    %1653 = vmatpush.msra.mxu0 %v845
    %1654 = vmatpush.msra.mxu0 %v835
    %1655 = vmatpush.msra.mxu0 %v825
    %1656 = vmatpush.msra.mxu0 %v815
    %1657 = vmatpush.msra.mxu0 %v805
    %1658 = vmatpush.msra.mxu0 %v795
    %1659 = vmatpush.msra.mxu0 %v785
    %1660 = vmatpush.msra.mxu0 %v775
    %1661 = vmatpush.msra.mxu0 %v765
    %1662 = vmatpush.msra.mxu0 %v755
    %1663 = vmatpush.msra.mxu0 %v745
    %1664 = vmatpush.msra.mxu0 %v735
    %1665 = vmatpush.msra.mxu0 %v725
    %1666 = vmatpush.msra.mxu0 %v715
    %1667 = vmatmul.f32.gmra.mxu0 %v63
    %v1668 = vpop.f32.mrf.mxu0
    %v1669 = vadd.f32 %v1646, %v1668
    %1670 = vmatmul.f32.gmra.mxu0 %v68
    %v1671 = vpop.f32.mrf.mxu0
    %v1672 = vadd.f32 %v1649, %v1671
    %1673 = vdwg.mxu0
    %1674 = vmatpush.msra.mxu0 %v226
    %1675 = vmatpush.msra.mxu0 %v216
    %1676 = vmatpush.msra.mxu0 %v206
    %1677 = vmatpush.msra.mxu0 %v196
    %1678 = vmatpush.msra.mxu0 %v186
    %1679 = vmatpush.msra.mxu0 %v176
    %1680 = vmatpush.msra.mxu0 %v166
    %1681 = vmatpush.msra.mxu0 %v156
    %1682 = vmatpush.msra.mxu0 %v146
    %1683 = vmatpush.msra.mxu0 %v136
    %1684 = vmatpush.msra.mxu0 %v126
    %1685 = vmatpush.msra.mxu0 %v116
    %1686 = vmatpush.msra.mxu0 %v106
    %1687 = vmatpush.msra.mxu0 %v96
    %1688 = vmatpush.msra.mxu0 %v86
    %1689 = vmatpush.msra.mxu0 %v76
    %1690 = vmatmul.f32.gmra.mxu0 %v59
    %v1691 = vpop.f32.mrf.mxu0
    %v1692 = vadd.f32 0.0, %v1691
    %1693 = vmatmul.f32.gmra.mxu0 %v64
    %v1694 = vpop.f32.mrf.mxu0
    %v1695 = vadd.f32 0.0, %v1694
    %1696 = vdwg.mxu0
    %1697 = vmatpush.msra.mxu0 %v386
    %1698 = vmatpush.msra.mxu0 %v376
    %1699 = vmatpush.msra.mxu0 %v366
    %1700 = vmatpush.msra.mxu0 %v356
    %1701 = vmatpush.msra.mxu0 %v346
    %1702 = vmatpush.msra.mxu0 %v336
    %1703 = vmatpush.msra.mxu0 %v326
    %1704 = vmatpush.msra.mxu0 %v316
    %1705 = vmatpush.msra.mxu0 %v306
    %1706 = vmatpush.msra.mxu0 %v296
    %1707 = vmatpush.msra.mxu0 %v286
    %1708 = vmatpush.msra.mxu0 %v276
    %1709 = vmatpush.msra.mxu0 %v266
    %1710 = vmatpush.msra.mxu0 %v256
    %1711 = vmatpush.msra.mxu0 %v246
    %1712 = vmatpush.msra.mxu0 %v236
    %1713 = vmatmul.f32.gmra.mxu0 %v60
    %v1714 = vpop.f32.mrf.mxu0
    %v1715 = vadd.f32 %v1692, %v1714
    %1716 = vmatmul.f32.gmra.mxu0 %v65
    %v1717 = vpop.f32.mrf.mxu0
    %v1718 = vadd.f32 %v1695, %v1717
    %1719 = vdwg.mxu0
    %1720 = vmatpush.msra.mxu0 %v546
    %1721 = vmatpush.msra.mxu0 %v536
    %1722 = vmatpush.msra.mxu0 %v526
    %1723 = vmatpush.msra.mxu0 %v516
    %1724 = vmatpush.msra.mxu0 %v506
    %1725 = vmatpush.msra.mxu0 %v496
    %1726 = vmatpush.msra.mxu0 %v486
    %1727 = vmatpush.msra.mxu0 %v476
    %1728 = vmatpush.msra.mxu0 %v466
    %1729 = vmatpush.msra.mxu0 %v456
    %1730 = vmatpush.msra.mxu0 %v446
    %1731 = vmatpush.msra.mxu0 %v436
    %1732 = vmatpush.msra.mxu0 %v426
    %1733 = vmatpush.msra.mxu0 %v416
    %1734 = vmatpush.msra.mxu0 %v406
    %1735 = vmatpush.msra.mxu0 %v396
    %1736 = vmatmul.f32.gmra.mxu0 %v61
    %v1737 = vpop.f32.mrf.mxu0
    %v1738 = vadd.f32 %v1715, %v1737
    %1739 = vmatmul.f32.gmra.mxu0 %v66
    %v1740 = vpop.f32.mrf.mxu0
    %v1741 = vadd.f32 %v1718, %v1740
    %1742 = vdwg.mxu0
    %1743 = vmatpush.msra.mxu0 %v706
    %1744 = vmatpush.msra.mxu0 %v696
    %1745 = vmatpush.msra.mxu0 %v686
    %1746 = vmatpush.msra.mxu0 %v676
    %1747 = vmatpush.msra.mxu0 %v666
    %1748 = vmatpush.msra.mxu0 %v656
    %1749 = vmatpush.msra.mxu0 %v646
    %1750 = vmatpush.msra.mxu0 %v636
    %1751 = vmatpush.msra.mxu0 %v626
    %1752 = vmatpush.msra.mxu0 %v616
    %1753 = vmatpush.msra.mxu0 %v606
    %1754 = vmatpush.msra.mxu0 %v596
    %1755 = vmatpush.msra.mxu0 %v586
    %1756 = vmatpush.msra.mxu0 %v576
    %1757 = vmatpush.msra.mxu0 %v566
    %1758 = vmatpush.msra.mxu0 %v556
    %1759 = vmatmul.f32.gmra.mxu0 %v62
    %v1760 = vpop.f32.mrf.mxu0
    %v1761 = vadd.f32 %v1738, %v1760
    %1762 = vmatmul.f32.gmra.mxu0 %v67
    %v1763 = vpop.f32.mrf.mxu0
    %v1764 = vadd.f32 %v1741, %v1763
    %1765 = vdwg.mxu0
    %1766 = vmatpush.msra.mxu0 %v866
    %1767 = vmatpush.msra.mxu0 %v856
    %1768 = vmatpush.msra.mxu0 %v846
    %1769 = vmatpush.msra.mxu0 %v836
    %1770 = vmatpush.msra.mxu0 %v826
    %1771 = vmatpush.msra.mxu0 %v816
    %1772 = vmatpush.msra.mxu0 %v806
    %1773 = vmatpush.msra.mxu0 %v796
    %1774 = vmatpush.msra.mxu0 %v786
    %1775 = vmatpush.msra.mxu0 %v776
    %1776 = vmatpush.msra.mxu0 %v766
    %1777 = vmatpush.msra.mxu0 %v756
    %1778 = vmatpush.msra.mxu0 %v746
    %1779 = vmatpush.msra.mxu0 %v736
    %1780 = vmatpush.msra.mxu0 %v726
    %1781 = vmatpush.msra.mxu0 %v716
    %1782 = vmatmul.f32.gmra.mxu0 %v63
    %v1783 = vpop.f32.mrf.mxu0
    %v1784 = vadd.f32 %v1761, %v1783
    %1785 = vmatmul.f32.gmra.mxu0 %v68
    %v1786 = vpop.f32.mrf.mxu0
    %v1787 = vadd.f32 %v1764, %v1786
    %1788 = vdwg.mxu0
    %1789 = vmatpush.msra.mxu0 %v227
    %1790 = vmatpush.msra.mxu0 %v217
    %1791 = vmatpush.msra.mxu0 %v207
    %1792 = vmatpush.msra.mxu0 %v197
    %1793 = vmatpush.msra.mxu0 %v187
    %1794 = vmatpush.msra.mxu0 %v177
    %1795 = vmatpush.msra.mxu0 %v167
    %1796 = vmatpush.msra.mxu0 %v157
    %1797 = vmatpush.msra.mxu0 %v147
    %1798 = vmatpush.msra.mxu0 %v137
    %1799 = vmatpush.msra.mxu0 %v127
    %1800 = vmatpush.msra.mxu0 %v117
    %1801 = vmatpush.msra.mxu0 %v107
    %1802 = vmatpush.msra.mxu0 %v97
    %1803 = vmatpush.msra.mxu0 %v87
    %1804 = vmatpush.msra.mxu0 %v77
    %1805 = vmatmul.f32.gmra.mxu0 %v59
    %v1806 = vpop.f32.mrf.mxu0
    %v1807 = vadd.f32 0.0, %v1806
    %1808 = vmatmul.f32.gmra.mxu0 %v64
    %v1809 = vpop.f32.mrf.mxu0
    %v1810 = vadd.f32 0.0, %v1809
    %1811 = vdwg.mxu0
    %1812 = vmatpush.msra.mxu0 %v387
    %1813 = vmatpush.msra.mxu0 %v377
    %1814 = vmatpush.msra.mxu0 %v367
    %1815 = vmatpush.msra.mxu0 %v357
    %1816 = vmatpush.msra.mxu0 %v347
    %1817 = vmatpush.msra.mxu0 %v337
    %1818 = vmatpush.msra.mxu0 %v327
    %1819 = vmatpush.msra.mxu0 %v317
    %1820 = vmatpush.msra.mxu0 %v307
    %1821 = vmatpush.msra.mxu0 %v297
    %1822 = vmatpush.msra.mxu0 %v287
    %1823 = vmatpush.msra.mxu0 %v277
    %1824 = vmatpush.msra.mxu0 %v267
    %1825 = vmatpush.msra.mxu0 %v257
    %1826 = vmatpush.msra.mxu0 %v247
    %1827 = vmatpush.msra.mxu0 %v237
    %1828 = vmatmul.f32.gmra.mxu0 %v60
    %v1829 = vpop.f32.mrf.mxu0
    %v1830 = vadd.f32 %v1807, %v1829
    %1831 = vmatmul.f32.gmra.mxu0 %v65
    %v1832 = vpop.f32.mrf.mxu0
    %v1833 = vadd.f32 %v1810, %v1832
    %1834 = vdwg.mxu0
    %1835 = vmatpush.msra.mxu0 %v547
    %1836 = vmatpush.msra.mxu0 %v537
    %1837 = vmatpush.msra.mxu0 %v527
    %1838 = vmatpush.msra.mxu0 %v517
    %1839 = vmatpush.msra.mxu0 %v507
    %1840 = vmatpush.msra.mxu0 %v497
    %1841 = vmatpush.msra.mxu0 %v487
    %1842 = vmatpush.msra.mxu0 %v477
    %1843 = vmatpush.msra.mxu0 %v467
    %1844 = vmatpush.msra.mxu0 %v457
    %1845 = vmatpush.msra.mxu0 %v447
    %1846 = vmatpush.msra.mxu0 %v437
    %1847 = vmatpush.msra.mxu0 %v427
    %1848 = vmatpush.msra.mxu0 %v417
    %1849 = vmatpush.msra.mxu0 %v407
    %1850 = vmatpush.msra.mxu0 %v397
    %1851 = vmatmul.f32.gmra.mxu0 %v61
    %v1852 = vpop.f32.mrf.mxu0
    %v1853 = vadd.f32 %v1830, %v1852
    %1854 = vmatmul.f32.gmra.mxu0 %v66
    %v1855 = vpop.f32.mrf.mxu0
    %v1856 = vadd.f32 %v1833, %v1855
    %1857 = vdwg.mxu0
    %1858 = vmatpush.msra.mxu0 %v707
    %1859 = vmatpush.msra.mxu0 %v697
    %1860 = vmatpush.msra.mxu0 %v687
    %1861 = vmatpush.msra.mxu0 %v677
    %1862 = vmatpush.msra.mxu0 %v667
    %1863 = vmatpush.msra.mxu0 %v657
    %1864 = vmatpush.msra.mxu0 %v647
    %1865 = vmatpush.msra.mxu0 %v637
    %1866 = vmatpush.msra.mxu0 %v627
    %1867 = vmatpush.msra.mxu0 %v617
    %1868 = vmatpush.msra.mxu0 %v607
    %1869 = vmatpush.msra.mxu0 %v597
    %1870 = vmatpush.msra.mxu0 %v587
    %1871 = vmatpush.msra.mxu0 %v577
    %1872 = vmatpush.msra.mxu0 %v567
    %1873 = vmatpush.msra.mxu0 %v557
    %1874 = vmatmul.f32.gmra.mxu0 %v62
    %v1875 = vpop.f32.mrf.mxu0
    %v1876 = vadd.f32 %v1853, %v1875
    %1877 = vmatmul.f32.gmra.mxu0 %v67
    %v1878 = vpop.f32.mrf.mxu0
    %v1879 = vadd.f32 %v1856, %v1878
    %1880 = vdwg.mxu0
    %1881 = vmatpush.msra.mxu0 %v867
    %1882 = vmatpush.msra.mxu0 %v857
    %1883 = vmatpush.msra.mxu0 %v847
    %1884 = vmatpush.msra.mxu0 %v837
    %1885 = vmatpush.msra.mxu0 %v827
    %1886 = vmatpush.msra.mxu0 %v817
    %1887 = vmatpush.msra.mxu0 %v807
    %1888 = vmatpush.msra.mxu0 %v797
    %1889 = vmatpush.msra.mxu0 %v787
    %1890 = vmatpush.msra.mxu0 %v777
    %1891 = vmatpush.msra.mxu0 %v767
    %1892 = vmatpush.msra.mxu0 %v757
    %1893 = vmatpush.msra.mxu0 %v747
    %1894 = vmatpush.msra.mxu0 %v737
    %1895 = vmatpush.msra.mxu0 %v727
    %1896 = vmatpush.msra.mxu0 %v717
    %1897 = vmatmul.f32.gmra.mxu0 %v63
    %v1898 = vpop.f32.mrf.mxu0
    %v1899 = vadd.f32 %v1876, %v1898
    %1900 = vmatmul.f32.gmra.mxu0 %v68
    %v1901 = vpop.f32.mrf.mxu0
    %v1902 = vadd.f32 %v1879, %v1901
    %1903 = vdwg.mxu0
    %1904 = vmatpush.msra.mxu0 %v228
    %1905 = vmatpush.msra.mxu0 %v218
    %1906 = vmatpush.msra.mxu0 %v208
    %1907 = vmatpush.msra.mxu0 %v198
    %1908 = vmatpush.msra.mxu0 %v188
    %1909 = vmatpush.msra.mxu0 %v178
    %1910 = vmatpush.msra.mxu0 %v168
    %1911 = vmatpush.msra.mxu0 %v158
    %1912 = vmatpush.msra.mxu0 %v148
    %1913 = vmatpush.msra.mxu0 %v138
    %1914 = vmatpush.msra.mxu0 %v128
    %1915 = vmatpush.msra.mxu0 %v118
    %1916 = vmatpush.msra.mxu0 %v108
    %1917 = vmatpush.msra.mxu0 %v98
    %1918 = vmatpush.msra.mxu0 %v88
    %1919 = vmatpush.msra.mxu0 %v78
    %1920 = vmatmul.f32.gmra.mxu0 %v59
    %v1921 = vpop.f32.mrf.mxu0
    %v1922 = vadd.f32 0.0, %v1921
    %1923 = vmatmul.f32.gmra.mxu0 %v64
    %v1924 = vpop.f32.mrf.mxu0
    %v1925 = vadd.f32 0.0, %v1924
    %1926 = vdwg.mxu0
    %1927 = vmatpush.msra.mxu0 %v388
    %1928 = vmatpush.msra.mxu0 %v378
    %1929 = vmatpush.msra.mxu0 %v368
    %1930 = vmatpush.msra.mxu0 %v358
    %1931 = vmatpush.msra.mxu0 %v348
    %1932 = vmatpush.msra.mxu0 %v338
    %1933 = vmatpush.msra.mxu0 %v328
    %1934 = vmatpush.msra.mxu0 %v318
    %1935 = vmatpush.msra.mxu0 %v308
    %1936 = vmatpush.msra.mxu0 %v298
    %1937 = vmatpush.msra.mxu0 %v288
    %1938 = vmatpush.msra.mxu0 %v278
    %1939 = vmatpush.msra.mxu0 %v268
    %1940 = vmatpush.msra.mxu0 %v258
    %1941 = vmatpush.msra.mxu0 %v248
    %1942 = vmatpush.msra.mxu0 %v238
    %1943 = vmatmul.f32.gmra.mxu0 %v60
    %v1944 = vpop.f32.mrf.mxu0
    %v1945 = vadd.f32 %v1922, %v1944
    %1946 = vmatmul.f32.gmra.mxu0 %v65
    %v1947 = vpop.f32.mrf.mxu0
    %v1948 = vadd.f32 %v1925, %v1947
    %1949 = vdwg.mxu0
    %1950 = vmatpush.msra.mxu0 %v548
    %1951 = vmatpush.msra.mxu0 %v538
    %1952 = vmatpush.msra.mxu0 %v528
    %1953 = vmatpush.msra.mxu0 %v518
    %1954 = vmatpush.msra.mxu0 %v508
    %1955 = vmatpush.msra.mxu0 %v498
    %1956 = vmatpush.msra.mxu0 %v488
    %1957 = vmatpush.msra.mxu0 %v478
    %1958 = vmatpush.msra.mxu0 %v468
    %1959 = vmatpush.msra.mxu0 %v458
    %1960 = vmatpush.msra.mxu0 %v448
    %1961 = vmatpush.msra.mxu0 %v438
    %1962 = vmatpush.msra.mxu0 %v428
    %1963 = vmatpush.msra.mxu0 %v418
    %1964 = vmatpush.msra.mxu0 %v408
    %1965 = vmatpush.msra.mxu0 %v398
    %1966 = vmatmul.f32.gmra.mxu0 %v61
    %v1967 = vpop.f32.mrf.mxu0
    %v1968 = vadd.f32 %v1945, %v1967
    %1969 = vmatmul.f32.gmra.mxu0 %v66
    %v1970 = vpop.f32.mrf.mxu0
    %v1971 = vadd.f32 %v1948, %v1970
    %1972 = vdwg.mxu0
    %1973 = vmatpush.msra.mxu0 %v708
    %1974 = vmatpush.msra.mxu0 %v698
    %1975 = vmatpush.msra.mxu0 %v688
    %1976 = vmatpush.msra.mxu0 %v678
    %1977 = vmatpush.msra.mxu0 %v668
    %1978 = vmatpush.msra.mxu0 %v658
    %1979 = vmatpush.msra.mxu0 %v648
    %1980 = vmatpush.msra.mxu0 %v638
    %1981 = vmatpush.msra.mxu0 %v628
    %1982 = vmatpush.msra.mxu0 %v618
    %1983 = vmatpush.msra.mxu0 %v608
    %1984 = vmatpush.msra.mxu0 %v598
    %1985 = vmatpush.msra.mxu0 %v588
    %1986 = vmatpush.msra.mxu0 %v578
    %1987 = vmatpush.msra.mxu0 %v568
    %1988 = vmatpush.msra.mxu0 %v558
    %1989 = vmatmul.f32.gmra.mxu0 %v62
    %v1990 = vpop.f32.mrf.mxu0
    %v1991 = vadd.f32 %v1968, %v1990
    %1992 = vmatmul.f32.gmra.mxu0 %v67
    %v1993 = vpop.f32.mrf.mxu0
    %v1994 = vadd.f32 %v1971, %v1993
    %1995 = vdwg.mxu0
    %1996 = vmatpush.msra.mxu0 %v868
    %1997 = vmatpush.msra.mxu0 %v858
    %1998 = vmatpush.msra.mxu0 %v848
    %1999 = vmatpush.msra.mxu0 %v838
    %2000 = vmatpush.msra.mxu0 %v828
    %2001 = vmatpush.msra.mxu0 %v818
    %2002 = vmatpush.msra.mxu0 %v808
    %2003 = vmatpush.msra.mxu0 %v798
    %2004 = vmatpush.msra.mxu0 %v788
    %2005 = vmatpush.msra.mxu0 %v778
    %2006 = vmatpush.msra.mxu0 %v768
    %2007 = vmatpush.msra.mxu0 %v758
    %2008 = vmatpush.msra.mxu0 %v748
    %2009 = vmatpush.msra.mxu0 %v738
    %2010 = vmatpush.msra.mxu0 %v728
    %2011 = vmatpush.msra.mxu0 %v718
    %2012 = vmatmul.f32.gmra.mxu0 %v63
    %v2013 = vpop.f32.mrf.mxu0
    %v2014 = vadd.f32 %v1991, %v2013
    %2015 = vmatmul.f32.gmra.mxu0 %v68
    %v2016 = vpop.f32.mrf.mxu0
    %v2017 = vadd.f32 %v1994, %v2016
    %2018 = vdwg.mxu0
    %v2019 = vsub.f32 %v979, %v1557
    %v2020 = vsub.f32 %v1094, %v1672
    %v2021 = vsub.f32 %v1209, %v1787
    %v2022 = vsub.f32 %v1324, %v1902
    %v2023 = vsub.f32 %v1439, %v2017
    %v2024 = vadd.f32 %v1554, %v982
    %v2025 = vadd.f32 %v1669, %v1097
    %v2026 = vadd.f32 %v1784, %v1212
    %v2027 = vadd.f32 %v1899, %v1327
    %v2028 = vadd.f32 %v2014, %v1442
    %s2029 = scalar_lea.vmem [#allocation4], 6400
    %v2030 = vld [vmem:[%s2029] sm:$0xff]
    %v2031 = vld [vmem:[%s2029 + $0x8] sm:$0xff]
    %v2032 = vld [vmem:[%s2029 + $0x10] sm:$0xff]
    %v2033 = vld [vmem:[%s2029 + $0x18] sm:$0xff]
    %v2034 = vld [vmem:[%s2029 + $0x20] sm:$0xff]
    %v2035 = vld [vmem:[%s2029 + $0x28] sm:$0xff]
    %v2036 = vld [vmem:[%s2029 + $0x30] sm:$0xff]
    %v2037 = vld [vmem:[%s2029 + $0x38] sm:$0xff]
    %v2038 = vld [vmem:[%s2029 + $0x40] sm:$0xff]
    %v2039 = vld [vmem:[%s2029 + $0x48] sm:$0xff]
    %v2040 = vld [vmem:[%s2029 + $0x50] sm:$0xff]
    %v2041 = vld [vmem:[%s2029 + $0x58] sm:$0xff]
    %v2042 = vld [vmem:[%s2029 + $0x60] sm:$0xff]
    %v2043 = vld [vmem:[%s2029 + $0x68] sm:$0xff]
    %v2044 = vld [vmem:[%s2029 + $0x70] sm:$0xff]
    %v2045 = vld [vmem:[%s2029 + $0x78] sm:$0xff]
    %v2046 = vld [vmem:[%s2029 + $0x80] sm:$0xff]
    %v2047 = vld [vmem:[%s2029 + $0x88] sm:$0xff]
    %v2048 = vld [vmem:[%s2029 + $0x90] sm:$0xff]
    %v2049 = vld [vmem:[%s2029 + $0x98] sm:$0xff]
    %v2050 = vld [vmem:[%s2029 + $0xa0] sm:$0xff]
    %v2051 = vld [vmem:[%s2029 + $0xa8] sm:$0xff]
    %v2052 = vld [vmem:[%s2029 + $0xb0] sm:$0xff]
    %v2053 = vld [vmem:[%s2029 + $0xb8] sm:$0xff]
    %v2054 = vld [vmem:[%s2029 + $0xc0] sm:$0xff]
    %v2055 = vld [vmem:[%s2029 + $0xc8] sm:$0xff]
    %v2056 = vld [vmem:[%s2029 + $0xd0] sm:$0xff]
    %v2057 = vld [vmem:[%s2029 + $0xd8] sm:$0xff]
    %v2058 = vld [vmem:[%s2029 + $0xe0] sm:$0xff]
    %v2059 = vld [vmem:[%s2029 + $0xe8] sm:$0xff]
    %v2060 = vld [vmem:[%s2029 + $0xf0] sm:$0xff]
    %v2061 = vld [vmem:[%s2029 + $0xf8] sm:$0xff]
    %v2062 = vld [vmem:[%s2029 + $0x100] sm:$0xff]
    %v2063 = vld [vmem:[%s2029 + $0x108] sm:$0xff]
    %v2064 = vld [vmem:[%s2029 + $0x110] sm:$0xff]
    %v2065 = vld [vmem:[%s2029 + $0x118] sm:$0xff]
    %v2066 = vld [vmem:[%s2029 + $0x120] sm:$0xff]
    %v2067 = vld [vmem:[%s2029 + $0x128] sm:$0xff]
    %v2068 = vld [vmem:[%s2029 + $0x130] sm:$0xff]
    %v2069 = vld [vmem:[%s2029 + $0x138] sm:$0xff]
    %v2070 = vld [vmem:[%s2029 + $0x140] sm:$0xff]
    %v2071 = vld [vmem:[%s2029 + $0x148] sm:$0xff]
    %v2072 = vld [vmem:[%s2029 + $0x150] sm:$0xff]
    %v2073 = vld [vmem:[%s2029 + $0x158] sm:$0xff]
    %v2074 = vld [vmem:[%s2029 + $0x160] sm:$0xff]
    %v2075 = vld [vmem:[%s2029 + $0x168] sm:$0xff]
    %v2076 = vld [vmem:[%s2029 + $0x170] sm:$0xff]
    %v2077 = vld [vmem:[%s2029 + $0x178] sm:$0xff]
    %v2078 = vld [vmem:[%s2029 + $0x180] sm:$0xff]
    %v2079 = vld [vmem:[%s2029 + $0x188] sm:$0xff]
    %v2080 = vld [vmem:[%s2029 + $0x190] sm:$0xff]
    %v2081 = vld [vmem:[%s2029 + $0x198] sm:$0xff]
    %v2082 = vld [vmem:[%s2029 + $0x1a0] sm:$0xff]
    %v2083 = vld [vmem:[%s2029 + $0x1a8] sm:$0xff]
    %v2084 = vld [vmem:[%s2029 + $0x1b0] sm:$0xff]
    %v2085 = vld [vmem:[%s2029 + $0x1b8] sm:$0xff]
    %v2086 = vld [vmem:[%s2029 + $0x1c0] sm:$0xff]
    %v2087 = vld [vmem:[%s2029 + $0x1c8] sm:$0xff]
    %v2088 = vld [vmem:[%s2029 + $0x1d0] sm:$0xff]
    %v2089 = vld [vmem:[%s2029 + $0x1d8] sm:$0xff]
    %v2090 = vld [vmem:[%s2029 + $0x1e0] sm:$0xff]
    %v2091 = vld [vmem:[%s2029 + $0x1e8] sm:$0xff]
    %v2092 = vld [vmem:[%s2029 + $0x1f0] sm:$0xff]
    %v2093 = vld [vmem:[%s2029 + $0x1f8] sm:$0xff]
    %v2094 = vld [vmem:[%s2029 + $0x200] sm:$0xff]
    %v2095 = vld [vmem:[%s2029 + $0x208] sm:$0xff]
    %v2096 = vld [vmem:[%s2029 + $0x210] sm:$0xff]
    %v2097 = vld [vmem:[%s2029 + $0x218] sm:$0xff]
    %v2098 = vld [vmem:[%s2029 + $0x220] sm:$0xff]
    %v2099 = vld [vmem:[%s2029 + $0x228] sm:$0xff]
    %v2100 = vld [vmem:[%s2029 + $0x230] sm:$0xff]
    %v2101 = vld [vmem:[%s2029 + $0x238] sm:$0xff]
    %v2102 = vld [vmem:[%s2029 + $0x240] sm:$0xff]
    %v2103 = vld [vmem:[%s2029 + $0x248] sm:$0xff]
    %v2104 = vld [vmem:[%s2029 + $0x250] sm:$0xff]
    %v2105 = vld [vmem:[%s2029 + $0x258] sm:$0xff]
    %v2106 = vld [vmem:[%s2029 + $0x260] sm:$0xff]
    %v2107 = vld [vmem:[%s2029 + $0x268] sm:$0xff]
    %v2108 = vld [vmem:[%s2029 + $0x270] sm:$0xff]
    %v2109 = vld [vmem:[%s2029 + $0x278] sm:$0xff]
    %v2110 = vld [vmem:[%s2029 + $0x280] sm:$0xff]
    %v2111 = vld [vmem:[%s2029 + $0x288] sm:$0xff]
    %v2112 = vld [vmem:[%s2029 + $0x290] sm:$0xff]
    %v2113 = vld [vmem:[%s2029 + $0x298] sm:$0xff]
    %v2114 = vld [vmem:[%s2029 + $0x2a0] sm:$0xff]
    %v2115 = vld [vmem:[%s2029 + $0x2a8] sm:$0xff]
    %v2116 = vld [vmem:[%s2029 + $0x2b0] sm:$0xff]
    %v2117 = vld [vmem:[%s2029 + $0x2b8] sm:$0xff]
    %v2118 = vld [vmem:[%s2029 + $0x2c0] sm:$0xff]
    %v2119 = vld [vmem:[%s2029 + $0x2c8] sm:$0xff]
    %v2120 = vld [vmem:[%s2029 + $0x2d0] sm:$0xff]
    %v2121 = vld [vmem:[%s2029 + $0x2d8] sm:$0xff]
    %v2122 = vld [vmem:[%s2029 + $0x2e0] sm:$0xff]
    %v2123 = vld [vmem:[%s2029 + $0x2e8] sm:$0xff]
    %v2124 = vld [vmem:[%s2029 + $0x2f0] sm:$0xff]
    %v2125 = vld [vmem:[%s2029 + $0x2f8] sm:$0xff]
    %v2126 = vld [vmem:[%s2029 + $0x300] sm:$0xff]
    %v2127 = vld [vmem:[%s2029 + $0x308] sm:$0xff]
    %v2128 = vld [vmem:[%s2029 + $0x310] sm:$0xff]
    %v2129 = vld [vmem:[%s2029 + $0x318] sm:$0xff]
    %v2130 = vld [vmem:[%s2029 + $0x320] sm:$0xff]
    %v2131 = vld [vmem:[%s2029 + $0x328] sm:$0xff]
    %v2132 = vld [vmem:[%s2029 + $0x330] sm:$0xff]
    %v2133 = vld [vmem:[%s2029 + $0x338] sm:$0xff]
    %v2134 = vld [vmem:[%s2029 + $0x340] sm:$0xff]
    %v2135 = vld [vmem:[%s2029 + $0x348] sm:$0xff]
    %v2136 = vld [vmem:[%s2029 + $0x350] sm:$0xff]
    %v2137 = vld [vmem:[%s2029 + $0x358] sm:$0xff]
    %v2138 = vld [vmem:[%s2029 + $0x360] sm:$0xff]
    %v2139 = vld [vmem:[%s2029 + $0x368] sm:$0xff]
    %v2140 = vld [vmem:[%s2029 + $0x370] sm:$0xff]
    %v2141 = vld [vmem:[%s2029 + $0x378] sm:$0xff]
    %v2142 = vld [vmem:[%s2029 + $0x380] sm:$0xff]
    %v2143 = vld [vmem:[%s2029 + $0x388] sm:$0xff]
    %v2144 = vld [vmem:[%s2029 + $0x390] sm:$0xff]
    %v2145 = vld [vmem:[%s2029 + $0x398] sm:$0xff]
    %v2146 = vld [vmem:[%s2029 + $0x3a0] sm:$0xff]
    %v2147 = vld [vmem:[%s2029 + $0x3a8] sm:$0xff]
    %v2148 = vld [vmem:[%s2029 + $0x3b0] sm:$0xff]
    %v2149 = vld [vmem:[%s2029 + $0x3b8] sm:$0xff]
    %v2150 = vld [vmem:[%s2029 + $0x3c0] sm:$0xff]
    %v2151 = vld [vmem:[%s2029 + $0x3c8] sm:$0xff]
    %v2152 = vld [vmem:[%s2029 + $0x3d0] sm:$0xff]
    %v2153 = vld [vmem:[%s2029 + $0x3d8] sm:$0xff]
    %v2154 = vld [vmem:[%s2029 + $0x3e0] sm:$0xff]
    %v2155 = vld [vmem:[%s2029 + $0x3e8] sm:$0xff]
    %v2156 = vld [vmem:[%s2029 + $0x3f0] sm:$0xff]
    %v2157 = vld [vmem:[%s2029 + $0x3f8] sm:$0xff]
    %v2158 = vld [vmem:[%s2029 + $0x400] sm:$0xff]
    %v2159 = vld [vmem:[%s2029 + $0x408] sm:$0xff]
    %v2160 = vld [vmem:[%s2029 + $0x410] sm:$0xff]
    %v2161 = vld [vmem:[%s2029 + $0x418] sm:$0xff]
    %v2162 = vld [vmem:[%s2029 + $0x420] sm:$0xff]
    %v2163 = vld [vmem:[%s2029 + $0x428] sm:$0xff]
    %v2164 = vld [vmem:[%s2029 + $0x430] sm:$0xff]
    %v2165 = vld [vmem:[%s2029 + $0x438] sm:$0xff]
    %v2166 = vld [vmem:[%s2029 + $0x440] sm:$0xff]
    %v2167 = vld [vmem:[%s2029 + $0x448] sm:$0xff]
    %v2168 = vld [vmem:[%s2029 + $0x450] sm:$0xff]
    %v2169 = vld [vmem:[%s2029 + $0x458] sm:$0xff]
    %v2170 = vld [vmem:[%s2029 + $0x460] sm:$0xff]
    %v2171 = vld [vmem:[%s2029 + $0x468] sm:$0xff]
    %v2172 = vld [vmem:[%s2029 + $0x470] sm:$0xff]
    %v2173 = vld [vmem:[%s2029 + $0x478] sm:$0xff]
    %v2174 = vld [vmem:[%s2029 + $0x480] sm:$0xff]
    %v2175 = vld [vmem:[%s2029 + $0x488] sm:$0xff]
    %v2176 = vld [vmem:[%s2029 + $0x490] sm:$0xff]
    %v2177 = vld [vmem:[%s2029 + $0x498] sm:$0xff]
    %v2178 = vld [vmem:[%s2029 + $0x4a0] sm:$0xff]
    %v2179 = vld [vmem:[%s2029 + $0x4a8] sm:$0xff]
    %v2180 = vld [vmem:[%s2029 + $0x4b0] sm:$0xff]
    %v2181 = vld [vmem:[%s2029 + $0x4b8] sm:$0xff]
    %v2182 = vld [vmem:[%s2029 + $0x4c0] sm:$0xff]
    %v2183 = vld [vmem:[%s2029 + $0x4c8] sm:$0xff]
    %v2184 = vld [vmem:[%s2029 + $0x4d0] sm:$0xff]
    %v2185 = vld [vmem:[%s2029 + $0x4d8] sm:$0xff]
    %v2186 = vld [vmem:[%s2029 + $0x4e0] sm:$0xff]
    %v2187 = vld [vmem:[%s2029 + $0x4e8] sm:$0xff]
    %v2188 = vld [vmem:[%s2029 + $0x4f0] sm:$0xff]
    %v2189 = vld [vmem:[%s2029 + $0x4f8] sm:$0xff]
    %v2190 = vld [vmem:[%s2029 + $0x500] sm:$0xff]
    %v2191 = vld [vmem:[%s2029 + $0x508] sm:$0xff]
    %v2192 = vld [vmem:[%s2029 + $0x510] sm:$0xff]
    %v2193 = vld [vmem:[%s2029 + $0x518] sm:$0xff]
    %v2194 = vld [vmem:[%s2029 + $0x520] sm:$0xff]
    %v2195 = vld [vmem:[%s2029 + $0x528] sm:$0xff]
    %v2196 = vld [vmem:[%s2029 + $0x530] sm:$0xff]
    %v2197 = vld [vmem:[%s2029 + $0x538] sm:$0xff]
    %v2198 = vld [vmem:[%s2029 + $0x540] sm:$0xff]
    %v2199 = vld [vmem:[%s2029 + $0x548] sm:$0xff]
    %v2200 = vld [vmem:[%s2029 + $0x550] sm:$0xff]
    %v2201 = vld [vmem:[%s2029 + $0x558] sm:$0xff]
    %v2202 = vld [vmem:[%s2029 + $0x560] sm:$0xff]
    %v2203 = vld [vmem:[%s2029 + $0x568] sm:$0xff]
    %v2204 = vld [vmem:[%s2029 + $0x570] sm:$0xff]
    %v2205 = vld [vmem:[%s2029 + $0x578] sm:$0xff]
    %v2206 = vld [vmem:[%s2029 + $0x580] sm:$0xff]
    %v2207 = vld [vmem:[%s2029 + $0x588] sm:$0xff]
    %v2208 = vld [vmem:[%s2029 + $0x590] sm:$0xff]
    %v2209 = vld [vmem:[%s2029 + $0x598] sm:$0xff]
    %v2210 = vld [vmem:[%s2029 + $0x5a0] sm:$0xff]
    %v2211 = vld [vmem:[%s2029 + $0x5a8] sm:$0xff]
    %v2212 = vld [vmem:[%s2029 + $0x5b0] sm:$0xff]
    %v2213 = vld [vmem:[%s2029 + $0x5b8] sm:$0xff]
    %v2214 = vld [vmem:[%s2029 + $0x5c0] sm:$0xff]
    %v2215 = vld [vmem:[%s2029 + $0x5c8] sm:$0xff]
    %v2216 = vld [vmem:[%s2029 + $0x5d0] sm:$0xff]
    %v2217 = vld [vmem:[%s2029 + $0x5d8] sm:$0xff]
    %v2218 = vld [vmem:[%s2029 + $0x5e0] sm:$0xff]
    %v2219 = vld [vmem:[%s2029 + $0x5e8] sm:$0xff]
    %v2220 = vld [vmem:[%s2029 + $0x5f0] sm:$0xff]
    %v2221 = vld [vmem:[%s2029 + $0x5f8] sm:$0xff]
    %v2222 = vld [vmem:[%s2029 + $0x600] sm:$0xff]
    %v2223 = vld [vmem:[%s2029 + $0x608] sm:$0xff]
    %v2224 = vld [vmem:[%s2029 + $0x610] sm:$0xff]
    %v2225 = vld [vmem:[%s2029 + $0x618] sm:$0xff]
    %v2226 = vld [vmem:[%s2029 + $0x620] sm:$0xff]
    %v2227 = vld [vmem:[%s2029 + $0x628] sm:$0xff]
    %v2228 = vld [vmem:[%s2029 + $0x630] sm:$0xff]
    %v2229 = vld [vmem:[%s2029 + $0x638] sm:$0xff]
    %v2230 = vld [vmem:[%s2029 + $0x640] sm:$0xff]
    %v2231 = vld [vmem:[%s2029 + $0x648] sm:$0xff]
    %v2232 = vld [vmem:[%s2029 + $0x650] sm:$0xff]
    %v2233 = vld [vmem:[%s2029 + $0x658] sm:$0xff]
    %v2234 = vld [vmem:[%s2029 + $0x660] sm:$0xff]
    %v2235 = vld [vmem:[%s2029 + $0x668] sm:$0xff]
    %v2236 = vld [vmem:[%s2029 + $0x670] sm:$0xff]
    %v2237 = vld [vmem:[%s2029 + $0x678] sm:$0xff]
    %v2238 = vld [vmem:[%s2029 + $0x680] sm:$0xff]
    %v2239 = vld [vmem:[%s2029 + $0x688] sm:$0xff]
    %v2240 = vld [vmem:[%s2029 + $0x690] sm:$0xff]
    %v2241 = vld [vmem:[%s2029 + $0x698] sm:$0xff]
    %v2242 = vld [vmem:[%s2029 + $0x6a0] sm:$0xff]
    %v2243 = vld [vmem:[%s2029 + $0x6a8] sm:$0xff]
    %v2244 = vld [vmem:[%s2029 + $0x6b0] sm:$0xff]
    %v2245 = vld [vmem:[%s2029 + $0x6b8] sm:$0xff]
    %v2246 = vld [vmem:[%s2029 + $0x6c0] sm:$0xff]
    %v2247 = vld [vmem:[%s2029 + $0x6c8] sm:$0xff]
    %v2248 = vld [vmem:[%s2029 + $0x6d0] sm:$0xff]
    %v2249 = vld [vmem:[%s2029 + $0x6d8] sm:$0xff]
    %v2250 = vld [vmem:[%s2029 + $0x6e0] sm:$0xff]
    %v2251 = vld [vmem:[%s2029 + $0x6e8] sm:$0xff]
    %v2252 = vld [vmem:[%s2029 + $0x6f0] sm:$0xff]
    %v2253 = vld [vmem:[%s2029 + $0x6f8] sm:$0xff]
    %v2254 = vld [vmem:[%s2029 + $0x700] sm:$0xff]
    %v2255 = vld [vmem:[%s2029 + $0x708] sm:$0xff]
    %v2256 = vld [vmem:[%s2029 + $0x710] sm:$0xff]
    %v2257 = vld [vmem:[%s2029 + $0x718] sm:$0xff]
    %v2258 = vld [vmem:[%s2029 + $0x720] sm:$0xff]
    %v2259 = vld [vmem:[%s2029 + $0x728] sm:$0xff]
    %v2260 = vld [vmem:[%s2029 + $0x730] sm:$0xff]
    %v2261 = vld [vmem:[%s2029 + $0x738] sm:$0xff]
    %v2262 = vld [vmem:[%s2029 + $0x740] sm:$0xff]
    %v2263 = vld [vmem:[%s2029 + $0x748] sm:$0xff]
    %v2264 = vld [vmem:[%s2029 + $0x750] sm:$0xff]
    %v2265 = vld [vmem:[%s2029 + $0x758] sm:$0xff]
    %v2266 = vld [vmem:[%s2029 + $0x760] sm:$0xff]
    %v2267 = vld [vmem:[%s2029 + $0x768] sm:$0xff]
    %v2268 = vld [vmem:[%s2029 + $0x770] sm:$0xff]
    %v2269 = vld [vmem:[%s2029 + $0x778] sm:$0xff]
    %v2270 = vld [vmem:[%s2029 + $0x780] sm:$0xff]
    %v2271 = vld [vmem:[%s2029 + $0x788] sm:$0xff]
    %v2272 = vld [vmem:[%s2029 + $0x790] sm:$0xff]
    %v2273 = vld [vmem:[%s2029 + $0x798] sm:$0xff]
    %v2274 = vld [vmem:[%s2029 + $0x7a0] sm:$0xff]
    %v2275 = vld [vmem:[%s2029 + $0x7a8] sm:$0xff]
    %v2276 = vld [vmem:[%s2029 + $0x7b0] sm:$0xff]
    %v2277 = vld [vmem:[%s2029 + $0x7b8] sm:$0xff]
    %v2278 = vld [vmem:[%s2029 + $0x7c0] sm:$0xff]
    %v2279 = vld [vmem:[%s2029 + $0x7c8] sm:$0xff]
    %v2280 = vld [vmem:[%s2029 + $0x7d0] sm:$0xff]
    %v2281 = vld [vmem:[%s2029 + $0x7d8] sm:$0xff]
    %v2282 = vld [vmem:[%s2029 + $0x7e0] sm:$0xff]
    %v2283 = vld [vmem:[%s2029 + $0x7e8] sm:$0xff]
    %v2284 = vld [vmem:[%s2029 + $0x7f0] sm:$0xff]
    %v2285 = vld [vmem:[%s2029 + $0x7f8] sm:$0xff]
    %v2286 = vld [vmem:[%s2029 + $0x800] sm:$0xff]
    %v2287 = vld [vmem:[%s2029 + $0x808] sm:$0xff]
    %v2288 = vld [vmem:[%s2029 + $0x810] sm:$0xff]
    %v2289 = vld [vmem:[%s2029 + $0x818] sm:$0xff]
    %v2290 = vld [vmem:[%s2029 + $0x820] sm:$0xff]
    %v2291 = vld [vmem:[%s2029 + $0x828] sm:$0xff]
    %v2292 = vld [vmem:[%s2029 + $0x830] sm:$0xff]
    %v2293 = vld [vmem:[%s2029 + $0x838] sm:$0xff]
    %v2294 = vld [vmem:[%s2029 + $0x840] sm:$0xff]
    %v2295 = vld [vmem:[%s2029 + $0x848] sm:$0xff]
    %v2296 = vld [vmem:[%s2029 + $0x850] sm:$0xff]
    %v2297 = vld [vmem:[%s2029 + $0x858] sm:$0xff]
    %v2298 = vld [vmem:[%s2029 + $0x860] sm:$0xff]
    %v2299 = vld [vmem:[%s2029 + $0x868] sm:$0xff]
    %v2300 = vld [vmem:[%s2029 + $0x870] sm:$0xff]
    %v2301 = vld [vmem:[%s2029 + $0x878] sm:$0xff]
    %v2302 = vld [vmem:[%s2029 + $0x880] sm:$0xff]
    %v2303 = vld [vmem:[%s2029 + $0x888] sm:$0xff]
    %v2304 = vld [vmem:[%s2029 + $0x890] sm:$0xff]
    %v2305 = vld [vmem:[%s2029 + $0x898] sm:$0xff]
    %v2306 = vld [vmem:[%s2029 + $0x8a0] sm:$0xff]
    %v2307 = vld [vmem:[%s2029 + $0x8a8] sm:$0xff]
    %v2308 = vld [vmem:[%s2029 + $0x8b0] sm:$0xff]
    %v2309 = vld [vmem:[%s2029 + $0x8b8] sm:$0xff]
    %v2310 = vld [vmem:[%s2029 + $0x8c0] sm:$0xff]
    %v2311 = vld [vmem:[%s2029 + $0x8c8] sm:$0xff]
    %v2312 = vld [vmem:[%s2029 + $0x8d0] sm:$0xff]
    %v2313 = vld [vmem:[%s2029 + $0x8d8] sm:$0xff]
    %v2314 = vld [vmem:[%s2029 + $0x8e0] sm:$0xff]
    %v2315 = vld [vmem:[%s2029 + $0x8e8] sm:$0xff]
    %v2316 = vld [vmem:[%s2029 + $0x8f0] sm:$0xff]
    %v2317 = vld [vmem:[%s2029 + $0x8f8] sm:$0xff]
    %v2318 = vld [vmem:[%s2029 + $0x900] sm:$0xff]
    %v2319 = vld [vmem:[%s2029 + $0x908] sm:$0xff]
    %v2320 = vld [vmem:[%s2029 + $0x910] sm:$0xff]
    %v2321 = vld [vmem:[%s2029 + $0x918] sm:$0xff]
    %v2322 = vld [vmem:[%s2029 + $0x920] sm:$0xff]
    %v2323 = vld [vmem:[%s2029 + $0x928] sm:$0xff]
    %v2324 = vld [vmem:[%s2029 + $0x930] sm:$0xff]
    %v2325 = vld [vmem:[%s2029 + $0x938] sm:$0xff]
    %v2326 = vld [vmem:[%s2029 + $0x940] sm:$0xff]
    %v2327 = vld [vmem:[%s2029 + $0x948] sm:$0xff]
    %v2328 = vld [vmem:[%s2029 + $0x950] sm:$0xff]
    %v2329 = vld [vmem:[%s2029 + $0x958] sm:$0xff]
    %v2330 = vld [vmem:[%s2029 + $0x960] sm:$0xff]
    %v2331 = vld [vmem:[%s2029 + $0x968] sm:$0xff]
    %v2332 = vld [vmem:[%s2029 + $0x970] sm:$0xff]
    %v2333 = vld [vmem:[%s2029 + $0x978] sm:$0xff]
    %v2334 = vld [vmem:[%s2029 + $0x980] sm:$0xff]
    %v2335 = vld [vmem:[%s2029 + $0x988] sm:$0xff]
    %v2336 = vld [vmem:[%s2029 + $0x990] sm:$0xff]
    %v2337 = vld [vmem:[%s2029 + $0x998] sm:$0xff]
    %v2338 = vld [vmem:[%s2029 + $0x9a0] sm:$0xff]
    %v2339 = vld [vmem:[%s2029 + $0x9a8] sm:$0xff]
    %v2340 = vld [vmem:[%s2029 + $0x9b0] sm:$0xff]
    %v2341 = vld [vmem:[%s2029 + $0x9b8] sm:$0xff]
    %v2342 = vld [vmem:[%s2029 + $0x9c0] sm:$0xff]
    %v2343 = vld [vmem:[%s2029 + $0x9c8] sm:$0xff]
    %v2344 = vld [vmem:[%s2029 + $0x9d0] sm:$0xff]
    %v2345 = vld [vmem:[%s2029 + $0x9d8] sm:$0xff]
    %v2346 = vld [vmem:[%s2029 + $0x9e0] sm:$0xff]
    %v2347 = vld [vmem:[%s2029 + $0x9e8] sm:$0xff]
    %v2348 = vld [vmem:[%s2029 + $0x9f0] sm:$0xff]
    %v2349 = vld [vmem:[%s2029 + $0x9f8] sm:$0xff]
    %v2350 = vld [vmem:[%s2029 + $0xa00] sm:$0xff]
    %v2351 = vld [vmem:[%s2029 + $0xa08] sm:$0xff]
    %v2352 = vld [vmem:[%s2029 + $0xa10] sm:$0xff]
    %v2353 = vld [vmem:[%s2029 + $0xa18] sm:$0xff]
    %v2354 = vld [vmem:[%s2029 + $0xa20] sm:$0xff]
    %v2355 = vld [vmem:[%s2029 + $0xa28] sm:$0xff]
    %v2356 = vld [vmem:[%s2029 + $0xa30] sm:$0xff]
    %v2357 = vld [vmem:[%s2029 + $0xa38] sm:$0xff]
    %v2358 = vld [vmem:[%s2029 + $0xa40] sm:$0xff]
    %v2359 = vld [vmem:[%s2029 + $0xa48] sm:$0xff]
    %v2360 = vld [vmem:[%s2029 + $0xa50] sm:$0xff]
    %v2361 = vld [vmem:[%s2029 + $0xa58] sm:$0xff]
    %v2362 = vld [vmem:[%s2029 + $0xa60] sm:$0xff]
    %v2363 = vld [vmem:[%s2029 + $0xa68] sm:$0xff]
    %v2364 = vld [vmem:[%s2029 + $0xa70] sm:$0xff]
    %v2365 = vld [vmem:[%s2029 + $0xa78] sm:$0xff]
    %v2366 = vld [vmem:[%s2029 + $0xa80] sm:$0xff]
    %v2367 = vld [vmem:[%s2029 + $0xa88] sm:$0xff]
    %v2368 = vld [vmem:[%s2029 + $0xa90] sm:$0xff]
    %v2369 = vld [vmem:[%s2029 + $0xa98] sm:$0xff]
    %v2370 = vld [vmem:[%s2029 + $0xaa0] sm:$0xff]
    %v2371 = vld [vmem:[%s2029 + $0xaa8] sm:$0xff]
    %v2372 = vld [vmem:[%s2029 + $0xab0] sm:$0xff]
    %v2373 = vld [vmem:[%s2029 + $0xab8] sm:$0xff]
    %v2374 = vld [vmem:[%s2029 + $0xac0] sm:$0xff]
    %v2375 = vld [vmem:[%s2029 + $0xac8] sm:$0xff]
    %v2376 = vld [vmem:[%s2029 + $0xad0] sm:$0xff]
    %v2377 = vld [vmem:[%s2029 + $0xad8] sm:$0xff]
    %v2378 = vld [vmem:[%s2029 + $0xae0] sm:$0xff]
    %v2379 = vld [vmem:[%s2029 + $0xae8] sm:$0xff]
    %v2380 = vld [vmem:[%s2029 + $0xaf0] sm:$0xff]
    %v2381 = vld [vmem:[%s2029 + $0xaf8] sm:$0xff]
    %v2382 = vld [vmem:[%s2029 + $0xb00] sm:$0xff]
    %v2383 = vld [vmem:[%s2029 + $0xb08] sm:$0xff]
    %v2384 = vld [vmem:[%s2029 + $0xb10] sm:$0xff]
    %v2385 = vld [vmem:[%s2029 + $0xb18] sm:$0xff]
    %v2386 = vld [vmem:[%s2029 + $0xb20] sm:$0xff]
    %v2387 = vld [vmem:[%s2029 + $0xb28] sm:$0xff]
    %v2388 = vld [vmem:[%s2029 + $0xb30] sm:$0xff]
    %v2389 = vld [vmem:[%s2029 + $0xb38] sm:$0xff]
    %v2390 = vld [vmem:[%s2029 + $0xb40] sm:$0xff]
    %v2391 = vld [vmem:[%s2029 + $0xb48] sm:$0xff]
    %v2392 = vld [vmem:[%s2029 + $0xb50] sm:$0xff]
    %v2393 = vld [vmem:[%s2029 + $0xb58] sm:$0xff]
    %v2394 = vld [vmem:[%s2029 + $0xb60] sm:$0xff]
    %v2395 = vld [vmem:[%s2029 + $0xb68] sm:$0xff]
    %v2396 = vld [vmem:[%s2029 + $0xb70] sm:$0xff]
    %v2397 = vld [vmem:[%s2029 + $0xb78] sm:$0xff]
    %v2398 = vld [vmem:[%s2029 + $0xb80] sm:$0xff]
    %v2399 = vld [vmem:[%s2029 + $0xb88] sm:$0xff]
    %v2400 = vld [vmem:[%s2029 + $0xb90] sm:$0xff]
    %v2401 = vld [vmem:[%s2029 + $0xb98] sm:$0xff]
    %v2402 = vld [vmem:[%s2029 + $0xba0] sm:$0xff]
    %v2403 = vld [vmem:[%s2029 + $0xba8] sm:$0xff]
    %v2404 = vld [vmem:[%s2029 + $0xbb0] sm:$0xff]
    %v2405 = vld [vmem:[%s2029 + $0xbb8] sm:$0xff]
    %v2406 = vld [vmem:[%s2029 + $0xbc0] sm:$0xff]
    %v2407 = vld [vmem:[%s2029 + $0xbc8] sm:$0xff]
    %v2408 = vld [vmem:[%s2029 + $0xbd0] sm:$0xff]
    %v2409 = vld [vmem:[%s2029 + $0xbd8] sm:$0xff]
    %v2410 = vld [vmem:[%s2029 + $0xbe0] sm:$0xff]
    %v2411 = vld [vmem:[%s2029 + $0xbe8] sm:$0xff]
    %v2412 = vld [vmem:[%s2029 + $0xbf0] sm:$0xff]
    %v2413 = vld [vmem:[%s2029 + $0xbf8] sm:$0xff]
    %v2414 = vld [vmem:[%s2029 + $0xc00] sm:$0xff]
    %v2415 = vld [vmem:[%s2029 + $0xc08] sm:$0xff]
    %v2416 = vld [vmem:[%s2029 + $0xc10] sm:$0xff]
    %v2417 = vld [vmem:[%s2029 + $0xc18] sm:$0xff]
    %v2418 = vld [vmem:[%s2029 + $0xc20] sm:$0xff]
    %v2419 = vld [vmem:[%s2029 + $0xc28] sm:$0xff]
    %v2420 = vld [vmem:[%s2029 + $0xc30] sm:$0xff]
    %v2421 = vld [vmem:[%s2029 + $0xc38] sm:$0xff]
    %v2422 = vld [vmem:[%s2029 + $0xc40] sm:$0xff]
    %v2423 = vld [vmem:[%s2029 + $0xc48] sm:$0xff]
    %v2424 = vld [vmem:[%s2029 + $0xc50] sm:$0xff]
    %v2425 = vld [vmem:[%s2029 + $0xc58] sm:$0xff]
    %v2426 = vld [vmem:[%s2029 + $0xc60] sm:$0xff]
    %v2427 = vld [vmem:[%s2029 + $0xc68] sm:$0xff]
    %v2428 = vld [vmem:[%s2029 + $0xc70] sm:$0xff]
    %v2429 = vld [vmem:[%s2029 + $0xc78] sm:$0xff]
    %v2430 = vld [vmem:[%s2029 + $0xc80] sm:$0xff]
    %v2431 = vld [vmem:[%s2029 + $0xc88] sm:$0xff]
    %v2432 = vld [vmem:[%s2029 + $0xc90] sm:$0xff]
    %v2433 = vld [vmem:[%s2029 + $0xc98] sm:$0xff]
    %v2434 = vld [vmem:[%s2029 + $0xca0] sm:$0xff]
    %v2435 = vld [vmem:[%s2029 + $0xca8] sm:$0xff]
    %v2436 = vld [vmem:[%s2029 + $0xcb0] sm:$0xff]
    %v2437 = vld [vmem:[%s2029 + $0xcb8] sm:$0xff]
    %v2438 = vld [vmem:[%s2029 + $0xcc0] sm:$0xff]
    %v2439 = vld [vmem:[%s2029 + $0xcc8] sm:$0xff]
    %v2440 = vld [vmem:[%s2029 + $0xcd0] sm:$0xff]
    %v2441 = vld [vmem:[%s2029 + $0xcd8] sm:$0xff]
    %v2442 = vld [vmem:[%s2029 + $0xce0] sm:$0xff]
    %v2443 = vld [vmem:[%s2029 + $0xce8] sm:$0xff]
    %v2444 = vld [vmem:[%s2029 + $0xcf0] sm:$0xff]
    %v2445 = vld [vmem:[%s2029 + $0xcf8] sm:$0xff]
    %v2446 = vld [vmem:[%s2029 + $0xd00] sm:$0xff]
    %v2447 = vld [vmem:[%s2029 + $0xd08] sm:$0xff]
    %v2448 = vld [vmem:[%s2029 + $0xd10] sm:$0xff]
    %v2449 = vld [vmem:[%s2029 + $0xd18] sm:$0xff]
    %v2450 = vld [vmem:[%s2029 + $0xd20] sm:$0xff]
    %v2451 = vld [vmem:[%s2029 + $0xd28] sm:$0xff]
    %v2452 = vld [vmem:[%s2029 + $0xd30] sm:$0xff]
    %v2453 = vld [vmem:[%s2029 + $0xd38] sm:$0xff]
    %v2454 = vld [vmem:[%s2029 + $0xd40] sm:$0xff]
    %v2455 = vld [vmem:[%s2029 + $0xd48] sm:$0xff]
    %v2456 = vld [vmem:[%s2029 + $0xd50] sm:$0xff]
    %v2457 = vld [vmem:[%s2029 + $0xd58] sm:$0xff]
    %v2458 = vld [vmem:[%s2029 + $0xd60] sm:$0xff]
    %v2459 = vld [vmem:[%s2029 + $0xd68] sm:$0xff]
    %v2460 = vld [vmem:[%s2029 + $0xd70] sm:$0xff]
    %v2461 = vld [vmem:[%s2029 + $0xd78] sm:$0xff]
    %v2462 = vld [vmem:[%s2029 + $0xd80] sm:$0xff]
    %v2463 = vld [vmem:[%s2029 + $0xd88] sm:$0xff]
    %v2464 = vld [vmem:[%s2029 + $0xd90] sm:$0xff]
    %v2465 = vld [vmem:[%s2029 + $0xd98] sm:$0xff]
    %v2466 = vld [vmem:[%s2029 + $0xda0] sm:$0xff]
    %v2467 = vld [vmem:[%s2029 + $0xda8] sm:$0xff]
    %v2468 = vld [vmem:[%s2029 + $0xdb0] sm:$0xff]
    %v2469 = vld [vmem:[%s2029 + $0xdb8] sm:$0xff]
    %v2470 = vld [vmem:[%s2029 + $0xdc0] sm:$0xff]
    %v2471 = vld [vmem:[%s2029 + $0xdc8] sm:$0xff]
    %v2472 = vld [vmem:[%s2029 + $0xdd0] sm:$0xff]
    %v2473 = vld [vmem:[%s2029 + $0xdd8] sm:$0xff]
    %v2474 = vld [vmem:[%s2029 + $0xde0] sm:$0xff]
    %v2475 = vld [vmem:[%s2029 + $0xde8] sm:$0xff]
    %v2476 = vld [vmem:[%s2029 + $0xdf0] sm:$0xff]
    %v2477 = vld [vmem:[%s2029 + $0xdf8] sm:$0xff]
    %v2478 = vld [vmem:[%s2029 + $0xe00] sm:$0xff]
    %v2479 = vld [vmem:[%s2029 + $0xe08] sm:$0xff]
    %v2480 = vld [vmem:[%s2029 + $0xe10] sm:$0xff]
    %v2481 = vld [vmem:[%s2029 + $0xe18] sm:$0xff]
    %v2482 = vld [vmem:[%s2029 + $0xe20] sm:$0xff]
    %v2483 = vld [vmem:[%s2029 + $0xe28] sm:$0xff]
    %v2484 = vld [vmem:[%s2029 + $0xe30] sm:$0xff]
    %v2485 = vld [vmem:[%s2029 + $0xe38] sm:$0xff]
    %v2486 = vld [vmem:[%s2029 + $0xe40] sm:$0xff]
    %v2487 = vld [vmem:[%s2029 + $0xe48] sm:$0xff]
    %v2488 = vld [vmem:[%s2029 + $0xe50] sm:$0xff]
    %v2489 = vld [vmem:[%s2029 + $0xe58] sm:$0xff]
    %v2490 = vld [vmem:[%s2029 + $0xe60] sm:$0xff]
    %v2491 = vld [vmem:[%s2029 + $0xe68] sm:$0xff]
    %v2492 = vld [vmem:[%s2029 + $0xe70] sm:$0xff]
    %v2493 = vld [vmem:[%s2029 + $0xe78] sm:$0xff]
    %v2494 = vld [vmem:[%s2029 + $0xe80] sm:$0xff]
    %v2495 = vld [vmem:[%s2029 + $0xe88] sm:$0xff]
    %v2496 = vld [vmem:[%s2029 + $0xe90] sm:$0xff]
    %v2497 = vld [vmem:[%s2029 + $0xe98] sm:$0xff]
    %v2498 = vld [vmem:[%s2029 + $0xea0] sm:$0xff]
    %v2499 = vld [vmem:[%s2029 + $0xea8] sm:$0xff]
    %v2500 = vld [vmem:[%s2029 + $0xeb0] sm:$0xff]
    %v2501 = vld [vmem:[%s2029 + $0xeb8] sm:$0xff]
    %v2502 = vld [vmem:[%s2029 + $0xec0] sm:$0xff]
    %v2503 = vld [vmem:[%s2029 + $0xec8] sm:$0xff]
    %v2504 = vld [vmem:[%s2029 + $0xed0] sm:$0xff]
    %v2505 = vld [vmem:[%s2029 + $0xed8] sm:$0xff]
    %v2506 = vld [vmem:[%s2029 + $0xee0] sm:$0xff]
    %v2507 = vld [vmem:[%s2029 + $0xee8] sm:$0xff]
    %v2508 = vld [vmem:[%s2029 + $0xef0] sm:$0xff]
    %v2509 = vld [vmem:[%s2029 + $0xef8] sm:$0xff]
    %v2510 = vld [vmem:[%s2029 + $0xf00] sm:$0xff]
    %v2511 = vld [vmem:[%s2029 + $0xf08] sm:$0xff]
    %v2512 = vld [vmem:[%s2029 + $0xf10] sm:$0xff]
    %v2513 = vld [vmem:[%s2029 + $0xf18] sm:$0xff]
    %v2514 = vld [vmem:[%s2029 + $0xf20] sm:$0xff]
    %v2515 = vld [vmem:[%s2029 + $0xf28] sm:$0xff]
    %v2516 = vld [vmem:[%s2029 + $0xf30] sm:$0xff]
    %v2517 = vld [vmem:[%s2029 + $0xf38] sm:$0xff]
    %v2518 = vld [vmem:[%s2029 + $0xf40] sm:$0xff]
    %v2519 = vld [vmem:[%s2029 + $0xf48] sm:$0xff]
    %v2520 = vld [vmem:[%s2029 + $0xf50] sm:$0xff]
    %v2521 = vld [vmem:[%s2029 + $0xf58] sm:$0xff]
    %v2522 = vld [vmem:[%s2029 + $0xf60] sm:$0xff]
    %v2523 = vld [vmem:[%s2029 + $0xf68] sm:$0xff]
    %v2524 = vld [vmem:[%s2029 + $0xf70] sm:$0xff]
    %v2525 = vld [vmem:[%s2029 + $0xf78] sm:$0xff]
    %v2526 = vld [vmem:[%s2029 + $0xf80] sm:$0xff]
    %v2527 = vld [vmem:[%s2029 + $0xf88] sm:$0xff]
    %v2528 = vld [vmem:[%s2029 + $0xf90] sm:$0xff]
    %v2529 = vld [vmem:[%s2029 + $0xf98] sm:$0xff]
    %v2530 = vld [vmem:[%s2029 + $0xfa0] sm:$0xff]
    %v2531 = vld [vmem:[%s2029 + $0xfa8] sm:$0xff]
    %v2532 = vld [vmem:[%s2029 + $0xfb0] sm:$0xff]
    %v2533 = vld [vmem:[%s2029 + $0xfb8] sm:$0xff]
    %v2534 = vld [vmem:[%s2029 + $0xfc0] sm:$0xff]
    %v2535 = vld [vmem:[%s2029 + $0xfc8] sm:$0xff]
    %v2536 = vld [vmem:[%s2029 + $0xfd0] sm:$0xff]
    %v2537 = vld [vmem:[%s2029 + $0xfd8] sm:$0xff]
    %v2538 = vld [vmem:[%s2029 + $0xfe0] sm:$0xff]
    %v2539 = vld [vmem:[%s2029 + $0xfe8] sm:$0xff]
    %v2540 = vld [vmem:[%s2029 + $0xff0] sm:$0xff]
    %v2541 = vld [vmem:[%s2029 + $0xff8] sm:$0xff]
    %v2542 = vld [vmem:[%s2029 + $0x1000] sm:$0xff]
    %v2543 = vld [vmem:[%s2029 + $0x1008] sm:$0xff]
    %v2544 = vld [vmem:[%s2029 + $0x1010] sm:$0xff]
    %v2545 = vld [vmem:[%s2029 + $0x1018] sm:$0xff]
    %v2546 = vld [vmem:[%s2029 + $0x1020] sm:$0xff]
    %v2547 = vld [vmem:[%s2029 + $0x1028] sm:$0xff]
    %v2548 = vld [vmem:[%s2029 + $0x1030] sm:$0xff]
    %v2549 = vld [vmem:[%s2029 + $0x1038] sm:$0xff]
    %v2550 = vld [vmem:[%s2029 + $0x1040] sm:$0xff]
    %v2551 = vld [vmem:[%s2029 + $0x1048] sm:$0xff]
    %v2552 = vld [vmem:[%s2029 + $0x1050] sm:$0xff]
    %v2553 = vld [vmem:[%s2029 + $0x1058] sm:$0xff]
    %v2554 = vld [vmem:[%s2029 + $0x1060] sm:$0xff]
    %v2555 = vld [vmem:[%s2029 + $0x1068] sm:$0xff]
    %v2556 = vld [vmem:[%s2029 + $0x1070] sm:$0xff]
    %v2557 = vld [vmem:[%s2029 + $0x1078] sm:$0xff]
    %v2558 = vld [vmem:[%s2029 + $0x1080] sm:$0xff]
    %v2559 = vld [vmem:[%s2029 + $0x1088] sm:$0xff]
    %v2560 = vld [vmem:[%s2029 + $0x1090] sm:$0xff]
    %v2561 = vld [vmem:[%s2029 + $0x1098] sm:$0xff]
    %v2562 = vld [vmem:[%s2029 + $0x10a0] sm:$0xff]
    %v2563 = vld [vmem:[%s2029 + $0x10a8] sm:$0xff]
    %v2564 = vld [vmem:[%s2029 + $0x10b0] sm:$0xff]
    %v2565 = vld [vmem:[%s2029 + $0x10b8] sm:$0xff]
    %v2566 = vld [vmem:[%s2029 + $0x10c0] sm:$0xff]
    %v2567 = vld [vmem:[%s2029 + $0x10c8] sm:$0xff]
    %v2568 = vld [vmem:[%s2029 + $0x10d0] sm:$0xff]
    %v2569 = vld [vmem:[%s2029 + $0x10d8] sm:$0xff]
    %v2570 = vld [vmem:[%s2029 + $0x10e0] sm:$0xff]
    %v2571 = vld [vmem:[%s2029 + $0x10e8] sm:$0xff]
    %v2572 = vld [vmem:[%s2029 + $0x10f0] sm:$0xff]
    %v2573 = vld [vmem:[%s2029 + $0x10f8] sm:$0xff]
    %v2574 = vld [vmem:[%s2029 + $0x1100] sm:$0xff]
    %v2575 = vld [vmem:[%s2029 + $0x1108] sm:$0xff]
    %v2576 = vld [vmem:[%s2029 + $0x1110] sm:$0xff]
    %v2577 = vld [vmem:[%s2029 + $0x1118] sm:$0xff]
    %v2578 = vld [vmem:[%s2029 + $0x1120] sm:$0xff]
    %v2579 = vld [vmem:[%s2029 + $0x1128] sm:$0xff]
    %v2580 = vld [vmem:[%s2029 + $0x1130] sm:$0xff]
    %v2581 = vld [vmem:[%s2029 + $0x1138] sm:$0xff]
    %v2582 = vld [vmem:[%s2029 + $0x1140] sm:$0xff]
    %v2583 = vld [vmem:[%s2029 + $0x1148] sm:$0xff]
    %v2584 = vld [vmem:[%s2029 + $0x1150] sm:$0xff]
    %v2585 = vld [vmem:[%s2029 + $0x1158] sm:$0xff]
    %v2586 = vld [vmem:[%s2029 + $0x1160] sm:$0xff]
    %v2587 = vld [vmem:[%s2029 + $0x1168] sm:$0xff]
    %v2588 = vld [vmem:[%s2029 + $0x1170] sm:$0xff]
    %v2589 = vld [vmem:[%s2029 + $0x1178] sm:$0xff]
    %v2590 = vld [vmem:[%s2029 + $0x1180] sm:$0xff]
    %v2591 = vld [vmem:[%s2029 + $0x1188] sm:$0xff]
    %v2592 = vld [vmem:[%s2029 + $0x1190] sm:$0xff]
    %v2593 = vld [vmem:[%s2029 + $0x1198] sm:$0xff]
    %v2594 = vld [vmem:[%s2029 + $0x11a0] sm:$0xff]
    %v2595 = vld [vmem:[%s2029 + $0x11a8] sm:$0xff]
    %v2596 = vld [vmem:[%s2029 + $0x11b0] sm:$0xff]
    %v2597 = vld [vmem:[%s2029 + $0x11b8] sm:$0xff]
    %v2598 = vld [vmem:[%s2029 + $0x11c0] sm:$0xff]
    %v2599 = vld [vmem:[%s2029 + $0x11c8] sm:$0xff]
    %v2600 = vld [vmem:[%s2029 + $0x11d0] sm:$0xff]
    %v2601 = vld [vmem:[%s2029 + $0x11d8] sm:$0xff]
    %v2602 = vld [vmem:[%s2029 + $0x11e0] sm:$0xff]
    %v2603 = vld [vmem:[%s2029 + $0x11e8] sm:$0xff]
    %v2604 = vld [vmem:[%s2029 + $0x11f0] sm:$0xff]
    %v2605 = vld [vmem:[%s2029 + $0x11f8] sm:$0xff]
    %v2606 = vld [vmem:[%s2029 + $0x1200] sm:$0xff]
    %v2607 = vld [vmem:[%s2029 + $0x1208] sm:$0xff]
    %v2608 = vld [vmem:[%s2029 + $0x1210] sm:$0xff]
    %v2609 = vld [vmem:[%s2029 + $0x1218] sm:$0xff]
    %v2610 = vld [vmem:[%s2029 + $0x1220] sm:$0xff]
    %v2611 = vld [vmem:[%s2029 + $0x1228] sm:$0xff]
    %v2612 = vld [vmem:[%s2029 + $0x1230] sm:$0xff]
    %v2613 = vld [vmem:[%s2029 + $0x1238] sm:$0xff]
    %v2614 = vld [vmem:[%s2029 + $0x1240] sm:$0xff]
    %v2615 = vld [vmem:[%s2029 + $0x1248] sm:$0xff]
    %v2616 = vld [vmem:[%s2029 + $0x1250] sm:$0xff]
    %v2617 = vld [vmem:[%s2029 + $0x1258] sm:$0xff]
    %v2618 = vld [vmem:[%s2029 + $0x1260] sm:$0xff]
    %v2619 = vld [vmem:[%s2029 + $0x1268] sm:$0xff]
    %v2620 = vld [vmem:[%s2029 + $0x1270] sm:$0xff]
    %v2621 = vld [vmem:[%s2029 + $0x1278] sm:$0xff]
    %v2622 = vld [vmem:[%s2029 + $0x1280] sm:$0xff]
    %v2623 = vld [vmem:[%s2029 + $0x1288] sm:$0xff]
    %v2624 = vld [vmem:[%s2029 + $0x1290] sm:$0xff]
    %v2625 = vld [vmem:[%s2029 + $0x1298] sm:$0xff]
    %v2626 = vld [vmem:[%s2029 + $0x12a0] sm:$0xff]
    %v2627 = vld [vmem:[%s2029 + $0x12a8] sm:$0xff]
    %v2628 = vld [vmem:[%s2029 + $0x12b0] sm:$0xff]
    %v2629 = vld [vmem:[%s2029 + $0x12b8] sm:$0xff]
    %v2630 = vld [vmem:[%s2029 + $0x12c0] sm:$0xff]
    %v2631 = vld [vmem:[%s2029 + $0x12c8] sm:$0xff]
    %v2632 = vld [vmem:[%s2029 + $0x12d0] sm:$0xff]
    %v2633 = vld [vmem:[%s2029 + $0x12d8] sm:$0xff]
    %v2634 = vld [vmem:[%s2029 + $0x12e0] sm:$0xff]
    %v2635 = vld [vmem:[%s2029 + $0x12e8] sm:$0xff]
    %v2636 = vld [vmem:[%s2029 + $0x12f0] sm:$0xff]
    %v2637 = vld [vmem:[%s2029 + $0x12f8] sm:$0xff]
    %v2638 = vld [vmem:[%s2029 + $0x1300] sm:$0xff]
    %v2639 = vld [vmem:[%s2029 + $0x1308] sm:$0xff]
    %v2640 = vld [vmem:[%s2029 + $0x1310] sm:$0xff]
    %v2641 = vld [vmem:[%s2029 + $0x1318] sm:$0xff]
    %v2642 = vld [vmem:[%s2029 + $0x1320] sm:$0xff]
    %v2643 = vld [vmem:[%s2029 + $0x1328] sm:$0xff]
    %v2644 = vld [vmem:[%s2029 + $0x1330] sm:$0xff]
    %v2645 = vld [vmem:[%s2029 + $0x1338] sm:$0xff]
    %v2646 = vld [vmem:[%s2029 + $0x1340] sm:$0xff]
    %v2647 = vld [vmem:[%s2029 + $0x1348] sm:$0xff]
    %v2648 = vld [vmem:[%s2029 + $0x1350] sm:$0xff]
    %v2649 = vld [vmem:[%s2029 + $0x1358] sm:$0xff]
    %v2650 = vld [vmem:[%s2029 + $0x1360] sm:$0xff]
    %v2651 = vld [vmem:[%s2029 + $0x1368] sm:$0xff]
    %v2652 = vld [vmem:[%s2029 + $0x1370] sm:$0xff]
    %v2653 = vld [vmem:[%s2029 + $0x1378] sm:$0xff]
    %v2654 = vld [vmem:[%s2029 + $0x1380] sm:$0xff]
    %v2655 = vld [vmem:[%s2029 + $0x1388] sm:$0xff]
    %v2656 = vld [vmem:[%s2029 + $0x1390] sm:$0xff]
    %v2657 = vld [vmem:[%s2029 + $0x1398] sm:$0xff]
    %v2658 = vld [vmem:[%s2029 + $0x13a0] sm:$0xff]
    %v2659 = vld [vmem:[%s2029 + $0x13a8] sm:$0xff]
    %v2660 = vld [vmem:[%s2029 + $0x13b0] sm:$0xff]
    %v2661 = vld [vmem:[%s2029 + $0x13b8] sm:$0xff]
    %v2662 = vld [vmem:[%s2029 + $0x13c0] sm:$0xff]
    %v2663 = vld [vmem:[%s2029 + $0x13c8] sm:$0xff]
    %v2664 = vld [vmem:[%s2029 + $0x13d0] sm:$0xff]
    %v2665 = vld [vmem:[%s2029 + $0x13d8] sm:$0xff]
    %v2666 = vld [vmem:[%s2029 + $0x13e0] sm:$0xff]
    %v2667 = vld [vmem:[%s2029 + $0x13e8] sm:$0xff]
    %v2668 = vld [vmem:[%s2029 + $0x13f0] sm:$0xff]
    %v2669 = vld [vmem:[%s2029 + $0x13f8] sm:$0xff]
    %v2670 = vld [vmem:[%s2029 + $0x1400] sm:$0xff]
    %v2671 = vld [vmem:[%s2029 + $0x1408] sm:$0xff]
    %v2672 = vld [vmem:[%s2029 + $0x1410] sm:$0xff]
    %v2673 = vld [vmem:[%s2029 + $0x1418] sm:$0xff]
    %v2674 = vld [vmem:[%s2029 + $0x1420] sm:$0xff]
    %v2675 = vld [vmem:[%s2029 + $0x1428] sm:$0xff]
    %v2676 = vld [vmem:[%s2029 + $0x1430] sm:$0xff]
    %v2677 = vld [vmem:[%s2029 + $0x1438] sm:$0xff]
    %v2678 = vld [vmem:[%s2029 + $0x1440] sm:$0xff]
    %v2679 = vld [vmem:[%s2029 + $0x1448] sm:$0xff]
    %v2680 = vld [vmem:[%s2029 + $0x1450] sm:$0xff]
    %v2681 = vld [vmem:[%s2029 + $0x1458] sm:$0xff]
    %v2682 = vld [vmem:[%s2029 + $0x1460] sm:$0xff]
    %v2683 = vld [vmem:[%s2029 + $0x1468] sm:$0xff]
    %v2684 = vld [vmem:[%s2029 + $0x1470] sm:$0xff]
    %v2685 = vld [vmem:[%s2029 + $0x1478] sm:$0xff]
    %v2686 = vld [vmem:[%s2029 + $0x1480] sm:$0xff]
    %v2687 = vld [vmem:[%s2029 + $0x1488] sm:$0xff]
    %v2688 = vld [vmem:[%s2029 + $0x1490] sm:$0xff]
    %v2689 = vld [vmem:[%s2029 + $0x1498] sm:$0xff]
    %v2690 = vld [vmem:[%s2029 + $0x14a0] sm:$0xff]
    %v2691 = vld [vmem:[%s2029 + $0x14a8] sm:$0xff]
    %v2692 = vld [vmem:[%s2029 + $0x14b0] sm:$0xff]
    %v2693 = vld [vmem:[%s2029 + $0x14b8] sm:$0xff]
    %v2694 = vld [vmem:[%s2029 + $0x14c0] sm:$0xff]
    %v2695 = vld [vmem:[%s2029 + $0x14c8] sm:$0xff]
    %v2696 = vld [vmem:[%s2029 + $0x14d0] sm:$0xff]
    %v2697 = vld [vmem:[%s2029 + $0x14d8] sm:$0xff]
    %v2698 = vld [vmem:[%s2029 + $0x14e0] sm:$0xff]
    %v2699 = vld [vmem:[%s2029 + $0x14e8] sm:$0xff]
    %v2700 = vld [vmem:[%s2029 + $0x14f0] sm:$0xff]
    %v2701 = vld [vmem:[%s2029 + $0x14f8] sm:$0xff]
    %v2702 = vld [vmem:[%s2029 + $0x1500] sm:$0xff]
    %v2703 = vld [vmem:[%s2029 + $0x1508] sm:$0xff]
    %v2704 = vld [vmem:[%s2029 + $0x1510] sm:$0xff]
    %v2705 = vld [vmem:[%s2029 + $0x1518] sm:$0xff]
    %v2706 = vld [vmem:[%s2029 + $0x1520] sm:$0xff]
    %v2707 = vld [vmem:[%s2029 + $0x1528] sm:$0xff]
    %v2708 = vld [vmem:[%s2029 + $0x1530] sm:$0xff]
    %v2709 = vld [vmem:[%s2029 + $0x1538] sm:$0xff]
    %v2710 = vld [vmem:[%s2029 + $0x1540] sm:$0xff]
    %v2711 = vld [vmem:[%s2029 + $0x1548] sm:$0xff]
    %v2712 = vld [vmem:[%s2029 + $0x1550] sm:$0xff]
    %v2713 = vld [vmem:[%s2029 + $0x1558] sm:$0xff]
    %v2714 = vld [vmem:[%s2029 + $0x1560] sm:$0xff]
    %v2715 = vld [vmem:[%s2029 + $0x1568] sm:$0xff]
    %v2716 = vld [vmem:[%s2029 + $0x1570] sm:$0xff]
    %v2717 = vld [vmem:[%s2029 + $0x1578] sm:$0xff]
    %v2718 = vld [vmem:[%s2029 + $0x1580] sm:$0xff]
    %v2719 = vld [vmem:[%s2029 + $0x1588] sm:$0xff]
    %v2720 = vld [vmem:[%s2029 + $0x1590] sm:$0xff]
    %v2721 = vld [vmem:[%s2029 + $0x1598] sm:$0xff]
    %v2722 = vld [vmem:[%s2029 + $0x15a0] sm:$0xff]
    %v2723 = vld [vmem:[%s2029 + $0x15a8] sm:$0xff]
    %v2724 = vld [vmem:[%s2029 + $0x15b0] sm:$0xff]
    %v2725 = vld [vmem:[%s2029 + $0x15b8] sm:$0xff]
    %v2726 = vld [vmem:[%s2029 + $0x15c0] sm:$0xff]
    %v2727 = vld [vmem:[%s2029 + $0x15c8] sm:$0xff]
    %v2728 = vld [vmem:[%s2029 + $0x15d0] sm:$0xff]
    %v2729 = vld [vmem:[%s2029 + $0x15d8] sm:$0xff]
    %v2730 = vld [vmem:[%s2029 + $0x15e0] sm:$0xff]
    %v2731 = vld [vmem:[%s2029 + $0x15e8] sm:$0xff]
    %v2732 = vld [vmem:[%s2029 + $0x15f0] sm:$0xff]
    %v2733 = vld [vmem:[%s2029 + $0x15f8] sm:$0xff]
    %v2734 = vld [vmem:[%s2029 + $0x1600] sm:$0xff]
    %v2735 = vld [vmem:[%s2029 + $0x1608] sm:$0xff]
    %v2736 = vld [vmem:[%s2029 + $0x1610] sm:$0xff]
    %v2737 = vld [vmem:[%s2029 + $0x1618] sm:$0xff]
    %v2738 = vld [vmem:[%s2029 + $0x1620] sm:$0xff]
    %v2739 = vld [vmem:[%s2029 + $0x1628] sm:$0xff]
    %v2740 = vld [vmem:[%s2029 + $0x1630] sm:$0xff]
    %v2741 = vld [vmem:[%s2029 + $0x1638] sm:$0xff]
    %v2742 = vld [vmem:[%s2029 + $0x1640] sm:$0xff]
    %v2743 = vld [vmem:[%s2029 + $0x1648] sm:$0xff]
    %v2744 = vld [vmem:[%s2029 + $0x1650] sm:$0xff]
    %v2745 = vld [vmem:[%s2029 + $0x1658] sm:$0xff]
    %v2746 = vld [vmem:[%s2029 + $0x1660] sm:$0xff]
    %v2747 = vld [vmem:[%s2029 + $0x1668] sm:$0xff]
    %v2748 = vld [vmem:[%s2029 + $0x1670] sm:$0xff]
    %v2749 = vld [vmem:[%s2029 + $0x1678] sm:$0xff]
    %v2750 = vld [vmem:[%s2029 + $0x1680] sm:$0xff]
    %v2751 = vld [vmem:[%s2029 + $0x1688] sm:$0xff]
    %v2752 = vld [vmem:[%s2029 + $0x1690] sm:$0xff]
    %v2753 = vld [vmem:[%s2029 + $0x1698] sm:$0xff]
    %v2754 = vld [vmem:[%s2029 + $0x16a0] sm:$0xff]
    %v2755 = vld [vmem:[%s2029 + $0x16a8] sm:$0xff]
    %v2756 = vld [vmem:[%s2029 + $0x16b0] sm:$0xff]
    %v2757 = vld [vmem:[%s2029 + $0x16b8] sm:$0xff]
    %v2758 = vld [vmem:[%s2029 + $0x16c0] sm:$0xff]
    %v2759 = vld [vmem:[%s2029 + $0x16c8] sm:$0xff]
    %v2760 = vld [vmem:[%s2029 + $0x16d0] sm:$0xff]
    %v2761 = vld [vmem:[%s2029 + $0x16d8] sm:$0xff]
    %v2762 = vld [vmem:[%s2029 + $0x16e0] sm:$0xff]
    %v2763 = vld [vmem:[%s2029 + $0x16e8] sm:$0xff]
    %v2764 = vld [vmem:[%s2029 + $0x16f0] sm:$0xff]
    %v2765 = vld [vmem:[%s2029 + $0x16f8] sm:$0xff]
    %v2766 = vld [vmem:[%s2029 + $0x1700] sm:$0xff]
    %v2767 = vld [vmem:[%s2029 + $0x1708] sm:$0xff]
    %v2768 = vld [vmem:[%s2029 + $0x1710] sm:$0xff]
    %v2769 = vld [vmem:[%s2029 + $0x1718] sm:$0xff]
    %v2770 = vld [vmem:[%s2029 + $0x1720] sm:$0xff]
    %v2771 = vld [vmem:[%s2029 + $0x1728] sm:$0xff]
    %v2772 = vld [vmem:[%s2029 + $0x1730] sm:$0xff]
    %v2773 = vld [vmem:[%s2029 + $0x1738] sm:$0xff]
    %v2774 = vld [vmem:[%s2029 + $0x1740] sm:$0xff]
    %v2775 = vld [vmem:[%s2029 + $0x1748] sm:$0xff]
    %v2776 = vld [vmem:[%s2029 + $0x1750] sm:$0xff]
    %v2777 = vld [vmem:[%s2029 + $0x1758] sm:$0xff]
    %v2778 = vld [vmem:[%s2029 + $0x1760] sm:$0xff]
    %v2779 = vld [vmem:[%s2029 + $0x1768] sm:$0xff]
    %v2780 = vld [vmem:[%s2029 + $0x1770] sm:$0xff]
    %v2781 = vld [vmem:[%s2029 + $0x1778] sm:$0xff]
    %v2782 = vld [vmem:[%s2029 + $0x1780] sm:$0xff]
    %v2783 = vld [vmem:[%s2029 + $0x1788] sm:$0xff]
    %v2784 = vld [vmem:[%s2029 + $0x1790] sm:$0xff]
    %v2785 = vld [vmem:[%s2029 + $0x1798] sm:$0xff]
    %v2786 = vld [vmem:[%s2029 + $0x17a0] sm:$0xff]
    %v2787 = vld [vmem:[%s2029 + $0x17a8] sm:$0xff]
    %v2788 = vld [vmem:[%s2029 + $0x17b0] sm:$0xff]
    %v2789 = vld [vmem:[%s2029 + $0x17b8] sm:$0xff]
    %v2790 = vld [vmem:[%s2029 + $0x17c0] sm:$0xff]
    %v2791 = vld [vmem:[%s2029 + $0x17c8] sm:$0xff]
    %v2792 = vld [vmem:[%s2029 + $0x17d0] sm:$0xff]
    %v2793 = vld [vmem:[%s2029 + $0x17d8] sm:$0xff]
    %v2794 = vld [vmem:[%s2029 + $0x17e0] sm:$0xff]
    %v2795 = vld [vmem:[%s2029 + $0x17e8] sm:$0xff]
    %v2796 = vld [vmem:[%s2029 + $0x17f0] sm:$0xff]
    %v2797 = vld [vmem:[%s2029 + $0x17f8] sm:$0xff]
    %v2798 = vld [vmem:[%s2029 + $0x1800] sm:$0xff]
    %v2799 = vld [vmem:[%s2029 + $0x1808] sm:$0xff]
    %v2800 = vld [vmem:[%s2029 + $0x1810] sm:$0xff]
    %v2801 = vld [vmem:[%s2029 + $0x1818] sm:$0xff]
    %v2802 = vld [vmem:[%s2029 + $0x1820] sm:$0xff]
    %v2803 = vld [vmem:[%s2029 + $0x1828] sm:$0xff]
    %v2804 = vld [vmem:[%s2029 + $0x1830] sm:$0xff]
    %v2805 = vld [vmem:[%s2029 + $0x1838] sm:$0xff]
    %v2806 = vld [vmem:[%s2029 + $0x1840] sm:$0xff]
    %v2807 = vld [vmem:[%s2029 + $0x1848] sm:$0xff]
    %v2808 = vld [vmem:[%s2029 + $0x1850] sm:$0xff]
    %v2809 = vld [vmem:[%s2029 + $0x1858] sm:$0xff]
    %v2810 = vld [vmem:[%s2029 + $0x1860] sm:$0xff]
    %v2811 = vld [vmem:[%s2029 + $0x1868] sm:$0xff]
    %v2812 = vld [vmem:[%s2029 + $0x1870] sm:$0xff]
    %v2813 = vld [vmem:[%s2029 + $0x1878] sm:$0xff]
    %v2814 = vld [vmem:[%s2029 + $0x1880] sm:$0xff]
    %v2815 = vld [vmem:[%s2029 + $0x1888] sm:$0xff]
    %v2816 = vld [vmem:[%s2029 + $0x1890] sm:$0xff]
    %v2817 = vld [vmem:[%s2029 + $0x1898] sm:$0xff]
    %v2818 = vld [vmem:[%s2029 + $0x18a0] sm:$0xff]
    %v2819 = vld [vmem:[%s2029 + $0x18a8] sm:$0xff]
    %v2820 = vld [vmem:[%s2029 + $0x18b0] sm:$0xff]
    %v2821 = vld [vmem:[%s2029 + $0x18b8] sm:$0xff]
    %v2822 = vld [vmem:[%s2029 + $0x18c0] sm:$0xff]
    %v2823 = vld [vmem:[%s2029 + $0x18c8] sm:$0xff]
    %v2824 = vld [vmem:[%s2029 + $0x18d0] sm:$0xff]
    %v2825 = vld [vmem:[%s2029 + $0x18d8] sm:$0xff]
    %v2826 = vld [vmem:[%s2029 + $0x18e0] sm:$0xff]
    %v2827 = vld [vmem:[%s2029 + $0x18e8] sm:$0xff]
    %v2828 = vld [vmem:[%s2029 + $0x18f0] sm:$0xff]
    %v2829 = vld [vmem:[%s2029 + $0x18f8] sm:$0xff]
    %2830 = vmatpush.msra.mxu0 %v2180
    %2831 = vmatpush.msra.mxu0 %v2170
    %2832 = vmatpush.msra.mxu0 %v2160
    %2833 = vmatpush.msra.mxu0 %v2150
    %2834 = vmatpush.msra.mxu0 %v2140
    %2835 = vmatpush.msra.mxu0 %v2130
    %2836 = vmatpush.msra.mxu0 %v2120
    %2837 = vmatpush.msra.mxu0 %v2110
    %2838 = vmatpush.msra.mxu0 %v2100
    %2839 = vmatpush.msra.mxu0 %v2090
    %2840 = vmatpush.msra.mxu0 %v2080
    %2841 = vmatpush.msra.mxu0 %v2070
    %2842 = vmatpush.msra.mxu0 %v2060
    %2843 = vmatpush.msra.mxu0 %v2050
    %2844 = vmatpush.msra.mxu0 %v2040
    %2845 = vmatpush.msra.mxu0 %v2030
    %2846 = vmatmul.f32.gmra.mxu0 %v2019
    %v2847 = vpop.f32.mrf.mxu0
    %v2848 = vadd.f32 0.0, %v2847
    %2849 = vmatmul.f32.gmra.mxu0 %v2024
    %v2850 = vpop.f32.mrf.mxu0
    %v2851 = vadd.f32 0.0, %v2850
    %2852 = vdwg.mxu0
    %2853 = vmatpush.msra.mxu0 %v2340
    %2854 = vmatpush.msra.mxu0 %v2330
    %2855 = vmatpush.msra.mxu0 %v2320
    %2856 = vmatpush.msra.mxu0 %v2310
    %2857 = vmatpush.msra.mxu0 %v2300
    %2858 = vmatpush.msra.mxu0 %v2290
    %2859 = vmatpush.msra.mxu0 %v2280
    %2860 = vmatpush.msra.mxu0 %v2270
    %2861 = vmatpush.msra.mxu0 %v2260
    %2862 = vmatpush.msra.mxu0 %v2250
    %2863 = vmatpush.msra.mxu0 %v2240
    %2864 = vmatpush.msra.mxu0 %v2230
    %2865 = vmatpush.msra.mxu0 %v2220
    %2866 = vmatpush.msra.mxu0 %v2210
    %2867 = vmatpush.msra.mxu0 %v2200
    %2868 = vmatpush.msra.mxu0 %v2190
    %2869 = vmatmul.f32.gmra.mxu0 %v2020
    %v2870 = vpop.f32.mrf.mxu0
    %v2871 = vadd.f32 %v2848, %v2870
    %2872 = vmatmul.f32.gmra.mxu0 %v2025
    %v2873 = vpop.f32.mrf.mxu0
    %v2874 = vadd.f32 %v2851, %v2873
    %2875 = vdwg.mxu0
    %2876 = vmatpush.msra.mxu0 %v2500
    %2877 = vmatpush.msra.mxu0 %v2490
    %2878 = vmatpush.msra.mxu0 %v2480
    %2879 = vmatpush.msra.mxu0 %v2470
    %2880 = vmatpush.msra.mxu0 %v2460
    %2881 = vmatpush.msra.mxu0 %v2450
    %2882 = vmatpush.msra.mxu0 %v2440
    %2883 = vmatpush.msra.mxu0 %v2430
    %2884 = vmatpush.msra.mxu0 %v2420
    %2885 = vmatpush.msra.mxu0 %v2410
    %2886 = vmatpush.msra.mxu0 %v2400
    %2887 = vmatpush.msra.mxu0 %v2390
    %2888 = vmatpush.msra.mxu0 %v2380
    %2889 = vmatpush.msra.mxu0 %v2370
    %2890 = vmatpush.msra.mxu0 %v2360
    %2891 = vmatpush.msra.mxu0 %v2350
    %2892 = vmatmul.f32.gmra.mxu0 %v2021
    %v2893 = vpop.f32.mrf.mxu0
    %v2894 = vadd.f32 %v2871, %v2893
    %2895 = vmatmul.f32.gmra.mxu0 %v2026
    %v2896 = vpop.f32.mrf.mxu0
    %v2897 = vadd.f32 %v2874, %v2896
    %2898 = vdwg.mxu0
    %2899 = vmatpush.msra.mxu0 %v2660
    %2900 = vmatpush.msra.mxu0 %v2650
    %2901 = vmatpush.msra.mxu0 %v2640
    %2902 = vmatpush.msra.mxu0 %v2630
    %2903 = vmatpush.msra.mxu0 %v2620
    %2904 = vmatpush.msra.mxu0 %v2610
    %2905 = vmatpush.msra.mxu0 %v2600
    %2906 = vmatpush.msra.mxu0 %v2590
    %2907 = vmatpush.msra.mxu0 %v2580
    %2908 = vmatpush.msra.mxu0 %v2570
    %2909 = vmatpush.msra.mxu0 %v2560
    %2910 = vmatpush.msra.mxu0 %v2550
    %2911 = vmatpush.msra.mxu0 %v2540
    %2912 = vmatpush.msra.mxu0 %v2530
    %2913 = vmatpush.msra.mxu0 %v2520
    %2914 = vmatpush.msra.mxu0 %v2510
    %2915 = vmatmul.f32.gmra.mxu0 %v2022
    %v2916 = vpop.f32.mrf.mxu0
    %v2917 = vadd.f32 %v2894, %v2916
    %2918 = vmatmul.f32.gmra.mxu0 %v2027
    %v2919 = vpop.f32.mrf.mxu0
    %v2920 = vadd.f32 %v2897, %v2919
    %2921 = vdwg.mxu0
    %2922 = vmatpush.msra.mxu0 %v2820
    %2923 = vmatpush.msra.mxu0 %v2810
    %2924 = vmatpush.msra.mxu0 %v2800
    %2925 = vmatpush.msra.mxu0 %v2790
    %2926 = vmatpush.msra.mxu0 %v2780
    %2927 = vmatpush.msra.mxu0 %v2770
    %2928 = vmatpush.msra.mxu0 %v2760
    %2929 = vmatpush.msra.mxu0 %v2750
    %2930 = vmatpush.msra.mxu0 %v2740
    %2931 = vmatpush.msra.mxu0 %v2730
    %2932 = vmatpush.msra.mxu0 %v2720
    %2933 = vmatpush.msra.mxu0 %v2710
    %2934 = vmatpush.msra.mxu0 %v2700
    %2935 = vmatpush.msra.mxu0 %v2690
    %2936 = vmatpush.msra.mxu0 %v2680
    %2937 = vmatpush.msra.mxu0 %v2670
    %2938 = vmatmul.f32.gmra.mxu0 %v2023
    %v2939 = vpop.f32.mrf.mxu0
    %v2940 = vadd.f32 %v2917, %v2939
    %2941 = vmatmul.f32.gmra.mxu0 %v2028
    %v2942 = vpop.f32.mrf.mxu0
    %v2943 = vadd.f32 %v2920, %v2942
    %2944 = vdwg.mxu0
    %2945 = vmatpush.msra.mxu0 %v2181
    %2946 = vmatpush.msra.mxu0 %v2171
    %2947 = vmatpush.msra.mxu0 %v2161
    %2948 = vmatpush.msra.mxu0 %v2151
    %2949 = vmatpush.msra.mxu0 %v2141
    %2950 = vmatpush.msra.mxu0 %v2131
    %2951 = vmatpush.msra.mxu0 %v2121
    %2952 = vmatpush.msra.mxu0 %v2111
    %2953 = vmatpush.msra.mxu0 %v2101
    %2954 = vmatpush.msra.mxu0 %v2091
    %2955 = vmatpush.msra.mxu0 %v2081
    %2956 = vmatpush.msra.mxu0 %v2071
    %2957 = vmatpush.msra.mxu0 %v2061
    %2958 = vmatpush.msra.mxu0 %v2051
    %2959 = vmatpush.msra.mxu0 %v2041
    %2960 = vmatpush.msra.mxu0 %v2031
    %2961 = vmatmul.f32.gmra.mxu0 %v2019
    %v2962 = vpop.f32.mrf.mxu0
    %v2963 = vadd.f32 0.0, %v2962
    %2964 = vmatmul.f32.gmra.mxu0 %v2024
    %v2965 = vpop.f32.mrf.mxu0
    %v2966 = vadd.f32 0.0, %v2965
    %2967 = vdwg.mxu0
    %2968 = vmatpush.msra.mxu0 %v2341
    %2969 = vmatpush.msra.mxu0 %v2331
    %2970 = vmatpush.msra.mxu0 %v2321
    %2971 = vmatpush.msra.mxu0 %v2311
    %2972 = vmatpush.msra.mxu0 %v2301
    %2973 = vmatpush.msra.mxu0 %v2291
    %2974 = vmatpush.msra.mxu0 %v2281
    %2975 = vmatpush.msra.mxu0 %v2271
    %2976 = vmatpush.msra.mxu0 %v2261
    %2977 = vmatpush.msra.mxu0 %v2251
    %2978 = vmatpush.msra.mxu0 %v2241
    %2979 = vmatpush.msra.mxu0 %v2231
    %2980 = vmatpush.msra.mxu0 %v2221
    %2981 = vmatpush.msra.mxu0 %v2211
    %2982 = vmatpush.msra.mxu0 %v2201
    %2983 = vmatpush.msra.mxu0 %v2191
    %2984 = vmatmul.f32.gmra.mxu0 %v2020
    %v2985 = vpop.f32.mrf.mxu0
    %v2986 = vadd.f32 %v2963, %v2985
    %2987 = vmatmul.f32.gmra.mxu0 %v2025
    %v2988 = vpop.f32.mrf.mxu0
    %v2989 = vadd.f32 %v2966, %v2988
    %2990 = vdwg.mxu0
    %2991 = vmatpush.msra.mxu0 %v2501
    %2992 = vmatpush.msra.mxu0 %v2491
    %2993 = vmatpush.msra.mxu0 %v2481
    %2994 = vmatpush.msra.mxu0 %v2471
    %2995 = vmatpush.msra.mxu0 %v2461
    %2996 = vmatpush.msra.mxu0 %v2451
    %2997 = vmatpush.msra.mxu0 %v2441
    %2998 = vmatpush.msra.mxu0 %v2431
    %2999 = vmatpush.msra.mxu0 %v2421
    %3000 = vmatpush.msra.mxu0 %v2411
    %3001 = vmatpush.msra.mxu0 %v2401
    %3002 = vmatpush.msra.mxu0 %v2391
    %3003 = vmatpush.msra.mxu0 %v2381
    %3004 = vmatpush.msra.mxu0 %v2371
    %3005 = vmatpush.msra.mxu0 %v2361
    %3006 = vmatpush.msra.mxu0 %v2351
    %3007 = vmatmul.f32.gmra.mxu0 %v2021
    %v3008 = vpop.f32.mrf.mxu0
    %v3009 = vadd.f32 %v2986, %v3008
    %3010 = vmatmul.f32.gmra.mxu0 %v2026
    %v3011 = vpop.f32.mrf.mxu0
    %v3012 = vadd.f32 %v2989, %v3011
    %3013 = vdwg.mxu0
    %3014 = vmatpush.msra.mxu0 %v2661
    %3015 = vmatpush.msra.mxu0 %v2651
    %3016 = vmatpush.msra.mxu0 %v2641
    %3017 = vmatpush.msra.mxu0 %v2631
    %3018 = vmatpush.msra.mxu0 %v2621
    %3019 = vmatpush.msra.mxu0 %v2611
    %3020 = vmatpush.msra.mxu0 %v2601
    %3021 = vmatpush.msra.mxu0 %v2591
    %3022 = vmatpush.msra.mxu0 %v2581
    %3023 = vmatpush.msra.mxu0 %v2571
    %3024 = vmatpush.msra.mxu0 %v2561
    %3025 = vmatpush.msra.mxu0 %v2551
    %3026 = vmatpush.msra.mxu0 %v2541
    %3027 = vmatpush.msra.mxu0 %v2531
    %3028 = vmatpush.msra.mxu0 %v2521
    %3029 = vmatpush.msra.mxu0 %v2511
    %3030 = vmatmul.f32.gmra.mxu0 %v2022
    %v3031 = vpop.f32.mrf.mxu0
    %v3032 = vadd.f32 %v3009, %v3031
    %3033 = vmatmul.f32.gmra.mxu0 %v2027
    %v3034 = vpop.f32.mrf.mxu0
    %v3035 = vadd.f32 %v3012, %v3034
    %3036 = vdwg.mxu0
    %3037 = vmatpush.msra.mxu0 %v2821
    %3038 = vmatpush.msra.mxu0 %v2811
    %3039 = vmatpush.msra.mxu0 %v2801
    %3040 = vmatpush.msra.mxu0 %v2791
    %3041 = vmatpush.msra.mxu0 %v2781
    %3042 = vmatpush.msra.mxu0 %v2771
    %3043 = vmatpush.msra.mxu0 %v2761
    %3044 = vmatpush.msra.mxu0 %v2751
    %3045 = vmatpush.msra.mxu0 %v2741
    %3046 = vmatpush.msra.mxu0 %v2731
    %3047 = vmatpush.msra.mxu0 %v2721
    %3048 = vmatpush.msra.mxu0 %v2711
    %3049 = vmatpush.msra.mxu0 %v2701
    %3050 = vmatpush.msra.mxu0 %v2691
    %3051 = vmatpush.msra.mxu0 %v2681
    %3052 = vmatpush.msra.mxu0 %v2671
    %3053 = vmatmul.f32.gmra.mxu0 %v2023
    %v3054 = vpop.f32.mrf.mxu0
    %v3055 = vadd.f32 %v3032, %v3054
    %3056 = vmatmul.f32.gmra.mxu0 %v2028
    %v3057 = vpop.f32.mrf.mxu0
    %v3058 = vadd.f32 %v3035, %v3057
    %3059 = vdwg.mxu0
    %3060 = vmatpush.msra.mxu0 %v2182
    %3061 = vmatpush.msra.mxu0 %v2172
    %3062 = vmatpush.msra.mxu0 %v2162
    %3063 = vmatpush.msra.mxu0 %v2152
    %3064 = vmatpush.msra.mxu0 %v2142
    %3065 = vmatpush.msra.mxu0 %v2132
    %3066 = vmatpush.msra.mxu0 %v2122
    %3067 = vmatpush.msra.mxu0 %v2112
    %3068 = vmatpush.msra.mxu0 %v2102
    %3069 = vmatpush.msra.mxu0 %v2092
    %3070 = vmatpush.msra.mxu0 %v2082
    %3071 = vmatpush.msra.mxu0 %v2072
    %3072 = vmatpush.msra.mxu0 %v2062
    %3073 = vmatpush.msra.mxu0 %v2052
    %3074 = vmatpush.msra.mxu0 %v2042
    %3075 = vmatpush.msra.mxu0 %v2032
    %3076 = vmatmul.f32.gmra.mxu0 %v2019
    %v3077 = vpop.f32.mrf.mxu0
    %v3078 = vadd.f32 0.0, %v3077
    %3079 = vmatmul.f32.gmra.mxu0 %v2024
    %v3080 = vpop.f32.mrf.mxu0
    %v3081 = vadd.f32 0.0, %v3080
    %3082 = vdwg.mxu0
    %3083 = vmatpush.msra.mxu0 %v2342
    %3084 = vmatpush.msra.mxu0 %v2332
    %3085 = vmatpush.msra.mxu0 %v2322
    %3086 = vmatpush.msra.mxu0 %v2312
    %3087 = vmatpush.msra.mxu0 %v2302
    %3088 = vmatpush.msra.mxu0 %v2292
    %3089 = vmatpush.msra.mxu0 %v2282
    %3090 = vmatpush.msra.mxu0 %v2272
    %3091 = vmatpush.msra.mxu0 %v2262
    %3092 = vmatpush.msra.mxu0 %v2252
    %3093 = vmatpush.msra.mxu0 %v2242
    %3094 = vmatpush.msra.mxu0 %v2232
    %3095 = vmatpush.msra.mxu0 %v2222
    %3096 = vmatpush.msra.mxu0 %v2212
    %3097 = vmatpush.msra.mxu0 %v2202
    %3098 = vmatpush.msra.mxu0 %v2192
    %3099 = vmatmul.f32.gmra.mxu0 %v2020
    %v3100 = vpop.f32.mrf.mxu0
    %v3101 = vadd.f32 %v3078, %v3100
    %3102 = vmatmul.f32.gmra.mxu0 %v2025
    %v3103 = vpop.f32.mrf.mxu0
    %v3104 = vadd.f32 %v3081, %v3103
    %3105 = vdwg.mxu0
    %3106 = vmatpush.msra.mxu0 %v2502
    %3107 = vmatpush.msra.mxu0 %v2492
    %3108 = vmatpush.msra.mxu0 %v2482
    %3109 = vmatpush.msra.mxu0 %v2472
    %3110 = vmatpush.msra.mxu0 %v2462
    %3111 = vmatpush.msra.mxu0 %v2452
    %3112 = vmatpush.msra.mxu0 %v2442
    %3113 = vmatpush.msra.mxu0 %v2432
    %3114 = vmatpush.msra.mxu0 %v2422
    %3115 = vmatpush.msra.mxu0 %v2412
    %3116 = vmatpush.msra.mxu0 %v2402
    %3117 = vmatpush.msra.mxu0 %v2392
    %3118 = vmatpush.msra.mxu0 %v2382
    %3119 = vmatpush.msra.mxu0 %v2372
    %3120 = vmatpush.msra.mxu0 %v2362
    %3121 = vmatpush.msra.mxu0 %v2352
    %3122 = vmatmul.f32.gmra.mxu0 %v2021
    %v3123 = vpop.f32.mrf.mxu0
    %v3124 = vadd.f32 %v3101, %v3123
    %3125 = vmatmul.f32.gmra.mxu0 %v2026
    %v3126 = vpop.f32.mrf.mxu0
    %v3127 = vadd.f32 %v3104, %v3126
    %3128 = vdwg.mxu0
    %3129 = vmatpush.msra.mxu0 %v2662
    %3130 = vmatpush.msra.mxu0 %v2652
    %3131 = vmatpush.msra.mxu0 %v2642
    %3132 = vmatpush.msra.mxu0 %v2632
    %3133 = vmatpush.msra.mxu0 %v2622
    %3134 = vmatpush.msra.mxu0 %v2612
    %3135 = vmatpush.msra.mxu0 %v2602
    %3136 = vmatpush.msra.mxu0 %v2592
    %3137 = vmatpush.msra.mxu0 %v2582
    %3138 = vmatpush.msra.mxu0 %v2572
    %3139 = vmatpush.msra.mxu0 %v2562
    %3140 = vmatpush.msra.mxu0 %v2552
    %3141 = vmatpush.msra.mxu0 %v2542
    %3142 = vmatpush.msra.mxu0 %v2532
    %3143 = vmatpush.msra.mxu0 %v2522
    %3144 = vmatpush.msra.mxu0 %v2512
    %3145 = vmatmul.f32.gmra.mxu0 %v2022
    %v3146 = vpop.f32.mrf.mxu0
    %v3147 = vadd.f32 %v3124, %v3146
    %3148 = vmatmul.f32.gmra.mxu0 %v2027
    %v3149 = vpop.f32.mrf.mxu0
    %v3150 = vadd.f32 %v3127, %v3149
    %3151 = vdwg.mxu0
    %3152 = vmatpush.msra.mxu0 %v2822
    %3153 = vmatpush.msra.mxu0 %v2812
    %3154 = vmatpush.msra.mxu0 %v2802
    %3155 = vmatpush.msra.mxu0 %v2792
    %3156 = vmatpush.msra.mxu0 %v2782
    %3157 = vmatpush.msra.mxu0 %v2772
    %3158 = vmatpush.msra.mxu0 %v2762
    %3159 = vmatpush.msra.mxu0 %v2752
    %3160 = vmatpush.msra.mxu0 %v2742
    %3161 = vmatpush.msra.mxu0 %v2732
    %3162 = vmatpush.msra.mxu0 %v2722
    %3163 = vmatpush.msra.mxu0 %v2712
    %3164 = vmatpush.msra.mxu0 %v2702
    %3165 = vmatpush.msra.mxu0 %v2692
    %3166 = vmatpush.msra.mxu0 %v2682
    %3167 = vmatpush.msra.mxu0 %v2672
    %3168 = vmatmul.f32.gmra.mxu0 %v2023
    %v3169 = vpop.f32.mrf.mxu0
    %v3170 = vadd.f32 %v3147, %v3169
    %3171 = vmatmul.f32.gmra.mxu0 %v2028
    %v3172 = vpop.f32.mrf.mxu0
    %v3173 = vadd.f32 %v3150, %v3172
    %3174 = vdwg.mxu0
    %3175 = vmatpush.msra.mxu0 %v2183
    %3176 = vmatpush.msra.mxu0 %v2173
    %3177 = vmatpush.msra.mxu0 %v2163
    %3178 = vmatpush.msra.mxu0 %v2153
    %3179 = vmatpush.msra.mxu0 %v2143
    %3180 = vmatpush.msra.mxu0 %v2133
    %3181 = vmatpush.msra.mxu0 %v2123
    %3182 = vmatpush.msra.mxu0 %v2113
    %3183 = vmatpush.msra.mxu0 %v2103
    %3184 = vmatpush.msra.mxu0 %v2093
    %3185 = vmatpush.msra.mxu0 %v2083
    %3186 = vmatpush.msra.mxu0 %v2073
    %3187 = vmatpush.msra.mxu0 %v2063
    %3188 = vmatpush.msra.mxu0 %v2053
    %3189 = vmatpush.msra.mxu0 %v2043
    %3190 = vmatpush.msra.mxu0 %v2033
    %3191 = vmatmul.f32.gmra.mxu0 %v2019
    %v3192 = vpop.f32.mrf.mxu0
    %v3193 = vadd.f32 0.0, %v3192
    %3194 = vmatmul.f32.gmra.mxu0 %v2024
    %v3195 = vpop.f32.mrf.mxu0
    %v3196 = vadd.f32 0.0, %v3195
    %3197 = vdwg.mxu0
    %3198 = vmatpush.msra.mxu0 %v2343
    %3199 = vmatpush.msra.mxu0 %v2333
    %3200 = vmatpush.msra.mxu0 %v2323
    %3201 = vmatpush.msra.mxu0 %v2313
    %3202 = vmatpush.msra.mxu0 %v2303
    %3203 = vmatpush.msra.mxu0 %v2293
    %3204 = vmatpush.msra.mxu0 %v2283
    %3205 = vmatpush.msra.mxu0 %v2273
    %3206 = vmatpush.msra.mxu0 %v2263
    %3207 = vmatpush.msra.mxu0 %v2253
    %3208 = vmatpush.msra.mxu0 %v2243
    %3209 = vmatpush.msra.mxu0 %v2233
    %3210 = vmatpush.msra.mxu0 %v2223
    %3211 = vmatpush.msra.mxu0 %v2213
    %3212 = vmatpush.msra.mxu0 %v2203
    %3213 = vmatpush.msra.mxu0 %v2193
    %3214 = vmatmul.f32.gmra.mxu0 %v2020
    %v3215 = vpop.f32.mrf.mxu0
    %v3216 = vadd.f32 %v3193, %v3215
    %3217 = vmatmul.f32.gmra.mxu0 %v2025
    %v3218 = vpop.f32.mrf.mxu0
    %v3219 = vadd.f32 %v3196, %v3218
    %3220 = vdwg.mxu0
    %3221 = vmatpush.msra.mxu0 %v2503
    %3222 = vmatpush.msra.mxu0 %v2493
    %3223 = vmatpush.msra.mxu0 %v2483
    %3224 = vmatpush.msra.mxu0 %v2473
    %3225 = vmatpush.msra.mxu0 %v2463
    %3226 = vmatpush.msra.mxu0 %v2453
    %3227 = vmatpush.msra.mxu0 %v2443
    %3228 = vmatpush.msra.mxu0 %v2433
    %3229 = vmatpush.msra.mxu0 %v2423
    %3230 = vmatpush.msra.mxu0 %v2413
    %3231 = vmatpush.msra.mxu0 %v2403
    %3232 = vmatpush.msra.mxu0 %v2393
    %3233 = vmatpush.msra.mxu0 %v2383
    %3234 = vmatpush.msra.mxu0 %v2373
    %3235 = vmatpush.msra.mxu0 %v2363
    %3236 = vmatpush.msra.mxu0 %v2353
    %3237 = vmatmul.f32.gmra.mxu0 %v2021
    %v3238 = vpop.f32.mrf.mxu0
    %v3239 = vadd.f32 %v3216, %v3238
    %3240 = vmatmul.f32.gmra.mxu0 %v2026
    %v3241 = vpop.f32.mrf.mxu0
    %v3242 = vadd.f32 %v3219, %v3241
    %3243 = vdwg.mxu0
    %3244 = vmatpush.msra.mxu0 %v2663
    %3245 = vmatpush.msra.mxu0 %v2653
    %3246 = vmatpush.msra.mxu0 %v2643
    %3247 = vmatpush.msra.mxu0 %v2633
    %3248 = vmatpush.msra.mxu0 %v2623
    %3249 = vmatpush.msra.mxu0 %v2613
    %3250 = vmatpush.msra.mxu0 %v2603
    %3251 = vmatpush.msra.mxu0 %v2593
    %3252 = vmatpush.msra.mxu0 %v2583
    %3253 = vmatpush.msra.mxu0 %v2573
    %3254 = vmatpush.msra.mxu0 %v2563
    %3255 = vmatpush.msra.mxu0 %v2553
    %3256 = vmatpush.msra.mxu0 %v2543
    %3257 = vmatpush.msra.mxu0 %v2533
    %3258 = vmatpush.msra.mxu0 %v2523
    %3259 = vmatpush.msra.mxu0 %v2513
    %3260 = vmatmul.f32.gmra.mxu0 %v2022
    %v3261 = vpop.f32.mrf.mxu0
    %v3262 = vadd.f32 %v3239, %v3261
    %3263 = vmatmul.f32.gmra.mxu0 %v2027
    %v3264 = vpop.f32.mrf.mxu0
    %v3265 = vadd.f32 %v3242, %v3264
    %3266 = vdwg.mxu0
    %3267 = vmatpush.msra.mxu0 %v2823
    %3268 = vmatpush.msra.mxu0 %v2813
    %3269 = vmatpush.msra.mxu0 %v2803
    %3270 = vmatpush.msra.mxu0 %v2793
    %3271 = vmatpush.msra.mxu0 %v2783
    %3272 = vmatpush.msra.mxu0 %v2773
    %3273 = vmatpush.msra.mxu0 %v2763
    %3274 = vmatpush.msra.mxu0 %v2753
    %3275 = vmatpush.msra.mxu0 %v2743
    %3276 = vmatpush.msra.mxu0 %v2733
    %3277 = vmatpush.msra.mxu0 %v2723
    %3278 = vmatpush.msra.mxu0 %v2713
    %3279 = vmatpush.msra.mxu0 %v2703
    %3280 = vmatpush.msra.mxu0 %v2693
    %3281 = vmatpush.msra.mxu0 %v2683
    %3282 = vmatpush.msra.mxu0 %v2673
    %3283 = vmatmul.f32.gmra.mxu0 %v2023
    %v3284 = vpop.f32.mrf.mxu0
    %v3285 = vadd.f32 %v3262, %v3284
    %3286 = vmatmul.f32.gmra.mxu0 %v2028
    %v3287 = vpop.f32.mrf.mxu0
    %v3288 = vadd.f32 %v3265, %v3287
    %3289 = vdwg.mxu0
    %3290 = vmatpush.msra.mxu0 %v2184
    %3291 = vmatpush.msra.mxu0 %v2174
    %3292 = vmatpush.msra.mxu0 %v2164
    %3293 = vmatpush.msra.mxu0 %v2154
    %3294 = vmatpush.msra.mxu0 %v2144
    %3295 = vmatpush.msra.mxu0 %v2134
    %3296 = vmatpush.msra.mxu0 %v2124
    %3297 = vmatpush.msra.mxu0 %v2114
    %3298 = vmatpush.msra.mxu0 %v2104
    %3299 = vmatpush.msra.mxu0 %v2094
    %3300 = vmatpush.msra.mxu0 %v2084
    %3301 = vmatpush.msra.mxu0 %v2074
    %3302 = vmatpush.msra.mxu0 %v2064
    %3303 = vmatpush.msra.mxu0 %v2054
    %3304 = vmatpush.msra.mxu0 %v2044
    %3305 = vmatpush.msra.mxu0 %v2034
    %3306 = vmatmul.f32.gmra.mxu0 %v2019
    %v3307 = vpop.f32.mrf.mxu0
    %v3308 = vadd.f32 0.0, %v3307
    %3309 = vmatmul.f32.gmra.mxu0 %v2024
    %v3310 = vpop.f32.mrf.mxu0
    %v3311 = vadd.f32 0.0, %v3310
    %3312 = vdwg.mxu0
    %3313 = vmatpush.msra.mxu0 %v2344
    %3314 = vmatpush.msra.mxu0 %v2334
    %3315 = vmatpush.msra.mxu0 %v2324
    %3316 = vmatpush.msra.mxu0 %v2314
    %3317 = vmatpush.msra.mxu0 %v2304
    %3318 = vmatpush.msra.mxu0 %v2294
    %3319 = vmatpush.msra.mxu0 %v2284
    %3320 = vmatpush.msra.mxu0 %v2274
    %3321 = vmatpush.msra.mxu0 %v2264
    %3322 = vmatpush.msra.mxu0 %v2254
    %3323 = vmatpush.msra.mxu0 %v2244
    %3324 = vmatpush.msra.mxu0 %v2234
    %3325 = vmatpush.msra.mxu0 %v2224
    %3326 = vmatpush.msra.mxu0 %v2214
    %3327 = vmatpush.msra.mxu0 %v2204
    %3328 = vmatpush.msra.mxu0 %v2194
    %3329 = vmatmul.f32.gmra.mxu0 %v2020
    %v3330 = vpop.f32.mrf.mxu0
    %v3331 = vadd.f32 %v3308, %v3330
    %3332 = vmatmul.f32.gmra.mxu0 %v2025
    %v3333 = vpop.f32.mrf.mxu0
    %v3334 = vadd.f32 %v3311, %v3333
    %3335 = vdwg.mxu0
    %3336 = vmatpush.msra.mxu0 %v2504
    %3337 = vmatpush.msra.mxu0 %v2494
    %3338 = vmatpush.msra.mxu0 %v2484
    %3339 = vmatpush.msra.mxu0 %v2474
    %3340 = vmatpush.msra.mxu0 %v2464
    %3341 = vmatpush.msra.mxu0 %v2454
    %3342 = vmatpush.msra.mxu0 %v2444
    %3343 = vmatpush.msra.mxu0 %v2434
    %3344 = vmatpush.msra.mxu0 %v2424
    %3345 = vmatpush.msra.mxu0 %v2414
    %3346 = vmatpush.msra.mxu0 %v2404
    %3347 = vmatpush.msra.mxu0 %v2394
    %3348 = vmatpush.msra.mxu0 %v2384
    %3349 = vmatpush.msra.mxu0 %v2374
    %3350 = vmatpush.msra.mxu0 %v2364
    %3351 = vmatpush.msra.mxu0 %v2354
    %3352 = vmatmul.f32.gmra.mxu0 %v2021
    %v3353 = vpop.f32.mrf.mxu0
    %v3354 = vadd.f32 %v3331, %v3353
    %3355 = vmatmul.f32.gmra.mxu0 %v2026
    %v3356 = vpop.f32.mrf.mxu0
    %v3357 = vadd.f32 %v3334, %v3356
    %3358 = vdwg.mxu0
    %3359 = vmatpush.msra.mxu0 %v2664
    %3360 = vmatpush.msra.mxu0 %v2654
    %3361 = vmatpush.msra.mxu0 %v2644
    %3362 = vmatpush.msra.mxu0 %v2634
    %3363 = vmatpush.msra.mxu0 %v2624
    %3364 = vmatpush.msra.mxu0 %v2614
    %3365 = vmatpush.msra.mxu0 %v2604
    %3366 = vmatpush.msra.mxu0 %v2594
    %3367 = vmatpush.msra.mxu0 %v2584
    %3368 = vmatpush.msra.mxu0 %v2574
    %3369 = vmatpush.msra.mxu0 %v2564
    %3370 = vmatpush.msra.mxu0 %v2554
    %3371 = vmatpush.msra.mxu0 %v2544
    %3372 = vmatpush.msra.mxu0 %v2534
    %3373 = vmatpush.msra.mxu0 %v2524
    %3374 = vmatpush.msra.mxu0 %v2514
    %3375 = vmatmul.f32.gmra.mxu0 %v2022
    %v3376 = vpop.f32.mrf.mxu0
    %v3377 = vadd.f32 %v3354, %v3376
    %3378 = vmatmul.f32.gmra.mxu0 %v2027
    %v3379 = vpop.f32.mrf.mxu0
    %v3380 = vadd.f32 %v3357, %v3379
    %3381 = vdwg.mxu0
    %3382 = vmatpush.msra.mxu0 %v2824
    %3383 = vmatpush.msra.mxu0 %v2814
    %3384 = vmatpush.msra.mxu0 %v2804
    %3385 = vmatpush.msra.mxu0 %v2794
    %3386 = vmatpush.msra.mxu0 %v2784
    %3387 = vmatpush.msra.mxu0 %v2774
    %3388 = vmatpush.msra.mxu0 %v2764
    %3389 = vmatpush.msra.mxu0 %v2754
    %3390 = vmatpush.msra.mxu0 %v2744
    %3391 = vmatpush.msra.mxu0 %v2734
    %3392 = vmatpush.msra.mxu0 %v2724
    %3393 = vmatpush.msra.mxu0 %v2714
    %3394 = vmatpush.msra.mxu0 %v2704
    %3395 = vmatpush.msra.mxu0 %v2694
    %3396 = vmatpush.msra.mxu0 %v2684
    %3397 = vmatpush.msra.mxu0 %v2674
    %3398 = vmatmul.f32.gmra.mxu0 %v2023
    %v3399 = vpop.f32.mrf.mxu0
    %v3400 = vadd.f32 %v3377, %v3399
    %3401 = vmatmul.f32.gmra.mxu0 %v2028
    %v3402 = vpop.f32.mrf.mxu0
    %v3403 = vadd.f32 %v3380, %v3402
    %3404 = vdwg.mxu0
    %3405 = vmatpush.msra.mxu0 %v2185
    %3406 = vmatpush.msra.mxu0 %v2175
    %3407 = vmatpush.msra.mxu0 %v2165
    %3408 = vmatpush.msra.mxu0 %v2155
    %3409 = vmatpush.msra.mxu0 %v2145
    %3410 = vmatpush.msra.mxu0 %v2135
    %3411 = vmatpush.msra.mxu0 %v2125
    %3412 = vmatpush.msra.mxu0 %v2115
    %3413 = vmatpush.msra.mxu0 %v2105
    %3414 = vmatpush.msra.mxu0 %v2095
    %3415 = vmatpush.msra.mxu0 %v2085
    %3416 = vmatpush.msra.mxu0 %v2075
    %3417 = vmatpush.msra.mxu0 %v2065
    %3418 = vmatpush.msra.mxu0 %v2055
    %3419 = vmatpush.msra.mxu0 %v2045
    %3420 = vmatpush.msra.mxu0 %v2035
    %3421 = vmatmul.f32.gmra.mxu0 %v2019
    %v3422 = vpop.f32.mrf.mxu0
    %v3423 = vadd.f32 0.0, %v3422
    %3424 = vmatmul.f32.gmra.mxu0 %v2024
    %v3425 = vpop.f32.mrf.mxu0
    %v3426 = vadd.f32 0.0, %v3425
    %3427 = vdwg.mxu0
    %3428 = vmatpush.msra.mxu0 %v2345
    %3429 = vmatpush.msra.mxu0 %v2335
    %3430 = vmatpush.msra.mxu0 %v2325
    %3431 = vmatpush.msra.mxu0 %v2315
    %3432 = vmatpush.msra.mxu0 %v2305
    %3433 = vmatpush.msra.mxu0 %v2295
    %3434 = vmatpush.msra.mxu0 %v2285
    %3435 = vmatpush.msra.mxu0 %v2275
    %3436 = vmatpush.msra.mxu0 %v2265
    %3437 = vmatpush.msra.mxu0 %v2255
    %3438 = vmatpush.msra.mxu0 %v2245
    %3439 = vmatpush.msra.mxu0 %v2235
    %3440 = vmatpush.msra.mxu0 %v2225
    %3441 = vmatpush.msra.mxu0 %v2215
    %3442 = vmatpush.msra.mxu0 %v2205
    %3443 = vmatpush.msra.mxu0 %v2195
    %3444 = vmatmul.f32.gmra.mxu0 %v2020
    %v3445 = vpop.f32.mrf.mxu0
    %v3446 = vadd.f32 %v3423, %v3445
    %3447 = vmatmul.f32.gmra.mxu0 %v2025
    %v3448 = vpop.f32.mrf.mxu0
    %v3449 = vadd.f32 %v3426, %v3448
    %3450 = vdwg.mxu0
    %3451 = vmatpush.msra.mxu0 %v2505
    %3452 = vmatpush.msra.mxu0 %v2495
    %3453 = vmatpush.msra.mxu0 %v2485
    %3454 = vmatpush.msra.mxu0 %v2475
    %3455 = vmatpush.msra.mxu0 %v2465
    %3456 = vmatpush.msra.mxu0 %v2455
    %3457 = vmatpush.msra.mxu0 %v2445
    %3458 = vmatpush.msra.mxu0 %v2435
    %3459 = vmatpush.msra.mxu0 %v2425
    %3460 = vmatpush.msra.mxu0 %v2415
    %3461 = vmatpush.msra.mxu0 %v2405
    %3462 = vmatpush.msra.mxu0 %v2395
    %3463 = vmatpush.msra.mxu0 %v2385
    %3464 = vmatpush.msra.mxu0 %v2375
    %3465 = vmatpush.msra.mxu0 %v2365
    %3466 = vmatpush.msra.mxu0 %v2355
    %3467 = vmatmul.f32.gmra.mxu0 %v2021
    %v3468 = vpop.f32.mrf.mxu0
    %v3469 = vadd.f32 %v3446, %v3468
    %3470 = vmatmul.f32.gmra.mxu0 %v2026
    %v3471 = vpop.f32.mrf.mxu0
    %v3472 = vadd.f32 %v3449, %v3471
    %3473 = vdwg.mxu0
    %3474 = vmatpush.msra.mxu0 %v2665
    %3475 = vmatpush.msra.mxu0 %v2655
    %3476 = vmatpush.msra.mxu0 %v2645
    %3477 = vmatpush.msra.mxu0 %v2635
    %3478 = vmatpush.msra.mxu0 %v2625
    %3479 = vmatpush.msra.mxu0 %v2615
    %3480 = vmatpush.msra.mxu0 %v2605
    %3481 = vmatpush.msra.mxu0 %v2595
    %3482 = vmatpush.msra.mxu0 %v2585
    %3483 = vmatpush.msra.mxu0 %v2575
    %3484 = vmatpush.msra.mxu0 %v2565
    %3485 = vmatpush.msra.mxu0 %v2555
    %3486 = vmatpush.msra.mxu0 %v2545
    %3487 = vmatpush.msra.mxu0 %v2535
    %3488 = vmatpush.msra.mxu0 %v2525
    %3489 = vmatpush.msra.mxu0 %v2515
    %3490 = vmatmul.f32.gmra.mxu0 %v2022
    %v3491 = vpop.f32.mrf.mxu0
    %v3492 = vadd.f32 %v3469, %v3491
    %3493 = vmatmul.f32.gmra.mxu0 %v2027
    %v3494 = vpop.f32.mrf.mxu0
    %v3495 = vadd.f32 %v3472, %v3494
    %3496 = vdwg.mxu0
    %3497 = vmatpush.msra.mxu0 %v2825
    %3498 = vmatpush.msra.mxu0 %v2815
    %3499 = vmatpush.msra.mxu0 %v2805
    %3500 = vmatpush.msra.mxu0 %v2795
    %3501 = vmatpush.msra.mxu0 %v2785
    %3502 = vmatpush.msra.mxu0 %v2775
    %3503 = vmatpush.msra.mxu0 %v2765
    %3504 = vmatpush.msra.mxu0 %v2755
    %3505 = vmatpush.msra.mxu0 %v2745
    %3506 = vmatpush.msra.mxu0 %v2735
    %3507 = vmatpush.msra.mxu0 %v2725
    %3508 = vmatpush.msra.mxu0 %v2715
    %3509 = vmatpush.msra.mxu0 %v2705
    %3510 = vmatpush.msra.mxu0 %v2695
    %3511 = vmatpush.msra.mxu0 %v2685
    %3512 = vmatpush.msra.mxu0 %v2675
    %3513 = vmatmul.f32.gmra.mxu0 %v2023
    %v3514 = vpop.f32.mrf.mxu0
    %v3515 = vadd.f32 %v3492, %v3514
    %3516 = vmatmul.f32.gmra.mxu0 %v2028
    %v3517 = vpop.f32.mrf.mxu0
    %v3518 = vadd.f32 %v3495, %v3517
    %3519 = vdwg.mxu0
    %3520 = vmatpush.msra.mxu0 %v2186
    %3521 = vmatpush.msra.mxu0 %v2176
    %3522 = vmatpush.msra.mxu0 %v2166
    %3523 = vmatpush.msra.mxu0 %v2156
    %3524 = vmatpush.msra.mxu0 %v2146
    %3525 = vmatpush.msra.mxu0 %v2136
    %3526 = vmatpush.msra.mxu0 %v2126
    %3527 = vmatpush.msra.mxu0 %v2116
    %3528 = vmatpush.msra.mxu0 %v2106
    %3529 = vmatpush.msra.mxu0 %v2096
    %3530 = vmatpush.msra.mxu0 %v2086
    %3531 = vmatpush.msra.mxu0 %v2076
    %3532 = vmatpush.msra.mxu0 %v2066
    %3533 = vmatpush.msra.mxu0 %v2056
    %3534 = vmatpush.msra.mxu0 %v2046
    %3535 = vmatpush.msra.mxu0 %v2036
    %3536 = vmatmul.f32.gmra.mxu0 %v2019
    %v3537 = vpop.f32.mrf.mxu0
    %v3538 = vadd.f32 0.0, %v3537
    %3539 = vmatmul.f32.gmra.mxu0 %v2024
    %v3540 = vpop.f32.mrf.mxu0
    %v3541 = vadd.f32 0.0, %v3540
    %3542 = vdwg.mxu0
    %3543 = vmatpush.msra.mxu0 %v2346
    %3544 = vmatpush.msra.mxu0 %v2336
    %3545 = vmatpush.msra.mxu0 %v2326
    %3546 = vmatpush.msra.mxu0 %v2316
    %3547 = vmatpush.msra.mxu0 %v2306
    %3548 = vmatpush.msra.mxu0 %v2296
    %3549 = vmatpush.msra.mxu0 %v2286
    %3550 = vmatpush.msra.mxu0 %v2276
    %3551 = vmatpush.msra.mxu0 %v2266
    %3552 = vmatpush.msra.mxu0 %v2256
    %3553 = vmatpush.msra.mxu0 %v2246
    %3554 = vmatpush.msra.mxu0 %v2236
    %3555 = vmatpush.msra.mxu0 %v2226
    %3556 = vmatpush.msra.mxu0 %v2216
    %3557 = vmatpush.msra.mxu0 %v2206
    %3558 = vmatpush.msra.mxu0 %v2196
    %3559 = vmatmul.f32.gmra.mxu0 %v2020
    %v3560 = vpop.f32.mrf.mxu0
    %v3561 = vadd.f32 %v3538, %v3560
    %3562 = vmatmul.f32.gmra.mxu0 %v2025
    %v3563 = vpop.f32.mrf.mxu0
    %v3564 = vadd.f32 %v3541, %v3563
    %3565 = vdwg.mxu0
    %3566 = vmatpush.msra.mxu0 %v2506
    %3567 = vmatpush.msra.mxu0 %v2496
    %3568 = vmatpush.msra.mxu0 %v2486
    %3569 = vmatpush.msra.mxu0 %v2476
    %3570 = vmatpush.msra.mxu0 %v2466
    %3571 = vmatpush.msra.mxu0 %v2456
    %3572 = vmatpush.msra.mxu0 %v2446
    %3573 = vmatpush.msra.mxu0 %v2436
    %3574 = vmatpush.msra.mxu0 %v2426
    %3575 = vmatpush.msra.mxu0 %v2416
    %3576 = vmatpush.msra.mxu0 %v2406
    %3577 = vmatpush.msra.mxu0 %v2396
    %3578 = vmatpush.msra.mxu0 %v2386
    %3579 = vmatpush.msra.mxu0 %v2376
    %3580 = vmatpush.msra.mxu0 %v2366
    %3581 = vmatpush.msra.mxu0 %v2356
    %3582 = vmatmul.f32.gmra.mxu0 %v2021
    %v3583 = vpop.f32.mrf.mxu0
    %v3584 = vadd.f32 %v3561, %v3583
    %3585 = vmatmul.f32.gmra.mxu0 %v2026
    %v3586 = vpop.f32.mrf.mxu0
    %v3587 = vadd.f32 %v3564, %v3586
    %3588 = vdwg.mxu0
    %3589 = vmatpush.msra.mxu0 %v2666
    %3590 = vmatpush.msra.mxu0 %v2656
    %3591 = vmatpush.msra.mxu0 %v2646
    %3592 = vmatpush.msra.mxu0 %v2636
    %3593 = vmatpush.msra.mxu0 %v2626
    %3594 = vmatpush.msra.mxu0 %v2616
    %3595 = vmatpush.msra.mxu0 %v2606
    %3596 = vmatpush.msra.mxu0 %v2596
    %3597 = vmatpush.msra.mxu0 %v2586
    %3598 = vmatpush.msra.mxu0 %v2576
    %3599 = vmatpush.msra.mxu0 %v2566
    %3600 = vmatpush.msra.mxu0 %v2556
    %3601 = vmatpush.msra.mxu0 %v2546
    %3602 = vmatpush.msra.mxu0 %v2536
    %3603 = vmatpush.msra.mxu0 %v2526
    %3604 = vmatpush.msra.mxu0 %v2516
    %3605 = vmatmul.f32.gmra.mxu0 %v2022
    %v3606 = vpop.f32.mrf.mxu0
    %v3607 = vadd.f32 %v3584, %v3606
    %3608 = vmatmul.f32.gmra.mxu0 %v2027
    %v3609 = vpop.f32.mrf.mxu0
    %v3610 = vadd.f32 %v3587, %v3609
    %3611 = vdwg.mxu0
    %3612 = vmatpush.msra.mxu0 %v2826
    %3613 = vmatpush.msra.mxu0 %v2816
    %3614 = vmatpush.msra.mxu0 %v2806
    %3615 = vmatpush.msra.mxu0 %v2796
    %3616 = vmatpush.msra.mxu0 %v2786
    %3617 = vmatpush.msra.mxu0 %v2776
    %3618 = vmatpush.msra.mxu0 %v2766
    %3619 = vmatpush.msra.mxu0 %v2756
    %3620 = vmatpush.msra.mxu0 %v2746
    %3621 = vmatpush.msra.mxu0 %v2736
    %3622 = vmatpush.msra.mxu0 %v2726
    %3623 = vmatpush.msra.mxu0 %v2716
    %3624 = vmatpush.msra.mxu0 %v2706
    %3625 = vmatpush.msra.mxu0 %v2696
    %3626 = vmatpush.msra.mxu0 %v2686
    %3627 = vmatpush.msra.mxu0 %v2676
    %3628 = vmatmul.f32.gmra.mxu0 %v2023
    %v3629 = vpop.f32.mrf.mxu0
    %v3630 = vadd.f32 %v3607, %v3629
    %3631 = vmatmul.f32.gmra.mxu0 %v2028
    %v3632 = vpop.f32.mrf.mxu0
    %v3633 = vadd.f32 %v3610, %v3632
    %3634 = vdwg.mxu0
    %3635 = vmatpush.msra.mxu0 %v2187
    %3636 = vmatpush.msra.mxu0 %v2177
    %3637 = vmatpush.msra.mxu0 %v2167
    %3638 = vmatpush.msra.mxu0 %v2157
    %3639 = vmatpush.msra.mxu0 %v2147
    %3640 = vmatpush.msra.mxu0 %v2137
    %3641 = vmatpush.msra.mxu0 %v2127
    %3642 = vmatpush.msra.mxu0 %v2117
    %3643 = vmatpush.msra.mxu0 %v2107
    %3644 = vmatpush.msra.mxu0 %v2097
    %3645 = vmatpush.msra.mxu0 %v2087
    %3646 = vmatpush.msra.mxu0 %v2077
    %3647 = vmatpush.msra.mxu0 %v2067
    %3648 = vmatpush.msra.mxu0 %v2057
    %3649 = vmatpush.msra.mxu0 %v2047
    %3650 = vmatpush.msra.mxu0 %v2037
    %3651 = vmatmul.f32.gmra.mxu0 %v2019
    %v3652 = vpop.f32.mrf.mxu0
    %v3653 = vadd.f32 0.0, %v3652
    %3654 = vmatmul.f32.gmra.mxu0 %v2024
    %v3655 = vpop.f32.mrf.mxu0
    %v3656 = vadd.f32 0.0, %v3655
    %3657 = vdwg.mxu0
    %3658 = vmatpush.msra.mxu0 %v2347
    %3659 = vmatpush.msra.mxu0 %v2337
    %3660 = vmatpush.msra.mxu0 %v2327
    %3661 = vmatpush.msra.mxu0 %v2317
    %3662 = vmatpush.msra.mxu0 %v2307
    %3663 = vmatpush.msra.mxu0 %v2297
    %3664 = vmatpush.msra.mxu0 %v2287
    %3665 = vmatpush.msra.mxu0 %v2277
    %3666 = vmatpush.msra.mxu0 %v2267
    %3667 = vmatpush.msra.mxu0 %v2257
    %3668 = vmatpush.msra.mxu0 %v2247
    %3669 = vmatpush.msra.mxu0 %v2237
    %3670 = vmatpush.msra.mxu0 %v2227
    %3671 = vmatpush.msra.mxu0 %v2217
    %3672 = vmatpush.msra.mxu0 %v2207
    %3673 = vmatpush.msra.mxu0 %v2197
    %3674 = vmatmul.f32.gmra.mxu0 %v2020
    %v3675 = vpop.f32.mrf.mxu0
    %v3676 = vadd.f32 %v3653, %v3675
    %3677 = vmatmul.f32.gmra.mxu0 %v2025
    %v3678 = vpop.f32.mrf.mxu0
    %v3679 = vadd.f32 %v3656, %v3678
    %3680 = vdwg.mxu0
    %3681 = vmatpush.msra.mxu0 %v2507
    %3682 = vmatpush.msra.mxu0 %v2497
    %3683 = vmatpush.msra.mxu0 %v2487
    %3684 = vmatpush.msra.mxu0 %v2477
    %3685 = vmatpush.msra.mxu0 %v2467
    %3686 = vmatpush.msra.mxu0 %v2457
    %3687 = vmatpush.msra.mxu0 %v2447
    %3688 = vmatpush.msra.mxu0 %v2437
    %3689 = vmatpush.msra.mxu0 %v2427
    %3690 = vmatpush.msra.mxu0 %v2417
    %3691 = vmatpush.msra.mxu0 %v2407
    %3692 = vmatpush.msra.mxu0 %v2397
    %3693 = vmatpush.msra.mxu0 %v2387
    %3694 = vmatpush.msra.mxu0 %v2377
    %3695 = vmatpush.msra.mxu0 %v2367
    %3696 = vmatpush.msra.mxu0 %v2357
    %3697 = vmatmul.f32.gmra.mxu0 %v2021
    %v3698 = vpop.f32.mrf.mxu0
    %v3699 = vadd.f32 %v3676, %v3698
    %3700 = vmatmul.f32.gmra.mxu0 %v2026
    %v3701 = vpop.f32.mrf.mxu0
    %v3702 = vadd.f32 %v3679, %v3701
    %3703 = vdwg.mxu0
    %3704 = vmatpush.msra.mxu0 %v2667
    %3705 = vmatpush.msra.mxu0 %v2657
    %3706 = vmatpush.msra.mxu0 %v2647
    %3707 = vmatpush.msra.mxu0 %v2637
    %3708 = vmatpush.msra.mxu0 %v2627
    %3709 = vmatpush.msra.mxu0 %v2617
    %3710 = vmatpush.msra.mxu0 %v2607
    %3711 = vmatpush.msra.mxu0 %v2597
    %3712 = vmatpush.msra.mxu0 %v2587
    %3713 = vmatpush.msra.mxu0 %v2577
    %3714 = vmatpush.msra.mxu0 %v2567
    %3715 = vmatpush.msra.mxu0 %v2557
    %3716 = vmatpush.msra.mxu0 %v2547
    %3717 = vmatpush.msra.mxu0 %v2537
    %3718 = vmatpush.msra.mxu0 %v2527
    %3719 = vmatpush.msra.mxu0 %v2517
    %3720 = vmatmul.f32.gmra.mxu0 %v2022
    %v3721 = vpop.f32.mrf.mxu0
    %v3722 = vadd.f32 %v3699, %v3721
    %3723 = vmatmul.f32.gmra.mxu0 %v2027
    %v3724 = vpop.f32.mrf.mxu0
    %v3725 = vadd.f32 %v3702, %v3724
    %3726 = vdwg.mxu0
    %3727 = vmatpush.msra.mxu0 %v2827
    %3728 = vmatpush.msra.mxu0 %v2817
    %3729 = vmatpush.msra.mxu0 %v2807
    %3730 = vmatpush.msra.mxu0 %v2797
    %3731 = vmatpush.msra.mxu0 %v2787
    %3732 = vmatpush.msra.mxu0 %v2777
    %3733 = vmatpush.msra.mxu0 %v2767
    %3734 = vmatpush.msra.mxu0 %v2757
    %3735 = vmatpush.msra.mxu0 %v2747
    %3736 = vmatpush.msra.mxu0 %v2737
    %3737 = vmatpush.msra.mxu0 %v2727
    %3738 = vmatpush.msra.mxu0 %v2717
    %3739 = vmatpush.msra.mxu0 %v2707
    %3740 = vmatpush.msra.mxu0 %v2697
    %3741 = vmatpush.msra.mxu0 %v2687
    %3742 = vmatpush.msra.mxu0 %v2677
    %3743 = vmatmul.f32.gmra.mxu0 %v2023
    %v3744 = vpop.f32.mrf.mxu0
    %v3745 = vadd.f32 %v3722, %v3744
    %3746 = vmatmul.f32.gmra.mxu0 %v2028
    %v3747 = vpop.f32.mrf.mxu0
    %v3748 = vadd.f32 %v3725, %v3747
    %3749 = vdwg.mxu0
    %3750 = vmatpush.msra.mxu0 %v2188
    %3751 = vmatpush.msra.mxu0 %v2178
    %3752 = vmatpush.msra.mxu0 %v2168
    %3753 = vmatpush.msra.mxu0 %v2158
    %3754 = vmatpush.msra.mxu0 %v2148
    %3755 = vmatpush.msra.mxu0 %v2138
    %3756 = vmatpush.msra.mxu0 %v2128
    %3757 = vmatpush.msra.mxu0 %v2118
    %3758 = vmatpush.msra.mxu0 %v2108
    %3759 = vmatpush.msra.mxu0 %v2098
    %3760 = vmatpush.msra.mxu0 %v2088
    %3761 = vmatpush.msra.mxu0 %v2078
    %3762 = vmatpush.msra.mxu0 %v2068
    %3763 = vmatpush.msra.mxu0 %v2058
    %3764 = vmatpush.msra.mxu0 %v2048
    %3765 = vmatpush.msra.mxu0 %v2038
    %3766 = vmatmul.f32.gmra.mxu0 %v2019
    %v3767 = vpop.f32.mrf.mxu0
    %v3768 = vadd.f32 0.0, %v3767
    %3769 = vmatmul.f32.gmra.mxu0 %v2024
    %v3770 = vpop.f32.mrf.mxu0
    %v3771 = vadd.f32 0.0, %v3770
    %3772 = vdwg.mxu0
    %3773 = vmatpush.msra.mxu0 %v2348
    %3774 = vmatpush.msra.mxu0 %v2338
    %3775 = vmatpush.msra.mxu0 %v2328
    %3776 = vmatpush.msra.mxu0 %v2318
    %3777 = vmatpush.msra.mxu0 %v2308
    %3778 = vmatpush.msra.mxu0 %v2298
    %3779 = vmatpush.msra.mxu0 %v2288
    %3780 = vmatpush.msra.mxu0 %v2278
    %3781 = vmatpush.msra.mxu0 %v2268
    %3782 = vmatpush.msra.mxu0 %v2258
    %3783 = vmatpush.msra.mxu0 %v2248
    %3784 = vmatpush.msra.mxu0 %v2238
    %3785 = vmatpush.msra.mxu0 %v2228
    %3786 = vmatpush.msra.mxu0 %v2218
    %3787 = vmatpush.msra.mxu0 %v2208
    %3788 = vmatpush.msra.mxu0 %v2198
    %3789 = vmatmul.f32.gmra.mxu0 %v2020
    %v3790 = vpop.f32.mrf.mxu0
    %v3791 = vadd.f32 %v3768, %v3790
    %3792 = vmatmul.f32.gmra.mxu0 %v2025
    %v3793 = vpop.f32.mrf.mxu0
    %v3794 = vadd.f32 %v3771, %v3793
    %3795 = vdwg.mxu0
    %3796 = vmatpush.msra.mxu0 %v2508
    %3797 = vmatpush.msra.mxu0 %v2498
    %3798 = vmatpush.msra.mxu0 %v2488
    %3799 = vmatpush.msra.mxu0 %v2478
    %3800 = vmatpush.msra.mxu0 %v2468
    %3801 = vmatpush.msra.mxu0 %v2458
    %3802 = vmatpush.msra.mxu0 %v2448
    %3803 = vmatpush.msra.mxu0 %v2438
    %3804 = vmatpush.msra.mxu0 %v2428
    %3805 = vmatpush.msra.mxu0 %v2418
    %3806 = vmatpush.msra.mxu0 %v2408
    %3807 = vmatpush.msra.mxu0 %v2398
    %3808 = vmatpush.msra.mxu0 %v2388
    %3809 = vmatpush.msra.mxu0 %v2378
    %3810 = vmatpush.msra.mxu0 %v2368
    %3811 = vmatpush.msra.mxu0 %v2358
    %3812 = vmatmul.f32.gmra.mxu0 %v2021
    %v3813 = vpop.f32.mrf.mxu0
    %v3814 = vadd.f32 %v3791, %v3813
    %3815 = vmatmul.f32.gmra.mxu0 %v2026
    %v3816 = vpop.f32.mrf.mxu0
    %v3817 = vadd.f32 %v3794, %v3816
    %3818 = vdwg.mxu0
    %3819 = vmatpush.msra.mxu0 %v2668
    %3820 = vmatpush.msra.mxu0 %v2658
    %3821 = vmatpush.msra.mxu0 %v2648
    %3822 = vmatpush.msra.mxu0 %v2638
    %3823 = vmatpush.msra.mxu0 %v2628
    %3824 = vmatpush.msra.mxu0 %v2618
    %3825 = vmatpush.msra.mxu0 %v2608
    %3826 = vmatpush.msra.mxu0 %v2598
    %3827 = vmatpush.msra.mxu0 %v2588
    %3828 = vmatpush.msra.mxu0 %v2578
    %3829 = vmatpush.msra.mxu0 %v2568
    %3830 = vmatpush.msra.mxu0 %v2558
    %3831 = vmatpush.msra.mxu0 %v2548
    %3832 = vmatpush.msra.mxu0 %v2538
    %3833 = vmatpush.msra.mxu0 %v2528
    %3834 = vmatpush.msra.mxu0 %v2518
    %3835 = vmatmul.f32.gmra.mxu0 %v2022
    %v3836 = vpop.f32.mrf.mxu0
    %v3837 = vadd.f32 %v3814, %v3836
    %3838 = vmatmul.f32.gmra.mxu0 %v2027
    %v3839 = vpop.f32.mrf.mxu0
    %v3840 = vadd.f32 %v3817, %v3839
    %3841 = vdwg.mxu0
    %3842 = vmatpush.msra.mxu0 %v2828
    %3843 = vmatpush.msra.mxu0 %v2818
    %3844 = vmatpush.msra.mxu0 %v2808
    %3845 = vmatpush.msra.mxu0 %v2798
    %3846 = vmatpush.msra.mxu0 %v2788
    %3847 = vmatpush.msra.mxu0 %v2778
    %3848 = vmatpush.msra.mxu0 %v2768
    %3849 = vmatpush.msra.mxu0 %v2758
    %3850 = vmatpush.msra.mxu0 %v2748
    %3851 = vmatpush.msra.mxu0 %v2738
    %3852 = vmatpush.msra.mxu0 %v2728
    %3853 = vmatpush.msra.mxu0 %v2718
    %3854 = vmatpush.msra.mxu0 %v2708
    %3855 = vmatpush.msra.mxu0 %v2698
    %3856 = vmatpush.msra.mxu0 %v2688
    %3857 = vmatpush.msra.mxu0 %v2678
    %3858 = vmatmul.f32.gmra.mxu0 %v2023
    %v3859 = vpop.f32.mrf.mxu0
    %v3860 = vadd.f32 %v3837, %v3859
    %3861 = vmatmul.f32.gmra.mxu0 %v2028
    %v3862 = vpop.f32.mrf.mxu0
    %v3863 = vadd.f32 %v3840, %v3862
    %3864 = vdwg.mxu0
    %3865 = vmatpush.msra.mxu0 %v2189
    %3866 = vmatpush.msra.mxu0 %v2179
    %3867 = vmatpush.msra.mxu0 %v2169
    %3868 = vmatpush.msra.mxu0 %v2159
    %3869 = vmatpush.msra.mxu0 %v2149
    %3870 = vmatpush.msra.mxu0 %v2139
    %3871 = vmatpush.msra.mxu0 %v2129
    %3872 = vmatpush.msra.mxu0 %v2119
    %3873 = vmatpush.msra.mxu0 %v2109
    %3874 = vmatpush.msra.mxu0 %v2099
    %3875 = vmatpush.msra.mxu0 %v2089
    %3876 = vmatpush.msra.mxu0 %v2079
    %3877 = vmatpush.msra.mxu0 %v2069
    %3878 = vmatpush.msra.mxu0 %v2059
    %3879 = vmatpush.msra.mxu0 %v2049
    %3880 = vmatpush.msra.mxu0 %v2039
    %3881 = vmatmul.f32.gmra.mxu0 %v2019
    %v3882 = vpop.f32.mrf.mxu0
    %v3883 = vadd.f32 0.0, %v3882
    %3884 = vmatmul.f32.gmra.mxu0 %v2024
    %v3885 = vpop.f32.mrf.mxu0
    %v3886 = vadd.f32 0.0, %v3885
    %3887 = vdwg.mxu0
    %3888 = vmatpush.msra.mxu0 %v2349
    %3889 = vmatpush.msra.mxu0 %v2339
    %3890 = vmatpush.msra.mxu0 %v2329
    %3891 = vmatpush.msra.mxu0 %v2319
    %3892 = vmatpush.msra.mxu0 %v2309
    %3893 = vmatpush.msra.mxu0 %v2299
    %3894 = vmatpush.msra.mxu0 %v2289
    %3895 = vmatpush.msra.mxu0 %v2279
    %3896 = vmatpush.msra.mxu0 %v2269
    %3897 = vmatpush.msra.mxu0 %v2259
    %3898 = vmatpush.msra.mxu0 %v2249
    %3899 = vmatpush.msra.mxu0 %v2239
    %3900 = vmatpush.msra.mxu0 %v2229
    %3901 = vmatpush.msra.mxu0 %v2219
    %3902 = vmatpush.msra.mxu0 %v2209
    %3903 = vmatpush.msra.mxu0 %v2199
    %3904 = vmatmul.f32.gmra.mxu0 %v2020
    %v3905 = vpop.f32.mrf.mxu0
    %v3906 = vadd.f32 %v3883, %v3905
    %3907 = vmatmul.f32.gmra.mxu0 %v2025
    %v3908 = vpop.f32.mrf.mxu0
    %v3909 = vadd.f32 %v3886, %v3908
    %3910 = vdwg.mxu0
    %3911 = vmatpush.msra.mxu0 %v2509
    %3912 = vmatpush.msra.mxu0 %v2499
    %3913 = vmatpush.msra.mxu0 %v2489
    %3914 = vmatpush.msra.mxu0 %v2479
    %3915 = vmatpush.msra.mxu0 %v2469
    %3916 = vmatpush.msra.mxu0 %v2459
    %3917 = vmatpush.msra.mxu0 %v2449
    %3918 = vmatpush.msra.mxu0 %v2439
    %3919 = vmatpush.msra.mxu0 %v2429
    %3920 = vmatpush.msra.mxu0 %v2419
    %3921 = vmatpush.msra.mxu0 %v2409
    %3922 = vmatpush.msra.mxu0 %v2399
    %3923 = vmatpush.msra.mxu0 %v2389
    %3924 = vmatpush.msra.mxu0 %v2379
    %3925 = vmatpush.msra.mxu0 %v2369
    %3926 = vmatpush.msra.mxu0 %v2359
    %3927 = vmatmul.f32.gmra.mxu0 %v2021
    %v3928 = vpop.f32.mrf.mxu0
    %v3929 = vadd.f32 %v3906, %v3928
    %3930 = vmatmul.f32.gmra.mxu0 %v2026
    %v3931 = vpop.f32.mrf.mxu0
    %v3932 = vadd.f32 %v3909, %v3931
    %3933 = vdwg.mxu0
    %3934 = vmatpush.msra.mxu0 %v2669
    %3935 = vmatpush.msra.mxu0 %v2659
    %3936 = vmatpush.msra.mxu0 %v2649
    %3937 = vmatpush.msra.mxu0 %v2639
    %3938 = vmatpush.msra.mxu0 %v2629
    %3939 = vmatpush.msra.mxu0 %v2619
    %3940 = vmatpush.msra.mxu0 %v2609
    %3941 = vmatpush.msra.mxu0 %v2599
    %3942 = vmatpush.msra.mxu0 %v2589
    %3943 = vmatpush.msra.mxu0 %v2579
    %3944 = vmatpush.msra.mxu0 %v2569
    %3945 = vmatpush.msra.mxu0 %v2559
    %3946 = vmatpush.msra.mxu0 %v2549
    %3947 = vmatpush.msra.mxu0 %v2539
    %3948 = vmatpush.msra.mxu0 %v2529
    %3949 = vmatpush.msra.mxu0 %v2519
    %3950 = vmatmul.f32.gmra.mxu0 %v2022
    %v3951 = vpop.f32.mrf.mxu0
    %v3952 = vadd.f32 %v3929, %v3951
    %3953 = vmatmul.f32.gmra.mxu0 %v2027
    %v3954 = vpop.f32.mrf.mxu0
    %v3955 = vadd.f32 %v3932, %v3954
    %3956 = vdwg.mxu0
    %3957 = vmatpush.msra.mxu0 %v2829
    %3958 = vmatpush.msra.mxu0 %v2819
    %3959 = vmatpush.msra.mxu0 %v2809
    %3960 = vmatpush.msra.mxu0 %v2799
    %3961 = vmatpush.msra.mxu0 %v2789
    %3962 = vmatpush.msra.mxu0 %v2779
    %3963 = vmatpush.msra.mxu0 %v2769
    %3964 = vmatpush.msra.mxu0 %v2759
    %3965 = vmatpush.msra.mxu0 %v2749
    %3966 = vmatpush.msra.mxu0 %v2739
    %3967 = vmatpush.msra.mxu0 %v2729
    %3968 = vmatpush.msra.mxu0 %v2719
    %3969 = vmatpush.msra.mxu0 %v2709
    %3970 = vmatpush.msra.mxu0 %v2699
    %3971 = vmatpush.msra.mxu0 %v2689
    %3972 = vmatpush.msra.mxu0 %v2679
    %3973 = vmatmul.f32.gmra.mxu0 %v2023
    %v3974 = vpop.f32.mrf.mxu0
    %v3975 = vadd.f32 %v3952, %v3974
    %3976 = vmatmul.f32.gmra.mxu0 %v2028
    %v3977 = vpop.f32.mrf.mxu0
    %v3978 = vadd.f32 %v3955, %v3977
    %3979 = vdwg.mxu0
    %v3980 = vsub.f32 %v2940, %v3518
    %v3981 = vsub.f32 %v3055, %v3633
    %v3982 = vsub.f32 %v3170, %v3748
    %v3983 = vsub.f32 %v3285, %v3863
    %v3984 = vsub.f32 %v3400, %v3978
    %v3985 = vadd.f32 %v3515, %v2943
    %v3986 = vadd.f32 %v3630, %v3058
    %v3987 = vadd.f32 %v3745, %v3173
    %v3988 = vadd.f32 %v3860, %v3288
    %v3989 = vadd.f32 %v3975, %v3403
    %v3990 = vmul.f32 %v3980, %v3981
    %v3991 = vmul.f32 %v3981, %v3982
    %v3992 = vmul.f32 %v3982, %v3983
    %v3993 = vmul.f32 %v3983, %v3984
    %v3994 = vmul.f32 %v3985, %v3986
    %v3995 = vmul.f32 %v3986, %v3987
    %v3996 = vmul.f32 %v3987, %v3988
    %v3997 = vmul.f32 %v3988, %v3989
    %v3998 = vld [vmem:[#allocation6] sm:$0xf]
    %v4000 = vperm.slane %v3998, 0
    %v4001 = vperm.slane %v3998, 1
    %v4002 = vperm.slane %v3998, 2
    %v4003 = vperm.slane %v3998, 3
    %v4008 = vmul.f32 %v3990, %v4000
    %v4009 = vmul.f32 %v3991, %v4001
    %v4010 = vmul.f32 %v3992, %v4002
    %v4011 = vmul.f32 %v3993, %v4003
    %v4012 = vmul.f32 %v3994, %v4000
    %v4013 = vmul.f32 %v3995, %v4001
    %v4014 = vmul.f32 %v3996, %v4002
    %v4015 = vmul.f32 %v3997, %v4003
    %v4016 = vadd.f32 %v4008, %v4009
    %v4017 = vadd.f32 %v4016, %v4010
    %v4018 = vadd.f32 %v4017, %v4011
    %4019 = vadd.xlane.f32.xlu0 %v4018
    %v4020 = vpop.xlane.xlu0 %4019
    %v4021 = vadd.f32 %v4012, %v4013
    %v4022 = vadd.f32 %v4021, %v4014
    %v4023 = vadd.f32 %v4022, %v4015
    %4024 = vadd.xlane.f32.xlu0 %v4023
    %v4025 = vpop.xlane.xlu0 %4024
    %v4026 = vadd.f32 %v4020, %v4025
    %v4027 = vmul.f32 %v4026, 2.0
    %vm4028 = vcmask 7168
    %4029 = vst.msk [vmem:[%s3] sm:$0xff] %vm4028, %v4027
    // Predicated region
    $region26: #{tpu_custom_call.1} parent=1 // pred_check
      _
    $region27: #{tpu_custom_call.1} parent=1 // pred_check_branch
      %4031 = sbr.rel (0) target = $region29
    $region28: #{tpu_custom_call.1} parent=1 // pred_region
      _
    $region29: #{tpu_custom_call.1} parent=1 // pred_fallthru
      _
    // Predicated region
    $region30: #{tpu_custom_call.1} parent=1 // pred_check
      _
    $region31: #{tpu_custom_call.1} parent=1 // pred_check_branch
      %4033 = sbr.rel (0) target = $region33
    $region32: #{tpu_custom_call.1} parent=1 // pred_region
      _
    $region33: #{tpu_custom_call.1} parent=1 // pred_fallthru
      _
    %4034 = vsyncpa [#allocation3], 1
    %4035 = vsyncpa [#allocation5], 1

</llo_original>
